<compile_context>
chip_gen: v7x
topology: tpu7x:2x2x1
jax: 0.10.0
libtpu: 0.0.40
codegen_flags: <defaults>
</compile_context>

<pallas_src>
import jax
import jax.numpy as jnp
from jax.experimental import pallas as pl
from jax.experimental.pallas import tpu as pltpu

FEATURES = 16
IN_DIM = 784
HID = 512


def _round_up(n, m):
    return ((n + m - 1) // m) * m


def vae_kernel(x_ref, eps_ref,
               w1_ref, b1_ref, w2_ref, b2_ref,
               w3_ref, b3_ref, w4_ref, b4_ref,
               recon_ref, enc_ref):
    # ---- encoder ----
    xb = x_ref[...].astype(jnp.bfloat16)
    h1 = jnp.dot(xb, w1_ref[...], preferred_element_type=jnp.float32) + b1_ref[...]
    h1 = jnp.maximum(h1, 0.0).astype(jnp.bfloat16)            # relu(enc1(x))
    enc = jnp.dot(h1, w2_ref[...], preferred_element_type=jnp.float32) + b2_ref[...]

    # enc2 output (TM, 32): first 16 cols = mu, last 16 = log_var
    mu = enc[:, :FEATURES]
    log_var = enc[:, FEATURES:]

    # ---- reparameterize ----
    std = jnp.exp(0.5 * log_var)                              # EUP
    z = (mu + eps_ref[...] * std).astype(jnp.bfloat16)

    # ---- decoder ----
    h2 = jnp.dot(z, w3_ref[...], preferred_element_type=jnp.float32) + b3_ref[...]
    h2 = jnp.maximum(h2, 0.0).astype(jnp.bfloat16)            # relu(dec1(z))
    logits = jnp.dot(h2, w4_ref[...], preferred_element_type=jnp.float32) + b4_ref[...]

    # sigmoid = 1 / (1 + exp(-x)); exp and approx reciprocal both run on the
    # EUP slot (free relative to the VPU).  exp overflow -> 1/inf -> 0, which
    # is the correct sigmoid limit.
    e = jnp.exp(-logits)
    recon_ref[...] = pl.reciprocal(1.0 + e, approx=True).astype(recon_ref.dtype)
    enc_ref[...] = enc                                        # [mu | log_var]


def prepare_params(params):
    """ONE-TIME cast of the Linear weights to bf16 (biases stay f32).

    Call this when the weights are created/loaded, NOT on every forward —
    that keeps the f32->bf16 cast (an extra ~3.3 MB HBM read per call) out of
    the steady-state forward path."""
    w1, b1, w2, b2, w3, b3, w4, b4 = params
    cast = lambda w: w.astype(jnp.bfloat16)
    return (cast(w1), b1, cast(w2), b2, cast(w3), b3, cast(w4), b4)


def _choose_tm(batch, tm):
    # Batch tile: multiple of 8 (sublane).  Default 512 — good roofline
    # fraction on v5e/v6e and still well inside v7x's 32 MiB scoped VMEM
    # (resident bf16 weights ~1.65 MiB x2 buffers + ~5 MiB of activation
    # tiles at tm=512).
    tm = max(8, min(tm, _round_up(batch, 8)))
    # Guarantee >=2 grid steps (so the "parallel" batch axis feeds both
    # TensorCores on megacore parts) when the batch is big enough for
    # >=128-row tiles each.
    if batch >= 256 and pl.cdiv(batch, tm) < 2:
        tm = max(128, _round_up(pl.cdiv(batch, 2), 8))
    return tm


def linear_vae_forward(x, eps, params, *, tm=512):
    """x: (B, 784), eps: (B, 16).

    Returns (reconstruction [bf16], mu [f32], log_var [f32])."""
    B = x.shape[0]
    w1, b1, w2, b2, w3, b3, w4, b4 = params
    # Defensive only: params are expected pre-cast via prepare_params, so this
    # is a trace-time no-op in the normal path.
    w1, w2, w3, w4 = (w if w.dtype == jnp.bfloat16 else w.astype(jnp.bfloat16)
                      for w in (w1, w2, w3, w4))

    tm = _choose_tm(B, tm)
    # Ragged batch tail handled by Pallas partial-block masking — no wrapper
    # pad of x/eps and no recon[:B] slice copy.
    grid = (pl.cdiv(B, tm),)

    # Weights/biases: constant index_map -> DMA'd once, VMEM-resident across
    # the batch grid.  x / eps / outputs: tiled along batch and pipelined.
    const = lambda i: (0, 0)
    in_specs = [
        pl.BlockSpec((tm, IN_DIM), lambda i: (i, 0)),           # x
        pl.BlockSpec((tm, FEATURES), lambda i: (i, 0)),         # eps
        pl.BlockSpec((IN_DIM, HID), const),                     # w1
        pl.BlockSpec((1, HID), const),                          # b1
        pl.BlockSpec((HID, 2 * FEATURES), const),               # w2
        pl.BlockSpec((1, 2 * FEATURES), const),                 # b2
        pl.BlockSpec((FEATURES, HID), const),                   # w3
        pl.BlockSpec((1, HID), const),                          # b3
        pl.BlockSpec((HID, IN_DIM), const),                     # w4
        pl.BlockSpec((1, IN_DIM), const),                       # b4
    ]
    out_specs = (
        pl.BlockSpec((tm, IN_DIM), lambda i: (i, 0)),           # reconstruction
        pl.BlockSpec((tm, 2 * FEATURES), lambda i: (i, 0)),     # [mu | log_var]
    )
    out_shapes = (
        jax.ShapeDtypeStruct((B, IN_DIM), jnp.bfloat16),        # bf16 store halves output DMA
        jax.ShapeDtypeStruct((B, 2 * FEATURES), jnp.float32),
    )

    # Advisory cost estimate (helps XLA schedule this small kernel).
    mac = IN_DIM * HID + HID * 2 * FEATURES + FEATURES * HID + HID * IN_DIM
    weight_bytes = 2 * mac                                       # bf16 weights
    bias_bytes = 4 * (HID + 2 * FEATURES + HID + IN_DIM)
    cost = pl.CostEstimate(
        flops=2 * B * mac,
        transcendentals=B * (IN_DIM + FEATURES),
        bytes_accessed=(weight_bytes + bias_bytes
                        + B * IN_DIM * x.dtype.itemsize          # x in
                        + B * IN_DIM * 2                         # recon out (bf16)
                        + B * FEATURES * 4                       # eps in
                        + B * 2 * FEATURES * 4))                 # enc out

    recon, enc = pl.pallas_call(
        vae_kernel,
        grid=grid,
        in_specs=in_specs,
        out_specs=out_specs,
        out_shape=out_shapes,
        compiler_params=pltpu.CompilerParams(
            dimension_semantics=("parallel",)),
        cost_estimate=cost,
    )(x, eps, w1, b1, w2, b2, w3, b3, w4, b4)

    mu = enc[:, :FEATURES]
    log_var = enc[:, FEATURES:]
    return recon, mu, log_var


def _reference_forward(x, eps, params):
    """Pure-JAX reference using the same bf16-weight / f32-accumulate math."""
    w1, b1, w2, b2, w3, b3, w4, b4 = params

    def bdot(a, w):
        return jnp.dot(a.astype(jnp.bfloat16), w.astype(jnp.bfloat16),
                       preferred_element_type=jnp.float32)

    h1 = jnp.maximum(bdot(x, w1) + b1, 0.0)
    enc = bdot(h1, w2) + b2
    mu = enc[:, :FEATURES]
    log_var = enc[:, FEATURES:]
    z = mu + eps * jnp.exp(0.5 * log_var)
    h2 = jnp.maximum(bdot(z, w3) + b3, 0.0)
    recon = jax.nn.sigmoid(bdot(h2, w4) + b4)
    return recon, mu, log_var


if __name__ == "__main__":
    key = jax.random.PRNGKey(0)
    keys = jax.random.split(key, 10)
    B = 8

    def init_linear(kw, kb, fan_in, fan_out):
        # deterministic, PyTorch-nn.Linear-style uniform(-1/sqrt(fan_in), 1/sqrt(fan_in))
        bound = 1.0 / (fan_in ** 0.5)
        w = jax.random.uniform(kw, (fan_in, fan_out), jnp.float32, -bound, bound)
        b = jax.random.uniform(kb, (1, fan_out), jnp.float32, -bound, bound)
        return w, b

    w1, b1 = init_linear(keys[0], keys[1], IN_DIM, HID)          # enc1: 784 -> 512
    w2, b2 = init_linear(keys[2], keys[3], HID, 2 * FEATURES)    # enc2: 512 -> 32
    w3, b3 = init_linear(keys[4], keys[5], FEATURES, HID)        # dec1: 16  -> 512
    w4, b4 = init_linear(keys[6], keys[7], HID, IN_DIM)          # dec2: 512 -> 784
    # One-time bf16 cast — hoisted out of the forward path.
    params = prepare_params((w1, b1, w2, b2, w3, b3, w4, b4))

    x = jax.random.uniform(keys[8], (B, IN_DIM), jnp.float32)
    eps = jax.random.normal(keys[9], (B, FEATURES), jnp.float32)

    fwd = jax.jit(linear_vae_forward)
    recon, mu, log_var = fwd(x, eps, params)
    jax.block_until_ready((recon, mu, log_var))

    # correctness check against a pure-JAX reference using the same bf16 math
    r_ref, mu_ref, lv_ref = _reference_forward(x, eps, params)
    assert recon.shape == (B, IN_DIM) and recon.dtype == jnp.bfloat16
    assert mu.shape == (B, FEATURES) and log_var.shape == (B, FEATURES)
    assert jnp.allclose(recon.astype(jnp.float32), r_ref, atol=2e-2, rtol=2e-2)
    assert jnp.allclose(mu, mu_ref, atol=2e-2, rtol=2e-2)
    assert jnp.allclose(log_var, lv_ref, atol=2e-2, rtol=2e-2)

    print("KERNEL_OK")
</pallas_src>

<mosaic_0001>
module attributes {stable_mosaic.version = 11 : i64} {
  func.func @vae_kernel(%arg0: i32, %arg1: memref<8x784xf32, #tpu.memory_space<vmem>>, %arg2: memref<8x16xf32, #tpu.memory_space<vmem>>, %arg3: memref<784x512xbf16, #tpu.memory_space<vmem>>, %arg4: memref<1x512xf32, #tpu.memory_space<vmem>>, %arg5: memref<512x32xbf16, #tpu.memory_space<vmem>>, %arg6: memref<1x32xf32, #tpu.memory_space<vmem>>, %arg7: memref<16x512xbf16, #tpu.memory_space<vmem>>, %arg8: memref<1x512xf32, #tpu.memory_space<vmem>>, %arg9: memref<512x784xbf16, #tpu.memory_space<vmem>>, %arg10: memref<1x784xf32, #tpu.memory_space<vmem>>, %arg11: memref<8x784xbf16, #tpu.memory_space<vmem>>, %arg12: memref<8x32xf32, #tpu.memory_space<vmem>>) attributes {dimension_semantics = [#tpu.dimension_semantics<parallel>], iteration_bounds = array<i64: 1>, scalar_prefetch = 0 : i64, scratch_operands = 0 : i64, tpu.core_type = #tpu.core_type<tc>, window_params = [{transform_indices = @transform_0, window_bounds = array<i64: 8, 784>}, {transform_indices = @transform_1, window_bounds = array<i64: 8, 16>}, {pipeline_mode = #tpu.pipeline_mode<synchronous>, transform_indices = @transform_2, window_bounds = array<i64: 784, 512>}, {pipeline_mode = #tpu.pipeline_mode<synchronous>, transform_indices = @transform_3, window_bounds = array<i64: 1, 512>}, {pipeline_mode = #tpu.pipeline_mode<synchronous>, transform_indices = @transform_4, window_bounds = array<i64: 512, 32>}, {pipeline_mode = #tpu.pipeline_mode<synchronous>, transform_indices = @transform_5, window_bounds = array<i64: 1, 32>}, {pipeline_mode = #tpu.pipeline_mode<synchronous>, transform_indices = @transform_6, window_bounds = array<i64: 16, 512>}, {pipeline_mode = #tpu.pipeline_mode<synchronous>, transform_indices = @transform_7, window_bounds = array<i64: 1, 512>}, {pipeline_mode = #tpu.pipeline_mode<synchronous>, transform_indices = @transform_8, window_bounds = array<i64: 512, 784>}, {pipeline_mode = #tpu.pipeline_mode<synchronous>, transform_indices = @transform_9, window_bounds = array<i64: 1, 784>}, {transform_indices = @transform_10, window_bounds = array<i64: 8, 784>}, {transform_indices = @transform_11, window_bounds = array<i64: 8, 32>}]} {
    %c0 = arith.constant 0 : index
    %c0_0 = arith.constant 0 : index
    %0 = vector.load %arg1[%c0, %c0_0] : memref<8x784xf32, #tpu.memory_space<vmem>>, vector<8x784xf32>
    %1 = arith.truncf %0 : vector<8x784xf32> to vector<8x784xbf16>
    %c0_1 = arith.constant 0 : index
    %c0_2 = arith.constant 0 : index
    %2 = vector.load %arg3[%c0_1, %c0_2] : memref<784x512xbf16, #tpu.memory_space<vmem>>, vector<784x512xbf16>
    %cst = arith.constant dense<0.000000e+00> : vector<8x512xf32>
    %3 = tpu.matmul %1, %2, %cst {dimension_numbers = #tpu.dot_dimension_numbers<[1], [0], [0], [1], [0, 0, 1, 1], [], []>} : vector<8x784xbf16>, vector<784x512xbf16>, vector<8x512xf32> -> vector<8x512xf32>
    %c0_3 = arith.constant 0 : index
    %c0_4 = arith.constant 0 : index
    %4 = vector.load %arg4[%c0_3, %c0_4] : memref<1x512xf32, #tpu.memory_space<vmem>>, vector<1x512xf32>
    %5 = vector.broadcast %4 : vector<1x512xf32> to vector<8x512xf32>
    %6 = arith.addf %3, %5 : vector<8x512xf32>
    %cst_5 = arith.constant 0.000000e+00 : f32
    %7 = vector.broadcast %cst_5 : f32 to vector<8x512xf32>
    %8 = arith.maximumf %6, %7 : vector<8x512xf32>
    %9 = arith.truncf %8 : vector<8x512xf32> to vector<8x512xbf16>
    %c0_6 = arith.constant 0 : index
    %c0_7 = arith.constant 0 : index
    %10 = vector.load %arg5[%c0_6, %c0_7] : memref<512x32xbf16, #tpu.memory_space<vmem>>, vector<512x32xbf16>
    %cst_8 = arith.constant dense<0.000000e+00> : vector<8x32xf32>
    %11 = tpu.matmul %9, %10, %cst_8 {dimension_numbers = #tpu.dot_dimension_numbers<[1], [0], [0], [1], [0, 0, 1, 1], [], []>} : vector<8x512xbf16>, vector<512x32xbf16>, vector<8x32xf32> -> vector<8x32xf32>
    %c0_9 = arith.constant 0 : index
    %c0_10 = arith.constant 0 : index
    %12 = vector.load %arg6[%c0_9, %c0_10] : memref<1x32xf32, #tpu.memory_space<vmem>>, vector<1x32xf32>
    %13 = vector.broadcast %12 : vector<1x32xf32> to vector<8x32xf32>
    %14 = arith.addf %11, %13 : vector<8x32xf32>
    %15 = vector.extract_strided_slice %14 {offsets = [0, 0], sizes = [8, 16], strides = [1, 1]} : vector<8x32xf32> to vector<8x16xf32>
    %16 = vector.extract_strided_slice %14 {offsets = [0, 16], sizes = [8, 16], strides = [1, 1]} : vector<8x32xf32> to vector<8x16xf32>
    %cst_11 = arith.constant 5.000000e-01 : f32
    %17 = vector.broadcast %cst_11 : f32 to vector<8x16xf32>
    %18 = arith.mulf %17, %16 : vector<8x16xf32>
    %19 = math.exp %18 : vector<8x16xf32>
    %c0_12 = arith.constant 0 : index
    %c0_13 = arith.constant 0 : index
    %20 = vector.load %arg2[%c0_12, %c0_13] : memref<8x16xf32, #tpu.memory_space<vmem>>, vector<8x16xf32>
    %21 = arith.mulf %20, %19 : vector<8x16xf32>
    %22 = arith.addf %15, %21 : vector<8x16xf32>
    %23 = arith.truncf %22 : vector<8x16xf32> to vector<8x16xbf16>
    %c0_14 = arith.constant 0 : index
    %c0_15 = arith.constant 0 : index
    %24 = vector.load %arg7[%c0_14, %c0_15] : memref<16x512xbf16, #tpu.memory_space<vmem>>, vector<16x512xbf16>
    %cst_16 = arith.constant dense<0.000000e+00> : vector<8x512xf32>
    %25 = tpu.matmul %23, %24, %cst_16 {dimension_numbers = #tpu.dot_dimension_numbers<[1], [0], [0], [1], [0, 0, 1, 1], [], []>} : vector<8x16xbf16>, vector<16x512xbf16>, vector<8x512xf32> -> vector<8x512xf32>
    %c0_17 = arith.constant 0 : index
    %c0_18 = arith.constant 0 : index
    %26 = vector.load %arg8[%c0_17, %c0_18] : memref<1x512xf32, #tpu.memory_space<vmem>>, vector<1x512xf32>
    %27 = vector.broadcast %26 : vector<1x512xf32> to vector<8x512xf32>
    %28 = arith.addf %25, %27 : vector<8x512xf32>
    %cst_19 = arith.constant 0.000000e+00 : f32
    %29 = vector.broadcast %cst_19 : f32 to vector<8x512xf32>
    %30 = arith.maximumf %28, %29 : vector<8x512xf32>
    %31 = arith.truncf %30 : vector<8x512xf32> to vector<8x512xbf16>
    %c0_20 = arith.constant 0 : index
    %c0_21 = arith.constant 0 : index
    %32 = vector.load %arg9[%c0_20, %c0_21] : memref<512x784xbf16, #tpu.memory_space<vmem>>, vector<512x784xbf16>
    %cst_22 = arith.constant dense<0.000000e+00> : vector<8x784xf32>
    %33 = tpu.matmul %31, %32, %cst_22 {dimension_numbers = #tpu.dot_dimension_numbers<[1], [0], [0], [1], [0, 0, 1, 1], [], []>} : vector<8x512xbf16>, vector<512x784xbf16>, vector<8x784xf32> -> vector<8x784xf32>
    %c0_23 = arith.constant 0 : index
    %c0_24 = arith.constant 0 : index
    %34 = vector.load %arg10[%c0_23, %c0_24] : memref<1x784xf32, #tpu.memory_space<vmem>>, vector<1x784xf32>
    %35 = vector.broadcast %34 : vector<1x784xf32> to vector<8x784xf32>
    %36 = arith.addf %33, %35 : vector<8x784xf32>
    %cst_25 = arith.constant 0.000000e+00 : f32
    %37 = vector.broadcast %cst_25 : f32 to vector<8x784xf32>
    %38 = arith.subf %37, %36 : vector<8x784xf32>
    %39 = math.exp %38 : vector<8x784xf32>
    %cst_26 = arith.constant 1.000000e+00 : f32
    %40 = vector.broadcast %cst_26 : f32 to vector<8x784xf32>
    %41 = arith.addf %40, %39 : vector<8x784xf32>
    %42 = tpu.reciprocal %41 {approx = true} : vector<8x784xf32> -> vector<8x784xf32>
    %43 = arith.truncf %42 : vector<8x784xf32> to vector<8x784xbf16>
    %c0_27 = arith.constant 0 : index
    %c0_28 = arith.constant 0 : index
    %44 = vector.load %arg11[%c0_27, %c0_28] : memref<8x784xbf16, #tpu.memory_space<vmem>>, vector<8x784xbf16>
    tpu.vector_store %arg11[%c0_27, %c0_28], %43 {strides = array<i32>} : memref<8x784xbf16, #tpu.memory_space<vmem>>, vector<8x784xbf16>,
    %c0_29 = arith.constant 0 : index
    %c0_30 = arith.constant 0 : index
    %45 = vector.load %arg12[%c0_29, %c0_30] : memref<8x32xf32, #tpu.memory_space<vmem>>, vector<8x32xf32>
    tpu.vector_store %arg12[%c0_29, %c0_30], %14 {strides = array<i32>} : memref<8x32xf32, #tpu.memory_space<vmem>>, vector<8x32xf32>,
    return
  }
  func.func @transform_0(%arg0: i32) -> (i32, i32) {
    %c0_i32 = arith.constant 0 : i32
    %c0_i32_0 = arith.constant 0 : i32
    return %arg0, %c0_i32 : i32, i32
  }
  func.func @transform_1(%arg0: i32) -> (i32, i32) {
    %c0_i32 = arith.constant 0 : i32
    %c0_i32_0 = arith.constant 0 : i32
    return %arg0, %c0_i32 : i32, i32
  }
  func.func @transform_2(%arg0: i32) -> (i32, i32) {
    %c0_i32 = arith.constant 0 : i32
    %c0_i32_0 = arith.constant 0 : i32
    %c0_i32_1 = arith.constant 0 : i32
    return %c0_i32, %c0_i32_0 : i32, i32
  }
  func.func @transform_3(%arg0: i32) -> (i32, i32) {
    %c0_i32 = arith.constant 0 : i32
    %c0_i32_0 = arith.constant 0 : i32
    %c0_i32_1 = arith.constant 0 : i32
    return %c0_i32, %c0_i32_0 : i32, i32
  }
  func.func @transform_4(%arg0: i32) -> (i32, i32) {
    %c0_i32 = arith.constant 0 : i32
    %c0_i32_0 = arith.constant 0 : i32
    %c0_i32_1 = arith.constant 0 : i32
    return %c0_i32, %c0_i32_0 : i32, i32
  }
  func.func @transform_5(%arg0: i32) -> (i32, i32) {
    %c0_i32 = arith.constant 0 : i32
    %c0_i32_0 = arith.constant 0 : i32
    %c0_i32_1 = arith.constant 0 : i32
    return %c0_i32, %c0_i32_0 : i32, i32
  }
  func.func @transform_6(%arg0: i32) -> (i32, i32) {
    %c0_i32 = arith.constant 0 : i32
    %c0_i32_0 = arith.constant 0 : i32
    %c0_i32_1 = arith.constant 0 : i32
    return %c0_i32, %c0_i32_0 : i32, i32
  }
  func.func @transform_7(%arg0: i32) -> (i32, i32) {
    %c0_i32 = arith.constant 0 : i32
    %c0_i32_0 = arith.constant 0 : i32
    %c0_i32_1 = arith.constant 0 : i32
    return %c0_i32, %c0_i32_0 : i32, i32
  }
  func.func @transform_8(%arg0: i32) -> (i32, i32) {
    %c0_i32 = arith.constant 0 : i32
    %c0_i32_0 = arith.constant 0 : i32
    %c0_i32_1 = arith.constant 0 : i32
    return %c0_i32, %c0_i32_0 : i32, i32
  }
  func.func @transform_9(%arg0: i32) -> (i32, i32) {
    %c0_i32 = arith.constant 0 : i32
    %c0_i32_0 = arith.constant 0 : i32
    %c0_i32_1 = arith.constant 0 : i32
    return %c0_i32, %c0_i32_0 : i32, i32
  }
  func.func @transform_10(%arg0: i32) -> (i32, i32) {
    %c0_i32 = arith.constant 0 : i32
    %c0_i32_0 = arith.constant 0 : i32
    return %arg0, %c0_i32 : i32, i32
  }
  func.func @transform_11(%arg0: i32) -> (i32, i32) {
    %c0_i32 = arith.constant 0 : i32
    %c0_i32_0 = arith.constant 0 : i32
    return %arg0, %c0_i32 : i32, i32
  }
}

</mosaic_0001>

<llo_original>
// kernel: linear_vae_forward.1
$region0: #{linear_vae_forward.1}
  #allocation0 [shape = 'u32[]', space=smem, size = 0x4, offset = 0x4, fixed_abs, tag = 'smem constant byte address 0x4 - core index']
  #allocation1 [shape = 'u32[144,128]{1,0:T(1,128)}', space=vmem, size = 0x12000, scoped, tag = 'internal scratch']
  %s0 = inlined_call_operand.vmem [shape: f32[8,784], index: 0, kind: input, shape index: {}]
  %s1 = inlined_call_operand.vmem [shape: f32[8,16], index: 1, kind: input, shape index: {}]
  %s2 = inlined_call_operand.vmem [shape: bf16[784,512], index: 2, kind: input, shape index: {}]
  %s3 = inlined_call_operand.vmem [shape: f32[1,512], index: 3, kind: input, shape index: {}]
  %s4 = inlined_call_operand.vmem [shape: bf16[512,32], index: 4, kind: input, shape index: {}]
  %s5 = inlined_call_operand.vmem [shape: f32[1,32], index: 5, kind: input, shape index: {}]
  %s6 = inlined_call_operand.vmem [shape: bf16[16,512], index: 6, kind: input, shape index: {}]
  %s7 = inlined_call_operand.vmem [shape: f32[1,512], index: 7, kind: input, shape index: {}]
  %s8 = inlined_call_operand.vmem [shape: bf16[512,784], index: 8, kind: input, shape index: {}]
  %s9 = inlined_call_operand.vmem [shape: f32[1,784], index: 9, kind: input, shape index: {}]
  %s10 = inlined_call_operand.hbm [shape: bf16[8,784], index: 10, kind: output, shape index: {0}]
  %s11 = inlined_call_operand.vmem [shape: f32[8,32], index: 11, kind: output, shape index: {1}]
  %12 = xla_tuple %s10, %s11
  %s13 = sld [smem:[#allocation0]]
  $region58: #{linear_vae_forward.1} parent=0
    _
  %s15 = ssub.s32 1, %s13
  %s16 = scalar_select 0, %s15, %s13
  $region1: #{linear_vae_forward.1} parent=0
    #allocation2 [shape = 'u8[14336]{0}', space=vmem, size = 0x3800, scoped, tag = 'output window, operand 0, single buffered']
    #allocation3 [shape = 's32[1]{0}', space=sflag, size = 0x4, scoped, tag = 'scoped memory for linear_vae_forward.1']
    %17 = vsyncpa [#allocation3], 0
    // Predicated region
    $region2: #{linear_vae_forward.1} parent=1 // pred_check
      _
    $region3: #{linear_vae_forward.1} parent=1 // pred_check_branch
      %19 = sbr.rel (0) target = $region5
    $region4: #{linear_vae_forward.1} parent=1 // pred_region
      _
    $region5: #{linear_vae_forward.1} parent=1 // pred_fallthru
      _
    // Predicated region
    $region6: #{linear_vae_forward.1} parent=1 // pred_check
      _
    $region7: #{linear_vae_forward.1} parent=1 // pred_check_branch
      %21 = sbr.rel (0) target = $region9
    $region8: #{linear_vae_forward.1} parent=1 // pred_region
      _
    $region9: #{linear_vae_forward.1} parent=1 // pred_fallthru
      _
    // Predicated region
    $region10: #{linear_vae_forward.1} parent=1 // pred_check
      _
    $region11: #{linear_vae_forward.1} parent=1 // pred_check_branch
      %23 = sbr.rel (0) target = $region13
    $region12: #{linear_vae_forward.1} parent=1 // pred_region
      _
    $region13: #{linear_vae_forward.1} parent=1 // pred_fallthru
      _
    // Predicated region
    $region14: #{linear_vae_forward.1} parent=1 // pred_check
      _
    $region15: #{linear_vae_forward.1} parent=1 // pred_check_branch
      %25 = sbr.rel (0) target = $region17
    $region16: #{linear_vae_forward.1} parent=1 // pred_region
      _
    $region17: #{linear_vae_forward.1} parent=1 // pred_fallthru
      _
    // Predicated region
    $region18: #{linear_vae_forward.1} parent=1 // pred_check
      _
    $region19: #{linear_vae_forward.1} parent=1 // pred_check_branch
      %27 = sbr.rel (0) target = $region21
    $region20: #{linear_vae_forward.1} parent=1 // pred_region
      _
    $region21: #{linear_vae_forward.1} parent=1 // pred_fallthru
      _
    // Predicated region
    $region22: #{linear_vae_forward.1} parent=1 // pred_check
      _
    $region23: #{linear_vae_forward.1} parent=1 // pred_check_branch
      %29 = sbr.rel (0) target = $region25
    $region24: #{linear_vae_forward.1} parent=1 // pred_region
      _
    $region25: #{linear_vae_forward.1} parent=1 // pred_fallthru
      _
    // Predicated region
    $region26: #{linear_vae_forward.1} parent=1 // pred_check
      _
    $region27: #{linear_vae_forward.1} parent=1 // pred_check_branch
      %31 = sbr.rel (0) target = $region29
    $region28: #{linear_vae_forward.1} parent=1 // pred_region
      _
    $region29: #{linear_vae_forward.1} parent=1 // pred_fallthru
      _
    // Predicated region
    $region30: #{linear_vae_forward.1} parent=1 // pred_check
      _
    $region31: #{linear_vae_forward.1} parent=1 // pred_check_branch
      %33 = sbr.rel (0) target = $region33
    $region32: #{linear_vae_forward.1} parent=1 // pred_region
      _
    $region33: #{linear_vae_forward.1} parent=1 // pred_fallthru
      _
    // Predicated region
    $region34: #{linear_vae_forward.1} parent=1 // pred_check
      _
    $region35: #{linear_vae_forward.1} parent=1 // pred_check_branch
      %35 = sbr.rel (0) target = $region37
    $region36: #{linear_vae_forward.1} parent=1 // pred_region
      _
    $region37: #{linear_vae_forward.1} parent=1 // pred_fallthru
      _
    // Predicated region
    $region38: #{linear_vae_forward.1} parent=1 // pred_check
      _
    $region39: #{linear_vae_forward.1} parent=1 // pred_check_branch
      %37 = sbr.rel (0) target = $region41
    $region40: #{linear_vae_forward.1} parent=1 // pred_region
      _
    $region41: #{linear_vae_forward.1} parent=1 // pred_fallthru
      _
    %v39 = vld [vmem:[%s0] sm:$0xff]
    %v40 = vld [vmem:[%s0 + $0x8] sm:$0xff]
    %v41 = vld [vmem:[%s0 + $0x10] sm:$0xff]
    %v42 = vld [vmem:[%s0 + $0x18] sm:$0xff]
    %v43 = vld [vmem:[%s0 + $0x20] sm:$0xff]
    %v44 = vld [vmem:[%s0 + $0x28] sm:$0xff]
    %v45 = vld [vmem:[%s0 + $0x30] sm:$0xff]
    %v46 = vpack.c.bf16 %v39, %v39
    %v47 = vpack.c.bf16 %v40, %v40
    %v48 = vpack.c.bf16 %v41, %v41
    %v49 = vpack.c.bf16 %v42, %v42
    %v50 = vpack.c.bf16 %v43, %v43
    %v51 = vpack.c.bf16 %v44, %v44
    %v52 = vpack.c.bf16 %v45, %v45
    %v53 = vld [vmem:[%s2] sm:$0xff]
    %v54 = vld [vmem:[%s2 + $0x8] sm:$0xff]
    %v55 = vld [vmem:[%s2 + $0x10] sm:$0xff]
    %v56 = vld [vmem:[%s2 + $0x18] sm:$0xff]
    %v57 = vld [vmem:[%s2 + $0x20] sm:$0xff]
    %v58 = vld [vmem:[%s2 + $0x28] sm:$0xff]
    %v59 = vld [vmem:[%s2 + $0x30] sm:$0xff]
    %v60 = vld [vmem:[%s2 + $0x38] sm:$0xff]
    %v61 = vld [vmem:[%s2 + $0x40] sm:$0xff]
    %v62 = vld [vmem:[%s2 + $0x48] sm:$0xff]
    %v63 = vld [vmem:[%s2 + $0x50] sm:$0xff]
    %v64 = vld [vmem:[%s2 + $0x58] sm:$0xff]
    %v65 = vld [vmem:[%s2 + $0x60] sm:$0xff]
    %v66 = vld [vmem:[%s2 + $0x68] sm:$0xff]
    %v67 = vld [vmem:[%s2 + $0x70] sm:$0xff]
    %v68 = vld [vmem:[%s2 + $0x78] sm:$0xff]
    %v69 = vld [vmem:[%s2 + $0x80] sm:$0xff]
    %v70 = vld [vmem:[%s2 + $0x88] sm:$0xff]
    %v71 = vld [vmem:[%s2 + $0x90] sm:$0xff]
    %v72 = vld [vmem:[%s2 + $0x98] sm:$0xff]
    %v73 = vld [vmem:[%s2 + $0xa0] sm:$0xff]
    %v74 = vld [vmem:[%s2 + $0xa8] sm:$0xff]
    %v75 = vld [vmem:[%s2 + $0xb0] sm:$0xff]
    %v76 = vld [vmem:[%s2 + $0xb8] sm:$0xff]
    %v77 = vld [vmem:[%s2 + $0xc0] sm:$0xff]
    %v78 = vld [vmem:[%s2 + $0xc8] sm:$0xff]
    %v79 = vld [vmem:[%s2 + $0xd0] sm:$0xff]
    %v80 = vld [vmem:[%s2 + $0xd8] sm:$0xff]
    %v81 = vld [vmem:[%s2 + $0xe0] sm:$0xff]
    %v82 = vld [vmem:[%s2 + $0xe8] sm:$0xff]
    %v83 = vld [vmem:[%s2 + $0xf0] sm:$0xff]
    %v84 = vld [vmem:[%s2 + $0xf8] sm:$0xff]
    %v85 = vld [vmem:[%s2 + $0x100] sm:$0xff]
    %v86 = vld [vmem:[%s2 + $0x108] sm:$0xff]
    %v87 = vld [vmem:[%s2 + $0x110] sm:$0xff]
    %v88 = vld [vmem:[%s2 + $0x118] sm:$0xff]
    %v89 = vld [vmem:[%s2 + $0x120] sm:$0xff]
    %v90 = vld [vmem:[%s2 + $0x128] sm:$0xff]
    %v91 = vld [vmem:[%s2 + $0x130] sm:$0xff]
    %v92 = vld [vmem:[%s2 + $0x138] sm:$0xff]
    %v93 = vld [vmem:[%s2 + $0x140] sm:$0xff]
    %v94 = vld [vmem:[%s2 + $0x148] sm:$0xff]
    %v95 = vld [vmem:[%s2 + $0x150] sm:$0xff]
    %v96 = vld [vmem:[%s2 + $0x158] sm:$0xff]
    %v97 = vld [vmem:[%s2 + $0x160] sm:$0xff]
    %v98 = vld [vmem:[%s2 + $0x168] sm:$0xff]
    %v99 = vld [vmem:[%s2 + $0x170] sm:$0xff]
    %v100 = vld [vmem:[%s2 + $0x178] sm:$0xff]
    %v101 = vld [vmem:[%s2 + $0x180] sm:$0xff]
    %v102 = vld [vmem:[%s2 + $0x188] sm:$0xff]
    %v103 = vld [vmem:[%s2 + $0x190] sm:$0xff]
    %v104 = vld [vmem:[%s2 + $0x198] sm:$0xff]
    %v105 = vld [vmem:[%s2 + $0x1a0] sm:$0xff]
    %v106 = vld [vmem:[%s2 + $0x1a8] sm:$0xff]
    %v107 = vld [vmem:[%s2 + $0x1b0] sm:$0xff]
    %v108 = vld [vmem:[%s2 + $0x1b8] sm:$0xff]
    %v109 = vld [vmem:[%s2 + $0x1c0] sm:$0xff]
    %v110 = vld [vmem:[%s2 + $0x1c8] sm:$0xff]
    %v111 = vld [vmem:[%s2 + $0x1d0] sm:$0xff]
    %v112 = vld [vmem:[%s2 + $0x1d8] sm:$0xff]
    %v113 = vld [vmem:[%s2 + $0x1e0] sm:$0xff]
    %v114 = vld [vmem:[%s2 + $0x1e8] sm:$0xff]
    %v115 = vld [vmem:[%s2 + $0x1f0] sm:$0xff]
    %v116 = vld [vmem:[%s2 + $0x1f8] sm:$0xff]
    %v117 = vld [vmem:[%s2 + $0x200] sm:$0xff]
    %v118 = vld [vmem:[%s2 + $0x208] sm:$0xff]
    %v119 = vld [vmem:[%s2 + $0x210] sm:$0xff]
    %v120 = vld [vmem:[%s2 + $0x218] sm:$0xff]
    %v121 = vld [vmem:[%s2 + $0x220] sm:$0xff]
    %v122 = vld [vmem:[%s2 + $0x228] sm:$0xff]
    %v123 = vld [vmem:[%s2 + $0x230] sm:$0xff]
    %v124 = vld [vmem:[%s2 + $0x238] sm:$0xff]
    %v125 = vld [vmem:[%s2 + $0x240] sm:$0xff]
    %v126 = vld [vmem:[%s2 + $0x248] sm:$0xff]
    %v127 = vld [vmem:[%s2 + $0x250] sm:$0xff]
    %v128 = vld [vmem:[%s2 + $0x258] sm:$0xff]
    %v129 = vld [vmem:[%s2 + $0x260] sm:$0xff]
    %v130 = vld [vmem:[%s2 + $0x268] sm:$0xff]
    %v131 = vld [vmem:[%s2 + $0x270] sm:$0xff]
    %v132 = vld [vmem:[%s2 + $0x278] sm:$0xff]
    %v133 = vld [vmem:[%s2 + $0x280] sm:$0xff]
    %v134 = vld [vmem:[%s2 + $0x288] sm:$0xff]
    %v135 = vld [vmem:[%s2 + $0x290] sm:$0xff]
    %v136 = vld [vmem:[%s2 + $0x298] sm:$0xff]
    %v137 = vld [vmem:[%s2 + $0x2a0] sm:$0xff]
    %v138 = vld [vmem:[%s2 + $0x2a8] sm:$0xff]
    %v139 = vld [vmem:[%s2 + $0x2b0] sm:$0xff]
    %v140 = vld [vmem:[%s2 + $0x2b8] sm:$0xff]
    %v141 = vld [vmem:[%s2 + $0x2c0] sm:$0xff]
    %v142 = vld [vmem:[%s2 + $0x2c8] sm:$0xff]
    %v143 = vld [vmem:[%s2 + $0x2d0] sm:$0xff]
    %v144 = vld [vmem:[%s2 + $0x2d8] sm:$0xff]
    %v145 = vld [vmem:[%s2 + $0x2e0] sm:$0xff]
    %v146 = vld [vmem:[%s2 + $0x2e8] sm:$0xff]
    %v147 = vld [vmem:[%s2 + $0x2f0] sm:$0xff]
    %v148 = vld [vmem:[%s2 + $0x2f8] sm:$0xff]
    %v149 = vld [vmem:[%s2 + $0x300] sm:$0xff]
    %v150 = vld [vmem:[%s2 + $0x308] sm:$0xff]
    %v151 = vld [vmem:[%s2 + $0x310] sm:$0xff]
    %v152 = vld [vmem:[%s2 + $0x318] sm:$0xff]
    %v153 = vld [vmem:[%s2 + $0x320] sm:$0xff]
    %v154 = vld [vmem:[%s2 + $0x328] sm:$0xff]
    %v155 = vld [vmem:[%s2 + $0x330] sm:$0xff]
    %v156 = vld [vmem:[%s2 + $0x338] sm:$0xff]
    %v157 = vld [vmem:[%s2 + $0x340] sm:$0xff]
    %v158 = vld [vmem:[%s2 + $0x348] sm:$0xff]
    %v159 = vld [vmem:[%s2 + $0x350] sm:$0xff]
    %v160 = vld [vmem:[%s2 + $0x358] sm:$0xff]
    %v161 = vld [vmem:[%s2 + $0x360] sm:$0xff]
    %v162 = vld [vmem:[%s2 + $0x368] sm:$0xff]
    %v163 = vld [vmem:[%s2 + $0x370] sm:$0xff]
    %v164 = vld [vmem:[%s2 + $0x378] sm:$0xff]
    %v165 = vld [vmem:[%s2 + $0x380] sm:$0xff]
    %v166 = vld [vmem:[%s2 + $0x388] sm:$0xff]
    %v167 = vld [vmem:[%s2 + $0x390] sm:$0xff]
    %v168 = vld [vmem:[%s2 + $0x398] sm:$0xff]
    %v169 = vld [vmem:[%s2 + $0x3a0] sm:$0xff]
    %v170 = vld [vmem:[%s2 + $0x3a8] sm:$0xff]
    %v171 = vld [vmem:[%s2 + $0x3b0] sm:$0xff]
    %v172 = vld [vmem:[%s2 + $0x3b8] sm:$0xff]
    %v173 = vld [vmem:[%s2 + $0x3c0] sm:$0xff]
    %v174 = vld [vmem:[%s2 + $0x3c8] sm:$0xff]
    %v175 = vld [vmem:[%s2 + $0x3d0] sm:$0xff]
    %v176 = vld [vmem:[%s2 + $0x3d8] sm:$0xff]
    %v177 = vld [vmem:[%s2 + $0x3e0] sm:$0xff]
    %v178 = vld [vmem:[%s2 + $0x3e8] sm:$0xff]
    %v179 = vld [vmem:[%s2 + $0x3f0] sm:$0xff]
    %v180 = vld [vmem:[%s2 + $0x3f8] sm:$0xff]
    %v181 = vld [vmem:[%s2 + $0x400] sm:$0xff]
    %v182 = vld [vmem:[%s2 + $0x408] sm:$0xff]
    %v183 = vld [vmem:[%s2 + $0x410] sm:$0xff]
    %v184 = vld [vmem:[%s2 + $0x418] sm:$0xff]
    %v185 = vld [vmem:[%s2 + $0x420] sm:$0xff]
    %v186 = vld [vmem:[%s2 + $0x428] sm:$0xff]
    %v187 = vld [vmem:[%s2 + $0x430] sm:$0xff]
    %v188 = vld [vmem:[%s2 + $0x438] sm:$0xff]
    %v189 = vld [vmem:[%s2 + $0x440] sm:$0xff]
    %v190 = vld [vmem:[%s2 + $0x448] sm:$0xff]
    %v191 = vld [vmem:[%s2 + $0x450] sm:$0xff]
    %v192 = vld [vmem:[%s2 + $0x458] sm:$0xff]
    %v193 = vld [vmem:[%s2 + $0x460] sm:$0xff]
    %v194 = vld [vmem:[%s2 + $0x468] sm:$0xff]
    %v195 = vld [vmem:[%s2 + $0x470] sm:$0xff]
    %v196 = vld [vmem:[%s2 + $0x478] sm:$0xff]
    %v197 = vld [vmem:[%s2 + $0x480] sm:$0xff]
    %v198 = vld [vmem:[%s2 + $0x488] sm:$0xff]
    %v199 = vld [vmem:[%s2 + $0x490] sm:$0xff]
    %v200 = vld [vmem:[%s2 + $0x498] sm:$0xff]
    %v201 = vld [vmem:[%s2 + $0x4a0] sm:$0xff]
    %v202 = vld [vmem:[%s2 + $0x4a8] sm:$0xff]
    %v203 = vld [vmem:[%s2 + $0x4b0] sm:$0xff]
    %v204 = vld [vmem:[%s2 + $0x4b8] sm:$0xff]
    %v205 = vld [vmem:[%s2 + $0x4c0] sm:$0xff]
    %v206 = vld [vmem:[%s2 + $0x4c8] sm:$0xff]
    %v207 = vld [vmem:[%s2 + $0x4d0] sm:$0xff]
    %v208 = vld [vmem:[%s2 + $0x4d8] sm:$0xff]
    %v209 = vld [vmem:[%s2 + $0x4e0] sm:$0xff]
    %v210 = vld [vmem:[%s2 + $0x4e8] sm:$0xff]
    %v211 = vld [vmem:[%s2 + $0x4f0] sm:$0xff]
    %v212 = vld [vmem:[%s2 + $0x4f8] sm:$0xff]
    %v213 = vld [vmem:[%s2 + $0x500] sm:$0xff]
    %v214 = vld [vmem:[%s2 + $0x508] sm:$0xff]
    %v215 = vld [vmem:[%s2 + $0x510] sm:$0xff]
    %v216 = vld [vmem:[%s2 + $0x518] sm:$0xff]
    %v217 = vld [vmem:[%s2 + $0x520] sm:$0xff]
    %v218 = vld [vmem:[%s2 + $0x528] sm:$0xff]
    %v219 = vld [vmem:[%s2 + $0x530] sm:$0xff]
    %v220 = vld [vmem:[%s2 + $0x538] sm:$0xff]
    %v221 = vld [vmem:[%s2 + $0x540] sm:$0xff]
    %v222 = vld [vmem:[%s2 + $0x548] sm:$0xff]
    %v223 = vld [vmem:[%s2 + $0x550] sm:$0xff]
    %v224 = vld [vmem:[%s2 + $0x558] sm:$0xff]
    %v225 = vld [vmem:[%s2 + $0x560] sm:$0xff]
    %v226 = vld [vmem:[%s2 + $0x568] sm:$0xff]
    %v227 = vld [vmem:[%s2 + $0x570] sm:$0xff]
    %v228 = vld [vmem:[%s2 + $0x578] sm:$0xff]
    %v229 = vld [vmem:[%s2 + $0x580] sm:$0xff]
    %v230 = vld [vmem:[%s2 + $0x588] sm:$0xff]
    %v231 = vld [vmem:[%s2 + $0x590] sm:$0xff]
    %v232 = vld [vmem:[%s2 + $0x598] sm:$0xff]
    %v233 = vld [vmem:[%s2 + $0x5a0] sm:$0xff]
    %v234 = vld [vmem:[%s2 + $0x5a8] sm:$0xff]
    %v235 = vld [vmem:[%s2 + $0x5b0] sm:$0xff]
    %v236 = vld [vmem:[%s2 + $0x5b8] sm:$0xff]
    %v237 = vld [vmem:[%s2 + $0x5c0] sm:$0xff]
    %v238 = vld [vmem:[%s2 + $0x5c8] sm:$0xff]
    %v239 = vld [vmem:[%s2 + $0x5d0] sm:$0xff]
    %v240 = vld [vmem:[%s2 + $0x5d8] sm:$0xff]
    %v241 = vld [vmem:[%s2 + $0x5e0] sm:$0xff]
    %v242 = vld [vmem:[%s2 + $0x5e8] sm:$0xff]
    %v243 = vld [vmem:[%s2 + $0x5f0] sm:$0xff]
    %v244 = vld [vmem:[%s2 + $0x5f8] sm:$0xff]
    %v245 = vld [vmem:[%s2 + $0x600] sm:$0xff]
    %v246 = vld [vmem:[%s2 + $0x608] sm:$0xff]
    %v247 = vld [vmem:[%s2 + $0x610] sm:$0xff]
    %v248 = vld [vmem:[%s2 + $0x618] sm:$0xff]
    %v249 = vld [vmem:[%s3] sm:$0xf]
    %v251 = vlaneseq
    %v252 = vshrl.u32 %v251, 7
    %v253 = vsub.s32 0, %v252
    %v254 = vrot.slane %v249, %v253
    %v255 = vlaneseq
    %v256 = vshrl.u32 %v255, 7
    %v257 = vsub.s32 1, %v256
    %v258 = vrot.slane %v249, %v257
    %v259 = vlaneseq
    %v260 = vshrl.u32 %v259, 7
    %v261 = vsub.s32 2, %v260
    %v262 = vrot.slane %v249, %v261
    %v263 = vlaneseq
    %v264 = vshrl.u32 %v263, 7
    %v265 = vsub.s32 3, %v264
    %v266 = vrot.slane %v249, %v265
    %v467 = vunpack.c.l.b16 %v53
    %v468 = vunpack.c.h.b16 %v53
    %v469 = vunpack.c.l.b16 %v54
    %v470 = vunpack.c.h.b16 %v54
    %v471 = vunpack.c.l.b16 %v55
    %v472 = vunpack.c.h.b16 %v55
    %v473 = vunpack.c.l.b16 %v56
    %v474 = vunpack.c.h.b16 %v56
    %v475 = vunpack.c.l.b16 %v57
    %v476 = vunpack.c.h.b16 %v57
    %v477 = vunpack.c.l.b16 %v58
    %v478 = vunpack.c.h.b16 %v58
    %v479 = vunpack.c.l.b16 %v59
    %v480 = vunpack.c.h.b16 %v59
    %v481 = vunpack.c.l.b16 %v60
    %v482 = vunpack.c.h.b16 %v60
    %v483 = vunpack.c.l.b16 %v61
    %v484 = vunpack.c.h.b16 %v61
    %v485 = vunpack.c.l.b16 %v62
    %v486 = vunpack.c.h.b16 %v62
    %v487 = vunpack.c.l.b16 %v63
    %v488 = vunpack.c.h.b16 %v63
    %v489 = vunpack.c.l.b16 %v64
    %v490 = vunpack.c.h.b16 %v64
    %v491 = vunpack.c.l.b16 %v65
    %v492 = vunpack.c.h.b16 %v65
    %v493 = vunpack.c.l.b16 %v66
    %v494 = vunpack.c.h.b16 %v66
    %v495 = vunpack.c.l.b16 %v67
    %v496 = vunpack.c.h.b16 %v67
    %v497 = vunpack.c.l.b16 %v68
    %v498 = vunpack.c.h.b16 %v68
    %v499 = vunpack.c.l.b16 %v69
    %v500 = vunpack.c.h.b16 %v69
    %v501 = vunpack.c.l.b16 %v70
    %v502 = vunpack.c.h.b16 %v70
    %v503 = vunpack.c.l.b16 %v71
    %v504 = vunpack.c.h.b16 %v71
    %v505 = vunpack.c.l.b16 %v72
    %v506 = vunpack.c.h.b16 %v72
    %v507 = vunpack.c.l.b16 %v73
    %v508 = vunpack.c.h.b16 %v73
    %v509 = vunpack.c.l.b16 %v74
    %v510 = vunpack.c.h.b16 %v74
    %v511 = vunpack.c.l.b16 %v75
    %v512 = vunpack.c.h.b16 %v75
    %v513 = vunpack.c.l.b16 %v76
    %v514 = vunpack.c.h.b16 %v76
    %v515 = vunpack.c.l.b16 %v77
    %v516 = vunpack.c.h.b16 %v77
    %v517 = vunpack.c.l.b16 %v78
    %v518 = vunpack.c.h.b16 %v78
    %v519 = vunpack.c.l.b16 %v79
    %v520 = vunpack.c.h.b16 %v79
    %v521 = vunpack.c.l.b16 %v80
    %v522 = vunpack.c.h.b16 %v80
    %v523 = vunpack.c.l.b16 %v81
    %v524 = vunpack.c.h.b16 %v81
    %v525 = vunpack.c.l.b16 %v82
    %v526 = vunpack.c.h.b16 %v82
    %v527 = vunpack.c.l.b16 %v83
    %v528 = vunpack.c.h.b16 %v83
    %v529 = vunpack.c.l.b16 %v84
    %v530 = vunpack.c.h.b16 %v84
    %v531 = vunpack.c.l.b16 %v85
    %v532 = vunpack.c.h.b16 %v85
    %v533 = vunpack.c.l.b16 %v86
    %v534 = vunpack.c.h.b16 %v86
    %v535 = vunpack.c.l.b16 %v87
    %v536 = vunpack.c.h.b16 %v87
    %v537 = vunpack.c.l.b16 %v88
    %v538 = vunpack.c.h.b16 %v88
    %v539 = vunpack.c.l.b16 %v89
    %v540 = vunpack.c.h.b16 %v89
    %v541 = vunpack.c.l.b16 %v90
    %v542 = vunpack.c.h.b16 %v90
    %v543 = vunpack.c.l.b16 %v91
    %v544 = vunpack.c.h.b16 %v91
    %v545 = vunpack.c.l.b16 %v92
    %v546 = vunpack.c.h.b16 %v92
    %v547 = vunpack.c.l.b16 %v93
    %v548 = vunpack.c.h.b16 %v93
    %v549 = vunpack.c.l.b16 %v94
    %v550 = vunpack.c.h.b16 %v94
    %v551 = vunpack.c.l.b16 %v95
    %v552 = vunpack.c.h.b16 %v95
    %v553 = vunpack.c.l.b16 %v96
    %v554 = vunpack.c.h.b16 %v96
    %v555 = vunpack.c.l.b16 %v97
    %v556 = vunpack.c.h.b16 %v97
    %v557 = vunpack.c.l.b16 %v98
    %v558 = vunpack.c.h.b16 %v98
    %v559 = vunpack.c.l.b16 %v99
    %v560 = vunpack.c.h.b16 %v99
    %v561 = vunpack.c.l.b16 %v100
    %v562 = vunpack.c.h.b16 %v100
    %v563 = vunpack.c.l.b16 %v101
    %v564 = vunpack.c.h.b16 %v101
    %v565 = vunpack.c.l.b16 %v102
    %v566 = vunpack.c.h.b16 %v102
    %v567 = vunpack.c.l.b16 %v103
    %v568 = vunpack.c.h.b16 %v103
    %v569 = vunpack.c.l.b16 %v104
    %v570 = vunpack.c.h.b16 %v104
    %v571 = vunpack.c.l.b16 %v105
    %v572 = vunpack.c.h.b16 %v105
    %v573 = vunpack.c.l.b16 %v106
    %v574 = vunpack.c.h.b16 %v106
    %v575 = vunpack.c.l.b16 %v107
    %v576 = vunpack.c.h.b16 %v107
    %v577 = vunpack.c.l.b16 %v108
    %v578 = vunpack.c.h.b16 %v108
    %v579 = vunpack.c.l.b16 %v109
    %v580 = vunpack.c.h.b16 %v109
    %v581 = vunpack.c.l.b16 %v110
    %v582 = vunpack.c.h.b16 %v110
    %v583 = vunpack.c.l.b16 %v111
    %v584 = vunpack.c.h.b16 %v111
    %v585 = vunpack.c.l.b16 %v112
    %v586 = vunpack.c.h.b16 %v112
    %v587 = vunpack.c.l.b16 %v113
    %v588 = vunpack.c.h.b16 %v113
    %v589 = vunpack.c.l.b16 %v114
    %v590 = vunpack.c.h.b16 %v114
    %v591 = vunpack.c.l.b16 %v115
    %v592 = vunpack.c.h.b16 %v115
    %v593 = vunpack.c.l.b16 %v116
    %v594 = vunpack.c.h.b16 %v116
    %v595 = vunpack.c.l.b16 %v117
    %v596 = vunpack.c.h.b16 %v117
    %v597 = vunpack.c.l.b16 %v118
    %v598 = vunpack.c.h.b16 %v118
    %v599 = vunpack.c.l.b16 %v119
    %v600 = vunpack.c.h.b16 %v119
    %v601 = vunpack.c.l.b16 %v120
    %v602 = vunpack.c.h.b16 %v120
    %v603 = vunpack.c.l.b16 %v121
    %v604 = vunpack.c.h.b16 %v121
    %v605 = vunpack.c.l.b16 %v122
    %v606 = vunpack.c.h.b16 %v122
    %v607 = vunpack.c.l.b16 %v123
    %v608 = vunpack.c.h.b16 %v123
    %v609 = vunpack.c.l.b16 %v124
    %v610 = vunpack.c.h.b16 %v124
    %v611 = vunpack.c.l.b16 %v125
    %v612 = vunpack.c.h.b16 %v125
    %v613 = vunpack.c.l.b16 %v126
    %v614 = vunpack.c.h.b16 %v126
    %v615 = vunpack.c.l.b16 %v127
    %v616 = vunpack.c.h.b16 %v127
    %v617 = vunpack.c.l.b16 %v128
    %v618 = vunpack.c.h.b16 %v128
    %v619 = vunpack.c.l.b16 %v129
    %v620 = vunpack.c.h.b16 %v129
    %v621 = vunpack.c.l.b16 %v130
    %v622 = vunpack.c.h.b16 %v130
    %v623 = vunpack.c.l.b16 %v131
    %v624 = vunpack.c.h.b16 %v131
    %v625 = vunpack.c.l.b16 %v132
    %v626 = vunpack.c.h.b16 %v132
    %v627 = vunpack.c.l.b16 %v133
    %v628 = vunpack.c.h.b16 %v133
    %v629 = vunpack.c.l.b16 %v134
    %v630 = vunpack.c.h.b16 %v134
    %v631 = vunpack.c.l.b16 %v135
    %v632 = vunpack.c.h.b16 %v135
    %v633 = vunpack.c.l.b16 %v136
    %v634 = vunpack.c.h.b16 %v136
    %v635 = vunpack.c.l.b16 %v137
    %v636 = vunpack.c.h.b16 %v137
    %v637 = vunpack.c.l.b16 %v138
    %v638 = vunpack.c.h.b16 %v138
    %v639 = vunpack.c.l.b16 %v139
    %v640 = vunpack.c.h.b16 %v139
    %v641 = vunpack.c.l.b16 %v140
    %v642 = vunpack.c.h.b16 %v140
    %v643 = vunpack.c.l.b16 %v141
    %v644 = vunpack.c.h.b16 %v141
    %v645 = vunpack.c.l.b16 %v142
    %v646 = vunpack.c.h.b16 %v142
    %v647 = vunpack.c.l.b16 %v143
    %v648 = vunpack.c.h.b16 %v143
    %v649 = vunpack.c.l.b16 %v144
    %v650 = vunpack.c.h.b16 %v144
    %v651 = vunpack.c.l.b16 %v145
    %v652 = vunpack.c.h.b16 %v145
    %v653 = vunpack.c.l.b16 %v146
    %v654 = vunpack.c.h.b16 %v146
    %v655 = vunpack.c.l.b16 %v147
    %v656 = vunpack.c.h.b16 %v147
    %v657 = vunpack.c.l.b16 %v148
    %v658 = vunpack.c.h.b16 %v148
    %v659 = vunpack.c.l.b16 %v149
    %v660 = vunpack.c.h.b16 %v149
    %v661 = vunpack.c.l.b16 %v150
    %v662 = vunpack.c.h.b16 %v150
    %v663 = vunpack.c.l.b16 %v151
    %v664 = vunpack.c.h.b16 %v151
    %v665 = vunpack.c.l.b16 %v152
    %v666 = vunpack.c.h.b16 %v152
    %v667 = vunpack.c.l.b16 %v153
    %v668 = vunpack.c.h.b16 %v153
    %v669 = vunpack.c.l.b16 %v154
    %v670 = vunpack.c.h.b16 %v154
    %v671 = vunpack.c.l.b16 %v155
    %v672 = vunpack.c.h.b16 %v155
    %v673 = vunpack.c.l.b16 %v156
    %v674 = vunpack.c.h.b16 %v156
    %v675 = vunpack.c.l.b16 %v157
    %v676 = vunpack.c.h.b16 %v157
    %v677 = vunpack.c.l.b16 %v158
    %v678 = vunpack.c.h.b16 %v158
    %v679 = vunpack.c.l.b16 %v159
    %v680 = vunpack.c.h.b16 %v159
    %v681 = vunpack.c.l.b16 %v160
    %v682 = vunpack.c.h.b16 %v160
    %v683 = vunpack.c.l.b16 %v161
    %v684 = vunpack.c.h.b16 %v161
    %v685 = vunpack.c.l.b16 %v162
    %v686 = vunpack.c.h.b16 %v162
    %v687 = vunpack.c.l.b16 %v163
    %v688 = vunpack.c.h.b16 %v163
    %v689 = vunpack.c.l.b16 %v164
    %v690 = vunpack.c.h.b16 %v164
    %v691 = vunpack.c.l.b16 %v165
    %v692 = vunpack.c.h.b16 %v165
    %v693 = vunpack.c.l.b16 %v166
    %v694 = vunpack.c.h.b16 %v166
    %v695 = vunpack.c.l.b16 %v167
    %v696 = vunpack.c.h.b16 %v167
    %v697 = vunpack.c.l.b16 %v168
    %v698 = vunpack.c.h.b16 %v168
    %v699 = vunpack.c.l.b16 %v169
    %v700 = vunpack.c.h.b16 %v169
    %v701 = vunpack.c.l.b16 %v170
    %v702 = vunpack.c.h.b16 %v170
    %v703 = vunpack.c.l.b16 %v171
    %v704 = vunpack.c.h.b16 %v171
    %v705 = vunpack.c.l.b16 %v172
    %v706 = vunpack.c.h.b16 %v172
    %v707 = vunpack.c.l.b16 %v173
    %v708 = vunpack.c.h.b16 %v173
    %v709 = vunpack.c.l.b16 %v174
    %v710 = vunpack.c.h.b16 %v174
    %v711 = vunpack.c.l.b16 %v175
    %v712 = vunpack.c.h.b16 %v175
    %v713 = vunpack.c.l.b16 %v176
    %v714 = vunpack.c.h.b16 %v176
    %v715 = vunpack.c.l.b16 %v177
    %v716 = vunpack.c.h.b16 %v177
    %v717 = vunpack.c.l.b16 %v178
    %v718 = vunpack.c.h.b16 %v178
    %v719 = vunpack.c.l.b16 %v179
    %v720 = vunpack.c.h.b16 %v179
    %v721 = vunpack.c.l.b16 %v180
    %v722 = vunpack.c.h.b16 %v180
    %v723 = vunpack.c.l.b16 %v181
    %v724 = vunpack.c.h.b16 %v181
    %v725 = vunpack.c.l.b16 %v182
    %v726 = vunpack.c.h.b16 %v182
    %v727 = vunpack.c.l.b16 %v183
    %v728 = vunpack.c.h.b16 %v183
    %v729 = vunpack.c.l.b16 %v184
    %v730 = vunpack.c.h.b16 %v184
    %v731 = vunpack.c.l.b16 %v185
    %v732 = vunpack.c.h.b16 %v185
    %v733 = vunpack.c.l.b16 %v186
    %v734 = vunpack.c.h.b16 %v186
    %v735 = vunpack.c.l.b16 %v187
    %v736 = vunpack.c.h.b16 %v187
    %v737 = vunpack.c.l.b16 %v188
    %v738 = vunpack.c.h.b16 %v188
    %v739 = vunpack.c.l.b16 %v189
    %v740 = vunpack.c.h.b16 %v189
    %v741 = vunpack.c.l.b16 %v190
    %v742 = vunpack.c.h.b16 %v190
    %v743 = vunpack.c.l.b16 %v191
    %v744 = vunpack.c.h.b16 %v191
    %v745 = vunpack.c.l.b16 %v192
    %v746 = vunpack.c.h.b16 %v192
    %v747 = vunpack.c.l.b16 %v193
    %v748 = vunpack.c.h.b16 %v193
    %v749 = vunpack.c.l.b16 %v194
    %v750 = vunpack.c.h.b16 %v194
    %v751 = vunpack.c.l.b16 %v195
    %v752 = vunpack.c.h.b16 %v195
    %v753 = vunpack.c.l.b16 %v196
    %v754 = vunpack.c.h.b16 %v196
    %v755 = vunpack.c.l.b16 %v197
    %v756 = vunpack.c.h.b16 %v197
    %v757 = vunpack.c.l.b16 %v198
    %v758 = vunpack.c.h.b16 %v198
    %v759 = vunpack.c.l.b16 %v199
    %v760 = vunpack.c.h.b16 %v199
    %v761 = vunpack.c.l.b16 %v200
    %v762 = vunpack.c.h.b16 %v200
    %v763 = vunpack.c.l.b16 %v201
    %v764 = vunpack.c.h.b16 %v201
    %v765 = vunpack.c.l.b16 %v202
    %v766 = vunpack.c.h.b16 %v202
    %v767 = vunpack.c.l.b16 %v203
    %v768 = vunpack.c.h.b16 %v203
    %v769 = vunpack.c.l.b16 %v204
    %v770 = vunpack.c.h.b16 %v204
    %v771 = vunpack.c.l.b16 %v205
    %v772 = vunpack.c.h.b16 %v205
    %v773 = vunpack.c.l.b16 %v206
    %v774 = vunpack.c.h.b16 %v206
    %v775 = vunpack.c.l.b16 %v207
    %v776 = vunpack.c.h.b16 %v207
    %v777 = vunpack.c.l.b16 %v208
    %v778 = vunpack.c.h.b16 %v208
    %v779 = vunpack.c.l.b16 %v209
    %v780 = vunpack.c.h.b16 %v209
    %v781 = vunpack.c.l.b16 %v210
    %v782 = vunpack.c.h.b16 %v210
    %v783 = vunpack.c.l.b16 %v211
    %v784 = vunpack.c.h.b16 %v211
    %v785 = vunpack.c.l.b16 %v212
    %v786 = vunpack.c.h.b16 %v212
    %v787 = vunpack.c.l.b16 %v213
    %v788 = vunpack.c.h.b16 %v213
    %v789 = vunpack.c.l.b16 %v214
    %v790 = vunpack.c.h.b16 %v214
    %v791 = vunpack.c.l.b16 %v215
    %v792 = vunpack.c.h.b16 %v215
    %v793 = vunpack.c.l.b16 %v216
    %v794 = vunpack.c.h.b16 %v216
    %v795 = vunpack.c.l.b16 %v217
    %v796 = vunpack.c.h.b16 %v217
    %v797 = vunpack.c.l.b16 %v218
    %v798 = vunpack.c.h.b16 %v218
    %v799 = vunpack.c.l.b16 %v219
    %v800 = vunpack.c.h.b16 %v219
    %v801 = vunpack.c.l.b16 %v220
    %v802 = vunpack.c.h.b16 %v220
    %v803 = vunpack.c.l.b16 %v221
    %v804 = vunpack.c.h.b16 %v221
    %v805 = vunpack.c.l.b16 %v222
    %v806 = vunpack.c.h.b16 %v222
    %v807 = vunpack.c.l.b16 %v223
    %v808 = vunpack.c.h.b16 %v223
    %v809 = vunpack.c.l.b16 %v224
    %v810 = vunpack.c.h.b16 %v224
    %v811 = vunpack.c.l.b16 %v225
    %v812 = vunpack.c.h.b16 %v225
    %v813 = vunpack.c.l.b16 %v226
    %v814 = vunpack.c.h.b16 %v226
    %v815 = vunpack.c.l.b16 %v227
    %v816 = vunpack.c.h.b16 %v227
    %v817 = vunpack.c.l.b16 %v228
    %v818 = vunpack.c.h.b16 %v228
    %v819 = vunpack.c.l.b16 %v229
    %v820 = vunpack.c.h.b16 %v229
    %v821 = vunpack.c.l.b16 %v230
    %v822 = vunpack.c.h.b16 %v230
    %v823 = vunpack.c.l.b16 %v231
    %v824 = vunpack.c.h.b16 %v231
    %v825 = vunpack.c.l.b16 %v232
    %v826 = vunpack.c.h.b16 %v232
    %v827 = vunpack.c.l.b16 %v233
    %v828 = vunpack.c.h.b16 %v233
    %v829 = vunpack.c.l.b16 %v234
    %v830 = vunpack.c.h.b16 %v234
    %v831 = vunpack.c.l.b16 %v235
    %v832 = vunpack.c.h.b16 %v235
    %v833 = vunpack.c.l.b16 %v236
    %v834 = vunpack.c.h.b16 %v236
    %v835 = vunpack.c.l.b16 %v237
    %v836 = vunpack.c.h.b16 %v237
    %v837 = vunpack.c.l.b16 %v238
    %v838 = vunpack.c.h.b16 %v238
    %v839 = vunpack.c.l.b16 %v239
    %v840 = vunpack.c.h.b16 %v239
    %v841 = vunpack.c.l.b16 %v240
    %v842 = vunpack.c.h.b16 %v240
    %v843 = vunpack.c.l.b16 %v241
    %v844 = vunpack.c.h.b16 %v241
    %v845 = vunpack.c.l.b16 %v242
    %v846 = vunpack.c.h.b16 %v242
    %v847 = vunpack.c.l.b16 %v243
    %v848 = vunpack.c.h.b16 %v243
    %v849 = vunpack.c.l.b16 %v244
    %v850 = vunpack.c.h.b16 %v244
    %v851 = vunpack.c.l.b16 %v245
    %v852 = vunpack.c.h.b16 %v245
    %v853 = vunpack.c.l.b16 %v246
    %v854 = vunpack.c.h.b16 %v246
    %v855 = vunpack.c.l.b16 %v247
    %v856 = vunpack.c.h.b16 %v247
    %v857 = vunpack.c.l.b16 %v248
    %v858 = vunpack.c.h.b16 %v248
    %v859 = vpack.c.b16 %v471, %v467
    %v860 = vpack.c.b16 %v472, %v468
    %v861 = vpack.c.b16 %v473, %v469
    %v862 = vpack.c.b16 %v474, %v470
    %v863 = vpack.c.b16 %v479, %v475
    %v864 = vpack.c.b16 %v480, %v476
    %v865 = vpack.c.b16 %v481, %v477
    %v866 = vpack.c.b16 %v482, %v478
    %v867 = vpack.c.b16 %v487, %v483
    %v868 = vpack.c.b16 %v488, %v484
    %v869 = vpack.c.b16 %v489, %v485
    %v870 = vpack.c.b16 %v490, %v486
    %v871 = vpack.c.b16 %v495, %v491
    %v872 = vpack.c.b16 %v496, %v492
    %v873 = vpack.c.b16 %v497, %v493
    %v874 = vpack.c.b16 %v498, %v494
    %v875 = vpack.c.b16 %v503, %v499
    %v876 = vpack.c.b16 %v504, %v500
    %v877 = vpack.c.b16 %v505, %v501
    %v878 = vpack.c.b16 %v506, %v502
    %v879 = vpack.c.b16 %v511, %v507
    %v880 = vpack.c.b16 %v512, %v508
    %v881 = vpack.c.b16 %v513, %v509
    %v882 = vpack.c.b16 %v514, %v510
    %v883 = vpack.c.b16 %v519, %v515
    %v884 = vpack.c.b16 %v520, %v516
    %v885 = vpack.c.b16 %v521, %v517
    %v886 = vpack.c.b16 %v522, %v518
    %v887 = vpack.c.b16 %v527, %v523
    %v888 = vpack.c.b16 %v528, %v524
    %v889 = vpack.c.b16 %v529, %v525
    %v890 = vpack.c.b16 %v530, %v526
    %v891 = vpack.c.b16 %v535, %v531
    %v892 = vpack.c.b16 %v536, %v532
    %v893 = vpack.c.b16 %v537, %v533
    %v894 = vpack.c.b16 %v538, %v534
    %v895 = vpack.c.b16 %v543, %v539
    %v896 = vpack.c.b16 %v544, %v540
    %v897 = vpack.c.b16 %v545, %v541
    %v898 = vpack.c.b16 %v546, %v542
    %v899 = vpack.c.b16 %v551, %v547
    %v900 = vpack.c.b16 %v552, %v548
    %v901 = vpack.c.b16 %v553, %v549
    %v902 = vpack.c.b16 %v554, %v550
    %v903 = vpack.c.b16 %v559, %v555
    %v904 = vpack.c.b16 %v560, %v556
    %v905 = vpack.c.b16 %v561, %v557
    %v906 = vpack.c.b16 %v562, %v558
    %v907 = vpack.c.b16 %v567, %v563
    %v908 = vpack.c.b16 %v568, %v564
    %v909 = vpack.c.b16 %v569, %v565
    %v910 = vpack.c.b16 %v570, %v566
    %v911 = vpack.c.b16 %v575, %v571
    %v912 = vpack.c.b16 %v576, %v572
    %v913 = vpack.c.b16 %v577, %v573
    %v914 = vpack.c.b16 %v578, %v574
    %v915 = vpack.c.b16 %v583, %v579
    %v916 = vpack.c.b16 %v584, %v580
    %v917 = vpack.c.b16 %v585, %v581
    %v918 = vpack.c.b16 %v586, %v582
    %v919 = vpack.c.b16 %v591, %v587
    %v920 = vpack.c.b16 %v592, %v588
    %v921 = vpack.c.b16 %v593, %v589
    %v922 = vpack.c.b16 %v594, %v590
    %v923 = vpack.c.b16 %v599, %v595
    %v924 = vpack.c.b16 %v600, %v596
    %v925 = vpack.c.b16 %v601, %v597
    %v926 = vpack.c.b16 %v602, %v598
    %v927 = vpack.c.b16 %v607, %v603
    %v928 = vpack.c.b16 %v608, %v604
    %v929 = vpack.c.b16 %v609, %v605
    %v930 = vpack.c.b16 %v610, %v606
    %v931 = vpack.c.b16 %v615, %v611
    %v932 = vpack.c.b16 %v616, %v612
    %v933 = vpack.c.b16 %v617, %v613
    %v934 = vpack.c.b16 %v618, %v614
    %v935 = vpack.c.b16 %v623, %v619
    %v936 = vpack.c.b16 %v624, %v620
    %v937 = vpack.c.b16 %v625, %v621
    %v938 = vpack.c.b16 %v626, %v622
    %v939 = vpack.c.b16 %v631, %v627
    %v940 = vpack.c.b16 %v632, %v628
    %v941 = vpack.c.b16 %v633, %v629
    %v942 = vpack.c.b16 %v634, %v630
    %v943 = vpack.c.b16 %v639, %v635
    %v944 = vpack.c.b16 %v640, %v636
    %v945 = vpack.c.b16 %v641, %v637
    %v946 = vpack.c.b16 %v642, %v638
    %v947 = vpack.c.b16 %v647, %v643
    %v948 = vpack.c.b16 %v648, %v644
    %v949 = vpack.c.b16 %v649, %v645
    %v950 = vpack.c.b16 %v650, %v646
    %v951 = vpack.c.b16 %v655, %v651
    %v952 = vpack.c.b16 %v656, %v652
    %v953 = vpack.c.b16 %v657, %v653
    %v954 = vpack.c.b16 %v658, %v654
    %v955 = vpack.c.b16 %v663, %v659
    %v956 = vpack.c.b16 %v664, %v660
    %v957 = vpack.c.b16 %v665, %v661
    %v958 = vpack.c.b16 %v666, %v662
    %v959 = vpack.c.b16 %v671, %v667
    %v960 = vpack.c.b16 %v672, %v668
    %v961 = vpack.c.b16 %v673, %v669
    %v962 = vpack.c.b16 %v674, %v670
    %v963 = vpack.c.b16 %v679, %v675
    %v964 = vpack.c.b16 %v680, %v676
    %v965 = vpack.c.b16 %v681, %v677
    %v966 = vpack.c.b16 %v682, %v678
    %v967 = vpack.c.b16 %v687, %v683
    %v968 = vpack.c.b16 %v688, %v684
    %v969 = vpack.c.b16 %v689, %v685
    %v970 = vpack.c.b16 %v690, %v686
    %v971 = vpack.c.b16 %v695, %v691
    %v972 = vpack.c.b16 %v696, %v692
    %v973 = vpack.c.b16 %v697, %v693
    %v974 = vpack.c.b16 %v698, %v694
    %v975 = vpack.c.b16 %v703, %v699
    %v976 = vpack.c.b16 %v704, %v700
    %v977 = vpack.c.b16 %v705, %v701
    %v978 = vpack.c.b16 %v706, %v702
    %v979 = vpack.c.b16 %v711, %v707
    %v980 = vpack.c.b16 %v712, %v708
    %v981 = vpack.c.b16 %v713, %v709
    %v982 = vpack.c.b16 %v714, %v710
    %v983 = vpack.c.b16 %v719, %v715
    %v984 = vpack.c.b16 %v720, %v716
    %v985 = vpack.c.b16 %v721, %v717
    %v986 = vpack.c.b16 %v722, %v718
    %v987 = vpack.c.b16 %v727, %v723
    %v988 = vpack.c.b16 %v728, %v724
    %v989 = vpack.c.b16 %v729, %v725
    %v990 = vpack.c.b16 %v730, %v726
    %v991 = vpack.c.b16 %v735, %v731
    %v992 = vpack.c.b16 %v736, %v732
    %v993 = vpack.c.b16 %v737, %v733
    %v994 = vpack.c.b16 %v738, %v734
    %v995 = vpack.c.b16 %v743, %v739
    %v996 = vpack.c.b16 %v744, %v740
    %v997 = vpack.c.b16 %v745, %v741
    %v998 = vpack.c.b16 %v746, %v742
    %v999 = vpack.c.b16 %v751, %v747
    %v1000 = vpack.c.b16 %v752, %v748
    %v1001 = vpack.c.b16 %v753, %v749
    %v1002 = vpack.c.b16 %v754, %v750
    %v1003 = vpack.c.b16 %v759, %v755
    %v1004 = vpack.c.b16 %v760, %v756
    %v1005 = vpack.c.b16 %v761, %v757
    %v1006 = vpack.c.b16 %v762, %v758
    %v1007 = vpack.c.b16 %v767, %v763
    %v1008 = vpack.c.b16 %v768, %v764
    %v1009 = vpack.c.b16 %v769, %v765
    %v1010 = vpack.c.b16 %v770, %v766
    %v1011 = vpack.c.b16 %v775, %v771
    %v1012 = vpack.c.b16 %v776, %v772
    %v1013 = vpack.c.b16 %v777, %v773
    %v1014 = vpack.c.b16 %v778, %v774
    %v1015 = vpack.c.b16 %v783, %v779
    %v1016 = vpack.c.b16 %v784, %v780
    %v1017 = vpack.c.b16 %v785, %v781
    %v1018 = vpack.c.b16 %v786, %v782
    %v1019 = vpack.c.b16 %v791, %v787
    %v1020 = vpack.c.b16 %v792, %v788
    %v1021 = vpack.c.b16 %v793, %v789
    %v1022 = vpack.c.b16 %v794, %v790
    %v1023 = vpack.c.b16 %v799, %v795
    %v1024 = vpack.c.b16 %v800, %v796
    %v1025 = vpack.c.b16 %v801, %v797
    %v1026 = vpack.c.b16 %v802, %v798
    %v1027 = vpack.c.b16 %v807, %v803
    %v1028 = vpack.c.b16 %v808, %v804
    %v1029 = vpack.c.b16 %v809, %v805
    %v1030 = vpack.c.b16 %v810, %v806
    %v1031 = vpack.c.b16 %v815, %v811
    %v1032 = vpack.c.b16 %v816, %v812
    %v1033 = vpack.c.b16 %v817, %v813
    %v1034 = vpack.c.b16 %v818, %v814
    %v1035 = vpack.c.b16 %v823, %v819
    %v1036 = vpack.c.b16 %v824, %v820
    %v1037 = vpack.c.b16 %v825, %v821
    %v1038 = vpack.c.b16 %v826, %v822
    %v1039 = vpack.c.b16 %v831, %v827
    %v1040 = vpack.c.b16 %v832, %v828
    %v1041 = vpack.c.b16 %v833, %v829
    %v1042 = vpack.c.b16 %v834, %v830
    %v1043 = vpack.c.b16 %v839, %v835
    %v1044 = vpack.c.b16 %v840, %v836
    %v1045 = vpack.c.b16 %v841, %v837
    %v1046 = vpack.c.b16 %v842, %v838
    %v1047 = vpack.c.b16 %v847, %v843
    %v1048 = vpack.c.b16 %v848, %v844
    %v1049 = vpack.c.b16 %v849, %v845
    %v1050 = vpack.c.b16 %v850, %v846
    %v1051 = vpack.c.b16 %v855, %v851
    %v1052 = vpack.c.b16 %v856, %v852
    %v1053 = vpack.c.b16 %v857, %v853
    %v1054 = vpack.c.b16 %v858, %v854
    %vm1251 = vcmask 130048
    %v1253 = vsel %vm1251, %v52, 0
    %1255 = vmatprep.subr.bf16.mxu0 %v860
    %1256 = vmatpush1.bf16.msra.mxu0 %v859
    %1257 = vmatprep.subr.bf16.mxu0 %v864
    %1258 = vmatpush1.bf16.msra.mxu0 %v863
    %1259 = vmatprep.subr.bf16.mxu0 %v868
    %1260 = vmatpush1.bf16.msra.mxu0 %v867
    %1261 = vmatprep.subr.bf16.mxu0 %v872
    %1262 = vmatpush1.bf16.msra.mxu0 %v871
    %1263 = vmatprep.subr.bf16.mxu0 %v876
    %1264 = vmatpush1.bf16.msra.mxu0 %v875
    %1265 = vmatprep.subr.bf16.mxu0 %v880
    %1266 = vmatpush1.bf16.msra.mxu0 %v879
    %1267 = vmatprep.subr.bf16.mxu0 %v884
    %1268 = vmatpush1.bf16.msra.mxu0 %v883
    %1269 = vmatprep.subr.bf16.mxu0 %v888
    %1270 = vmatpush1.bf16.msra.mxu0 %v887
    %1271 = vmatprep.subr.bf16.mxu0 %v892
    %1272 = vmatpush1.bf16.msra.mxu0 %v891
    %1273 = vmatprep.subr.bf16.mxu0 %v896
    %1274 = vmatpush1.bf16.msra.mxu0 %v895
    %1275 = vmatprep.subr.bf16.mxu0 %v900
    %1276 = vmatpush1.bf16.msra.mxu0 %v899
    %1277 = vmatprep.subr.bf16.mxu0 %v904
    %1278 = vmatpush1.bf16.msra.mxu0 %v903
    %1279 = vmatprep.subr.bf16.mxu0 %v908
    %1280 = vmatpush1.bf16.msra.mxu0 %v907
    %1281 = vmatprep.subr.bf16.mxu0 %v912
    %1282 = vmatpush1.bf16.msra.mxu0 %v911
    %1283 = vmatprep.subr.bf16.mxu0 %v916
    %1284 = vmatpush1.bf16.msra.mxu0 %v915
    %1285 = vmatprep.subr.bf16.mxu0 %v920
    %1286 = vmatpush1.bf16.msra.mxu0 %v919
    %1287 = vmatprep.mubr.bf16.mxu0 %v47
    %1288 = vmatmul.mubr.bf16.gmra.mrb[0].mxu0 %v46
    %v1289 = vpop.f32.mrb[0].mxu0
    %v1290 = vadd.f32 %v254, %v1289
    %v1291 = vpop.f32.mrb[0].mxu0
    %v1292 = vadd.f32 %v258, %v1291
    %v1293 = vpop.f32.mrb[0].mxu0
    %v1294 = vpop.f32.mrb[0].mxu0
    %1295 = vdwg.mxu0
    %1296 = vmatprep.subr.bf16.mxu0 %v924
    %1297 = vmatpush1.bf16.msra.mxu0 %v923
    %1298 = vmatprep.subr.bf16.mxu0 %v928
    %1299 = vmatpush1.bf16.msra.mxu0 %v927
    %1300 = vmatprep.subr.bf16.mxu0 %v932
    %1301 = vmatpush1.bf16.msra.mxu0 %v931
    %1302 = vmatprep.subr.bf16.mxu0 %v936
    %1303 = vmatpush1.bf16.msra.mxu0 %v935
    %1304 = vmatprep.subr.bf16.mxu0 %v940
    %1305 = vmatpush1.bf16.msra.mxu0 %v939
    %1306 = vmatprep.subr.bf16.mxu0 %v944
    %1307 = vmatpush1.bf16.msra.mxu0 %v943
    %1308 = vmatprep.subr.bf16.mxu0 %v948
    %1309 = vmatpush1.bf16.msra.mxu0 %v947
    %1310 = vmatprep.subr.bf16.mxu0 %v952
    %1311 = vmatpush1.bf16.msra.mxu0 %v951
    %1312 = vmatprep.subr.bf16.mxu0 %v956
    %1313 = vmatpush1.bf16.msra.mxu0 %v955
    %1314 = vmatprep.subr.bf16.mxu0 %v960
    %1315 = vmatpush1.bf16.msra.mxu0 %v959
    %1316 = vmatprep.subr.bf16.mxu0 %v964
    %1317 = vmatpush1.bf16.msra.mxu0 %v963
    %1318 = vmatprep.subr.bf16.mxu0 %v968
    %1319 = vmatpush1.bf16.msra.mxu0 %v967
    %1320 = vmatprep.subr.bf16.mxu0 %v972
    %1321 = vmatpush1.bf16.msra.mxu0 %v971
    %1322 = vmatprep.subr.bf16.mxu0 %v976
    %1323 = vmatpush1.bf16.msra.mxu0 %v975
    %1324 = vmatprep.subr.bf16.mxu0 %v980
    %1325 = vmatpush1.bf16.msra.mxu0 %v979
    %1326 = vmatprep.subr.bf16.mxu0 %v984
    %1327 = vmatpush1.bf16.msra.mxu0 %v983
    %1328 = vmatprep.mubr.bf16.mxu0 %v49
    %1329 = vmatmul.mubr.bf16.gmra.mrb[0].mxu0 %v48
    %v1330 = vpop.f32.mrb[0].mxu0
    %v1331 = vadd.f32 %v1290, %v1330
    %v1332 = vpop.f32.mrb[0].mxu0
    %v1333 = vadd.f32 %v1292, %v1332
    %v1334 = vpop.f32.mrb[0].mxu0
    %v1335 = vpop.f32.mrb[0].mxu0
    %1336 = vdwg.mxu0
    %1337 = vmatprep.subr.bf16.mxu0 %v988
    %1338 = vmatpush1.bf16.msra.mxu0 %v987
    %1339 = vmatprep.subr.bf16.mxu0 %v992
    %1340 = vmatpush1.bf16.msra.mxu0 %v991
    %1341 = vmatprep.subr.bf16.mxu0 %v996
    %1342 = vmatpush1.bf16.msra.mxu0 %v995
    %1343 = vmatprep.subr.bf16.mxu0 %v1000
    %1344 = vmatpush1.bf16.msra.mxu0 %v999
    %1345 = vmatprep.subr.bf16.mxu0 %v1004
    %1346 = vmatpush1.bf16.msra.mxu0 %v1003
    %1347 = vmatprep.subr.bf16.mxu0 %v1008
    %1348 = vmatpush1.bf16.msra.mxu0 %v1007
    %1349 = vmatprep.subr.bf16.mxu0 %v1012
    %1350 = vmatpush1.bf16.msra.mxu0 %v1011
    %1351 = vmatprep.subr.bf16.mxu0 %v1016
    %1352 = vmatpush1.bf16.msra.mxu0 %v1015
    %1353 = vmatprep.subr.bf16.mxu0 %v1020
    %1354 = vmatpush1.bf16.msra.mxu0 %v1019
    %1355 = vmatprep.subr.bf16.mxu0 %v1024
    %1356 = vmatpush1.bf16.msra.mxu0 %v1023
    %1357 = vmatprep.subr.bf16.mxu0 %v1028
    %1358 = vmatpush1.bf16.msra.mxu0 %v1027
    %1359 = vmatprep.subr.bf16.mxu0 %v1032
    %1360 = vmatpush1.bf16.msra.mxu0 %v1031
    %1361 = vmatprep.subr.bf16.mxu0 %v1036
    %1362 = vmatpush1.bf16.msra.mxu0 %v1035
    %1363 = vmatprep.subr.bf16.mxu0 %v1040
    %1364 = vmatpush1.bf16.msra.mxu0 %v1039
    %1365 = vmatprep.subr.bf16.mxu0 %v1044
    %1366 = vmatpush1.bf16.msra.mxu0 %v1043
    %1367 = vmatprep.subr.bf16.mxu0 %v1048
    %1368 = vmatpush1.bf16.msra.mxu0 %v1047
    %1369 = vmatprep.mubr.bf16.mxu0 %v51
    %1370 = vmatmul.mubr.bf16.gmra.mrb[0].mxu0 %v50
    %v1371 = vpop.f32.mrb[0].mxu0
    %v1372 = vadd.f32 %v1331, %v1371
    %v1373 = vpop.f32.mrb[0].mxu0
    %v1374 = vadd.f32 %v1333, %v1373
    %v1375 = vpop.f32.mrb[0].mxu0
    %v1376 = vpop.f32.mrb[0].mxu0
    %1377 = vdwg.mxu0
    %1378 = vmatprep.subr.bf16.mxu0 %v1052
    %1379 = vmatpush1.bf16.msra.mxu0 %v1051
    %1380 = vmatprep.subr.bf16.mxu0 0
    %1381 = vmatpush1.bf16.msra.mxu0 0
    %1382 = vmatprep.subr.bf16.mxu0 0
    %1383 = vmatpush1.bf16.msra.mxu0 0
    %1384 = vmatprep.subr.bf16.mxu0 0
    %1385 = vmatpush1.bf16.msra.mxu0 0
    %1386 = vmatprep.subr.bf16.mxu0 0
    %1387 = vmatpush1.bf16.msra.mxu0 0
    %1388 = vmatprep.subr.bf16.mxu0 0
    %1389 = vmatpush1.bf16.msra.mxu0 0
    %1390 = vmatprep.subr.bf16.mxu0 0
    %1391 = vmatpush1.bf16.msra.mxu0 0
    %1392 = vmatprep.subr.bf16.mxu0 0
    %1393 = vmatpush1.bf16.msra.mxu0 0
    %1394 = vmatprep.subr.bf16.mxu0 0
    %1395 = vmatpush1.bf16.msra.mxu0 0
    %1396 = vmatprep.subr.bf16.mxu0 0
    %1397 = vmatpush1.bf16.msra.mxu0 0
    %1398 = vmatprep.subr.bf16.mxu0 0
    %1399 = vmatpush1.bf16.msra.mxu0 0
    %1400 = vmatprep.subr.bf16.mxu0 0
    %1401 = vmatpush1.bf16.msra.mxu0 0
    %1402 = vmatprep.subr.bf16.mxu0 0
    %1403 = vmatpush1.bf16.msra.mxu0 0
    %1404 = vmatprep.subr.bf16.mxu0 0
    %1405 = vmatpush1.bf16.msra.mxu0 0
    %1406 = vmatprep.subr.bf16.mxu0 0
    %1407 = vmatpush1.bf16.msra.mxu0 0
    %1408 = vmatprep.subr.bf16.mxu0 0
    %1409 = vmatpush1.bf16.msra.mxu0 0
    %1410 = vmatprep.mubr.bf16.mxu0 0
    %1411 = vmatmul.mubr.bf16.gmra.mrb[0].mxu0 %v1253
    %v1412 = vpop.f32.mrb[0].mxu0
    %v1413 = vadd.f32 %v1372, %v1412
    %v1414 = vpop.f32.mrb[0].mxu0
    %v1415 = vadd.f32 %v1374, %v1414
    %v1416 = vpop.f32.mrb[0].mxu0
    %v1417 = vpop.f32.mrb[0].mxu0
    %1418 = vdwg.mxu0
    %1419 = vmatprep.subr.bf16.mxu0 %v862
    %1420 = vmatpush1.bf16.msra.mxu0 %v861
    %1421 = vmatprep.subr.bf16.mxu0 %v866
    %1422 = vmatpush1.bf16.msra.mxu0 %v865
    %1423 = vmatprep.subr.bf16.mxu0 %v870
    %1424 = vmatpush1.bf16.msra.mxu0 %v869
    %1425 = vmatprep.subr.bf16.mxu0 %v874
    %1426 = vmatpush1.bf16.msra.mxu0 %v873
    %1427 = vmatprep.subr.bf16.mxu0 %v878
    %1428 = vmatpush1.bf16.msra.mxu0 %v877
    %1429 = vmatprep.subr.bf16.mxu0 %v882
    %1430 = vmatpush1.bf16.msra.mxu0 %v881
    %1431 = vmatprep.subr.bf16.mxu0 %v886
    %1432 = vmatpush1.bf16.msra.mxu0 %v885
    %1433 = vmatprep.subr.bf16.mxu0 %v890
    %1434 = vmatpush1.bf16.msra.mxu0 %v889
    %1435 = vmatprep.subr.bf16.mxu0 %v894
    %1436 = vmatpush1.bf16.msra.mxu0 %v893
    %1437 = vmatprep.subr.bf16.mxu0 %v898
    %1438 = vmatpush1.bf16.msra.mxu0 %v897
    %1439 = vmatprep.subr.bf16.mxu0 %v902
    %1440 = vmatpush1.bf16.msra.mxu0 %v901
    %1441 = vmatprep.subr.bf16.mxu0 %v906
    %1442 = vmatpush1.bf16.msra.mxu0 %v905
    %1443 = vmatprep.subr.bf16.mxu0 %v910
    %1444 = vmatpush1.bf16.msra.mxu0 %v909
    %1445 = vmatprep.subr.bf16.mxu0 %v914
    %1446 = vmatpush1.bf16.msra.mxu0 %v913
    %1447 = vmatprep.subr.bf16.mxu0 %v918
    %1448 = vmatpush1.bf16.msra.mxu0 %v917
    %1449 = vmatprep.subr.bf16.mxu0 %v922
    %1450 = vmatpush1.bf16.msra.mxu0 %v921
    %1451 = vmatprep.mubr.bf16.mxu0 %v47
    %1452 = vmatmul.mubr.bf16.gmra.mrb[0].mxu0 %v46
    %v1453 = vpop.f32.mrb[0].mxu0
    %v1454 = vadd.f32 %v262, %v1453
    %v1455 = vpop.f32.mrb[0].mxu0
    %v1456 = vadd.f32 %v266, %v1455
    %v1457 = vpop.f32.mrb[0].mxu0
    %v1458 = vpop.f32.mrb[0].mxu0
    %1459 = vdwg.mxu0
    %1460 = vmatprep.subr.bf16.mxu0 %v926
    %1461 = vmatpush1.bf16.msra.mxu0 %v925
    %1462 = vmatprep.subr.bf16.mxu0 %v930
    %1463 = vmatpush1.bf16.msra.mxu0 %v929
    %1464 = vmatprep.subr.bf16.mxu0 %v934
    %1465 = vmatpush1.bf16.msra.mxu0 %v933
    %1466 = vmatprep.subr.bf16.mxu0 %v938
    %1467 = vmatpush1.bf16.msra.mxu0 %v937
    %1468 = vmatprep.subr.bf16.mxu0 %v942
    %1469 = vmatpush1.bf16.msra.mxu0 %v941
    %1470 = vmatprep.subr.bf16.mxu0 %v946
    %1471 = vmatpush1.bf16.msra.mxu0 %v945
    %1472 = vmatprep.subr.bf16.mxu0 %v950
    %1473 = vmatpush1.bf16.msra.mxu0 %v949
    %1474 = vmatprep.subr.bf16.mxu0 %v954
    %1475 = vmatpush1.bf16.msra.mxu0 %v953
    %1476 = vmatprep.subr.bf16.mxu0 %v958
    %1477 = vmatpush1.bf16.msra.mxu0 %v957
    %1478 = vmatprep.subr.bf16.mxu0 %v962
    %1479 = vmatpush1.bf16.msra.mxu0 %v961
    %1480 = vmatprep.subr.bf16.mxu0 %v966
    %1481 = vmatpush1.bf16.msra.mxu0 %v965
    %1482 = vmatprep.subr.bf16.mxu0 %v970
    %1483 = vmatpush1.bf16.msra.mxu0 %v969
    %1484 = vmatprep.subr.bf16.mxu0 %v974
    %1485 = vmatpush1.bf16.msra.mxu0 %v973
    %1486 = vmatprep.subr.bf16.mxu0 %v978
    %1487 = vmatpush1.bf16.msra.mxu0 %v977
    %1488 = vmatprep.subr.bf16.mxu0 %v982
    %1489 = vmatpush1.bf16.msra.mxu0 %v981
    %1490 = vmatprep.subr.bf16.mxu0 %v986
    %1491 = vmatpush1.bf16.msra.mxu0 %v985
    %1492 = vmatprep.mubr.bf16.mxu0 %v49
    %1493 = vmatmul.mubr.bf16.gmra.mrb[0].mxu0 %v48
    %v1494 = vpop.f32.mrb[0].mxu0
    %v1495 = vadd.f32 %v1454, %v1494
    %v1496 = vpop.f32.mrb[0].mxu0
    %v1497 = vadd.f32 %v1456, %v1496
    %v1498 = vpop.f32.mrb[0].mxu0
    %v1499 = vpop.f32.mrb[0].mxu0
    %1500 = vdwg.mxu0
    %1501 = vmatprep.subr.bf16.mxu0 %v990
    %1502 = vmatpush1.bf16.msra.mxu0 %v989
    %1503 = vmatprep.subr.bf16.mxu0 %v994
    %1504 = vmatpush1.bf16.msra.mxu0 %v993
    %1505 = vmatprep.subr.bf16.mxu0 %v998
    %1506 = vmatpush1.bf16.msra.mxu0 %v997
    %1507 = vmatprep.subr.bf16.mxu0 %v1002
    %1508 = vmatpush1.bf16.msra.mxu0 %v1001
    %1509 = vmatprep.subr.bf16.mxu0 %v1006
    %1510 = vmatpush1.bf16.msra.mxu0 %v1005
    %1511 = vmatprep.subr.bf16.mxu0 %v1010
    %1512 = vmatpush1.bf16.msra.mxu0 %v1009
    %1513 = vmatprep.subr.bf16.mxu0 %v1014
    %1514 = vmatpush1.bf16.msra.mxu0 %v1013
    %1515 = vmatprep.subr.bf16.mxu0 %v1018
    %1516 = vmatpush1.bf16.msra.mxu0 %v1017
    %1517 = vmatprep.subr.bf16.mxu0 %v1022
    %1518 = vmatpush1.bf16.msra.mxu0 %v1021
    %1519 = vmatprep.subr.bf16.mxu0 %v1026
    %1520 = vmatpush1.bf16.msra.mxu0 %v1025
    %1521 = vmatprep.subr.bf16.mxu0 %v1030
    %1522 = vmatpush1.bf16.msra.mxu0 %v1029
    %1523 = vmatprep.subr.bf16.mxu0 %v1034
    %1524 = vmatpush1.bf16.msra.mxu0 %v1033
    %1525 = vmatprep.subr.bf16.mxu0 %v1038
    %1526 = vmatpush1.bf16.msra.mxu0 %v1037
    %1527 = vmatprep.subr.bf16.mxu0 %v1042
    %1528 = vmatpush1.bf16.msra.mxu0 %v1041
    %1529 = vmatprep.subr.bf16.mxu0 %v1046
    %1530 = vmatpush1.bf16.msra.mxu0 %v1045
    %1531 = vmatprep.subr.bf16.mxu0 %v1050
    %1532 = vmatpush1.bf16.msra.mxu0 %v1049
    %1533 = vmatprep.mubr.bf16.mxu0 %v51
    %1534 = vmatmul.mubr.bf16.gmra.mrb[0].mxu0 %v50
    %v1535 = vpop.f32.mrb[0].mxu0
    %v1536 = vadd.f32 %v1495, %v1535
    %v1537 = vpop.f32.mrb[0].mxu0
    %v1538 = vadd.f32 %v1497, %v1537
    %v1539 = vpop.f32.mrb[0].mxu0
    %v1540 = vpop.f32.mrb[0].mxu0
    %1541 = vdwg.mxu0
    %1542 = vmatprep.subr.bf16.mxu0 %v1054
    %1543 = vmatpush1.bf16.msra.mxu0 %v1053
    %1544 = vmatprep.subr.bf16.mxu0 0
    %1545 = vmatpush1.bf16.msra.mxu0 0
    %1546 = vmatprep.subr.bf16.mxu0 0
    %1547 = vmatpush1.bf16.msra.mxu0 0
    %1548 = vmatprep.subr.bf16.mxu0 0
    %1549 = vmatpush1.bf16.msra.mxu0 0
    %1550 = vmatprep.subr.bf16.mxu0 0
    %1551 = vmatpush1.bf16.msra.mxu0 0
    %1552 = vmatprep.subr.bf16.mxu0 0
    %1553 = vmatpush1.bf16.msra.mxu0 0
    %1554 = vmatprep.subr.bf16.mxu0 0
    %1555 = vmatpush1.bf16.msra.mxu0 0
    %1556 = vmatprep.subr.bf16.mxu0 0
    %1557 = vmatpush1.bf16.msra.mxu0 0
    %1558 = vmatprep.subr.bf16.mxu0 0
    %1559 = vmatpush1.bf16.msra.mxu0 0
    %1560 = vmatprep.subr.bf16.mxu0 0
    %1561 = vmatpush1.bf16.msra.mxu0 0
    %1562 = vmatprep.subr.bf16.mxu0 0
    %1563 = vmatpush1.bf16.msra.mxu0 0
    %1564 = vmatprep.subr.bf16.mxu0 0
    %1565 = vmatpush1.bf16.msra.mxu0 0
    %1566 = vmatprep.subr.bf16.mxu0 0
    %1567 = vmatpush1.bf16.msra.mxu0 0
    %1568 = vmatprep.subr.bf16.mxu0 0
    %1569 = vmatpush1.bf16.msra.mxu0 0
    %1570 = vmatprep.subr.bf16.mxu0 0
    %1571 = vmatpush1.bf16.msra.mxu0 0
    %1572 = vmatprep.subr.bf16.mxu0 0
    %1573 = vmatpush1.bf16.msra.mxu0 0
    %1574 = vmatprep.mubr.bf16.mxu0 0
    %1575 = vmatmul.mubr.bf16.gmra.mrb[0].mxu0 %v1253
    %v1576 = vpop.f32.mrb[0].mxu0
    %v1577 = vadd.f32 %v1536, %v1576
    %v1578 = vpop.f32.mrb[0].mxu0
    %v1579 = vadd.f32 %v1538, %v1578
    %v1580 = vpop.f32.mrb[0].mxu0
    %v1581 = vpop.f32.mrb[0].mxu0
    %1582 = vdwg.mxu0
    %v1583 = vmax.f32 %v1413, 0.0
    %v1584 = vmax.f32 %v1415, 0.0
    %v1585 = vmax.f32 %v1577, 0.0
    %v1586 = vmax.f32 %v1579, 0.0
    %v1587 = vpack.c.bf16 %v1583, %v1583
    %v1588 = vpack.c.bf16 %v1584, %v1584
    %v1589 = vpack.c.bf16 %v1585, %v1585
    %v1590 = vpack.c.bf16 %v1586, %v1586
    %v1591 = vld [vmem:[%s4] sm:$0xf]
    %v1592 = vld [vmem:[%s4 + $0x4] sm:$0xf]
    %v1593 = vld [vmem:[%s4 + $0x8] sm:$0xf]
    %v1594 = vld [vmem:[%s4 + $0xc] sm:$0xf]
    %v1595 = vld [vmem:[%s4 + $0x10] sm:$0xf]
    %v1596 = vld [vmem:[%s4 + $0x14] sm:$0xf]
    %v1597 = vld [vmem:[%s4 + $0x18] sm:$0xf]
    %v1598 = vld [vmem:[%s4 + $0x1c] sm:$0xf]
    %v1599 = vld [vmem:[%s4 + $0x20] sm:$0xf]
    %v1600 = vld [vmem:[%s4 + $0x24] sm:$0xf]
    %v1601 = vld [vmem:[%s4 + $0x28] sm:$0xf]
    %v1602 = vld [vmem:[%s4 + $0x2c] sm:$0xf]
    %v1603 = vld [vmem:[%s4 + $0x30] sm:$0xf]
    %v1604 = vld [vmem:[%s4 + $0x34] sm:$0xf]
    %v1605 = vld [vmem:[%s4 + $0x38] sm:$0xf]
    %v1606 = vld [vmem:[%s4 + $0x3c] sm:$0xf]
    %v1607 = vld [vmem:[%s4 + $0x40] sm:$0xf]
    %v1608 = vld [vmem:[%s4 + $0x44] sm:$0xf]
    %v1609 = vld [vmem:[%s4 + $0x48] sm:$0xf]
    %v1610 = vld [vmem:[%s4 + $0x4c] sm:$0xf]
    %v1611 = vld [vmem:[%s4 + $0x50] sm:$0xf]
    %v1612 = vld [vmem:[%s4 + $0x54] sm:$0xf]
    %v1613 = vld [vmem:[%s4 + $0x58] sm:$0xf]
    %v1614 = vld [vmem:[%s4 + $0x5c] sm:$0xf]
    %v1615 = vld [vmem:[%s4 + $0x60] sm:$0xf]
    %v1616 = vld [vmem:[%s4 + $0x64] sm:$0xf]
    %v1617 = vld [vmem:[%s4 + $0x68] sm:$0xf]
    %v1618 = vld [vmem:[%s4 + $0x6c] sm:$0xf]
    %v1619 = vld [vmem:[%s4 + $0x70] sm:$0xf]
    %v1620 = vld [vmem:[%s4 + $0x74] sm:$0xf]
    %v1621 = vld [vmem:[%s4 + $0x78] sm:$0xf]
    %v1622 = vld [vmem:[%s4 + $0x7c] sm:$0xf]
    %v1623 = vld [vmem:[%s4 + $0x80] sm:$0xf]
    %v1624 = vld [vmem:[%s4 + $0x84] sm:$0xf]
    %v1625 = vld [vmem:[%s4 + $0x88] sm:$0xf]
    %v1626 = vld [vmem:[%s4 + $0x8c] sm:$0xf]
    %v1627 = vld [vmem:[%s4 + $0x90] sm:$0xf]
    %v1628 = vld [vmem:[%s4 + $0x94] sm:$0xf]
    %v1629 = vld [vmem:[%s4 + $0x98] sm:$0xf]
    %v1630 = vld [vmem:[%s4 + $0x9c] sm:$0xf]
    %v1631 = vld [vmem:[%s4 + $0xa0] sm:$0xf]
    %v1632 = vld [vmem:[%s4 + $0xa4] sm:$0xf]
    %v1633 = vld [vmem:[%s4 + $0xa8] sm:$0xf]
    %v1634 = vld [vmem:[%s4 + $0xac] sm:$0xf]
    %v1635 = vld [vmem:[%s4 + $0xb0] sm:$0xf]
    %v1636 = vld [vmem:[%s4 + $0xb4] sm:$0xf]
    %v1637 = vld [vmem:[%s4 + $0xb8] sm:$0xf]
    %v1638 = vld [vmem:[%s4 + $0xbc] sm:$0xf]
    %v1639 = vld [vmem:[%s4 + $0xc0] sm:$0xf]
    %v1640 = vld [vmem:[%s4 + $0xc4] sm:$0xf]
    %v1641 = vld [vmem:[%s4 + $0xc8] sm:$0xf]
    %v1642 = vld [vmem:[%s4 + $0xcc] sm:$0xf]
    %v1643 = vld [vmem:[%s4 + $0xd0] sm:$0xf]
    %v1644 = vld [vmem:[%s4 + $0xd4] sm:$0xf]
    %v1645 = vld [vmem:[%s4 + $0xd8] sm:$0xf]
    %v1646 = vld [vmem:[%s4 + $0xdc] sm:$0xf]
    %v1647 = vld [vmem:[%s4 + $0xe0] sm:$0xf]
    %v1648 = vld [vmem:[%s4 + $0xe4] sm:$0xf]
    %v1649 = vld [vmem:[%s4 + $0xe8] sm:$0xf]
    %v1650 = vld [vmem:[%s4 + $0xec] sm:$0xf]
    %v1651 = vld [vmem:[%s4 + $0xf0] sm:$0xf]
    %v1652 = vld [vmem:[%s4 + $0xf4] sm:$0xf]
    %v1653 = vld [vmem:[%s4 + $0xf8] sm:$0xf]
    %v1654 = vld [vmem:[%s4 + $0xfc] sm:$0xf]
    %v1655 = vld [vmem:[%s5] sm:$0x1]
    %v1657 = vlaneseq
    %v1658 = vshrl.u32 %v1657, 7
    %v1659 = vsub.s32 0, %v1658
    %v1660 = vrot.slane %v1655, %v1659
    %v1726 = vunpack.c.l.b16 %v1591
    %v1727 = vunpack.c.l.b16 %v1592
    %v1728 = vunpack.c.l.b16 %v1593
    %v1729 = vunpack.c.l.b16 %v1594
    %v1730 = vunpack.c.l.b16 %v1595
    %v1731 = vunpack.c.l.b16 %v1596
    %v1732 = vunpack.c.l.b16 %v1597
    %v1733 = vunpack.c.l.b16 %v1598
    %v1734 = vunpack.c.l.b16 %v1599
    %v1735 = vunpack.c.l.b16 %v1600
    %v1736 = vunpack.c.l.b16 %v1601
    %v1737 = vunpack.c.l.b16 %v1602
    %v1738 = vunpack.c.l.b16 %v1603
    %v1739 = vunpack.c.l.b16 %v1604
    %v1740 = vunpack.c.l.b16 %v1605
    %v1741 = vunpack.c.l.b16 %v1606
    %v1742 = vunpack.c.l.b16 %v1607
    %v1743 = vunpack.c.l.b16 %v1608
    %v1744 = vunpack.c.l.b16 %v1609
    %v1745 = vunpack.c.l.b16 %v1610
    %v1746 = vunpack.c.l.b16 %v1611
    %v1747 = vunpack.c.l.b16 %v1612
    %v1748 = vunpack.c.l.b16 %v1613
    %v1749 = vunpack.c.l.b16 %v1614
    %v1750 = vunpack.c.l.b16 %v1615
    %v1751 = vunpack.c.l.b16 %v1616
    %v1752 = vunpack.c.l.b16 %v1617
    %v1753 = vunpack.c.l.b16 %v1618
    %v1754 = vunpack.c.l.b16 %v1619
    %v1755 = vunpack.c.l.b16 %v1620
    %v1756 = vunpack.c.l.b16 %v1621
    %v1757 = vunpack.c.l.b16 %v1622
    %v1758 = vunpack.c.l.b16 %v1623
    %v1759 = vunpack.c.l.b16 %v1624
    %v1760 = vunpack.c.l.b16 %v1625
    %v1761 = vunpack.c.l.b16 %v1626
    %v1762 = vunpack.c.l.b16 %v1627
    %v1763 = vunpack.c.l.b16 %v1628
    %v1764 = vunpack.c.l.b16 %v1629
    %v1765 = vunpack.c.l.b16 %v1630
    %v1766 = vunpack.c.l.b16 %v1631
    %v1767 = vunpack.c.l.b16 %v1632
    %v1768 = vunpack.c.l.b16 %v1633
    %v1769 = vunpack.c.l.b16 %v1634
    %v1770 = vunpack.c.l.b16 %v1635
    %v1771 = vunpack.c.l.b16 %v1636
    %v1772 = vunpack.c.l.b16 %v1637
    %v1773 = vunpack.c.l.b16 %v1638
    %v1774 = vunpack.c.l.b16 %v1639
    %v1775 = vunpack.c.l.b16 %v1640
    %v1776 = vunpack.c.l.b16 %v1641
    %v1777 = vunpack.c.l.b16 %v1642
    %v1778 = vunpack.c.l.b16 %v1643
    %v1779 = vunpack.c.l.b16 %v1644
    %v1780 = vunpack.c.l.b16 %v1645
    %v1781 = vunpack.c.l.b16 %v1646
    %v1782 = vunpack.c.l.b16 %v1647
    %v1783 = vunpack.c.l.b16 %v1648
    %v1784 = vunpack.c.l.b16 %v1649
    %v1785 = vunpack.c.l.b16 %v1650
    %v1786 = vunpack.c.l.b16 %v1651
    %v1787 = vunpack.c.l.b16 %v1652
    %v1788 = vunpack.c.l.b16 %v1653
    %v1789 = vunpack.c.l.b16 %v1654
    %v1790 = vpack.c.b16 %v1727, %v1726
    %v1791 = vpack.c.b16 %v1729, %v1728
    %v1792 = vpack.c.b16 %v1731, %v1730
    %v1793 = vpack.c.b16 %v1733, %v1732
    %v1794 = vpack.c.b16 %v1735, %v1734
    %v1795 = vpack.c.b16 %v1737, %v1736
    %v1796 = vpack.c.b16 %v1739, %v1738
    %v1797 = vpack.c.b16 %v1741, %v1740
    %v1798 = vpack.c.b16 %v1743, %v1742
    %v1799 = vpack.c.b16 %v1745, %v1744
    %v1800 = vpack.c.b16 %v1747, %v1746
    %v1801 = vpack.c.b16 %v1749, %v1748
    %v1802 = vpack.c.b16 %v1751, %v1750
    %v1803 = vpack.c.b16 %v1753, %v1752
    %v1804 = vpack.c.b16 %v1755, %v1754
    %v1805 = vpack.c.b16 %v1757, %v1756
    %v1806 = vpack.c.b16 %v1759, %v1758
    %v1807 = vpack.c.b16 %v1761, %v1760
    %v1808 = vpack.c.b16 %v1763, %v1762
    %v1809 = vpack.c.b16 %v1765, %v1764
    %v1810 = vpack.c.b16 %v1767, %v1766
    %v1811 = vpack.c.b16 %v1769, %v1768
    %v1812 = vpack.c.b16 %v1771, %v1770
    %v1813 = vpack.c.b16 %v1773, %v1772
    %v1814 = vpack.c.b16 %v1775, %v1774
    %v1815 = vpack.c.b16 %v1777, %v1776
    %v1816 = vpack.c.b16 %v1779, %v1778
    %v1817 = vpack.c.b16 %v1781, %v1780
    %v1818 = vpack.c.b16 %v1783, %v1782
    %v1819 = vpack.c.b16 %v1785, %v1784
    %v1820 = vpack.c.b16 %v1787, %v1786
    %v1821 = vpack.c.b16 %v1789, %v1788
    %1854 = vmatprep.subr.bf16.mxu0 0
    %1855 = vmatpush1.bf16.msra.mxu0 %v1790
    %1856 = vmatprep.subr.bf16.mxu0 0
    %1857 = vmatpush1.bf16.msra.mxu0 %v1791
    %1858 = vmatprep.subr.bf16.mxu0 0
    %1859 = vmatpush1.bf16.msra.mxu0 %v1792
    %1860 = vmatprep.subr.bf16.mxu0 0
    %1861 = vmatpush1.bf16.msra.mxu0 %v1793
    %1862 = vmatprep.subr.bf16.mxu0 0
    %1863 = vmatpush1.bf16.msra.mxu0 %v1794
    %1864 = vmatprep.subr.bf16.mxu0 0
    %1865 = vmatpush1.bf16.msra.mxu0 %v1795
    %1866 = vmatprep.subr.bf16.mxu0 0
    %1867 = vmatpush1.bf16.msra.mxu0 %v1796
    %1868 = vmatprep.subr.bf16.mxu0 0
    %1869 = vmatpush1.bf16.msra.mxu0 %v1797
    %1870 = vmatprep.subr.bf16.mxu0 0
    %1871 = vmatpush1.bf16.msra.mxu0 %v1798
    %1872 = vmatprep.subr.bf16.mxu0 0
    %1873 = vmatpush1.bf16.msra.mxu0 %v1799
    %1874 = vmatprep.subr.bf16.mxu0 0
    %1875 = vmatpush1.bf16.msra.mxu0 %v1800
    %1876 = vmatprep.subr.bf16.mxu0 0
    %1877 = vmatpush1.bf16.msra.mxu0 %v1801
    %1878 = vmatprep.subr.bf16.mxu0 0
    %1879 = vmatpush1.bf16.msra.mxu0 %v1802
    %1880 = vmatprep.subr.bf16.mxu0 0
    %1881 = vmatpush1.bf16.msra.mxu0 %v1803
    %1882 = vmatprep.subr.bf16.mxu0 0
    %1883 = vmatpush1.bf16.msra.mxu0 %v1804
    %1884 = vmatprep.subr.bf16.mxu0 0
    %1885 = vmatpush1.bf16.msra.mxu0 %v1805
    %1886 = vmatprep.mubr.bf16.mxu0 %v1588
    %1887 = vmatmul.mubr.bf16.gmra.mrb[0].mxu0 %v1587
    %v1888 = vpop.f32.mrb[0].mxu0
    %v1889 = vadd.f32 %v1660, %v1888
    %v1890 = vpop.f32.mrb[0].mxu0
    %v1891 = vpop.f32.mrb[0].mxu0
    %v1892 = vpop.f32.mrb[0].mxu0
    %1893 = vdwg.mxu0
    %1894 = vmatprep.subr.bf16.mxu0 0
    %1895 = vmatpush1.bf16.msra.mxu0 %v1806
    %1896 = vmatprep.subr.bf16.mxu0 0
    %1897 = vmatpush1.bf16.msra.mxu0 %v1807
    %1898 = vmatprep.subr.bf16.mxu0 0
    %1899 = vmatpush1.bf16.msra.mxu0 %v1808
    %1900 = vmatprep.subr.bf16.mxu0 0
    %1901 = vmatpush1.bf16.msra.mxu0 %v1809
    %1902 = vmatprep.subr.bf16.mxu0 0
    %1903 = vmatpush1.bf16.msra.mxu0 %v1810
    %1904 = vmatprep.subr.bf16.mxu0 0
    %1905 = vmatpush1.bf16.msra.mxu0 %v1811
    %1906 = vmatprep.subr.bf16.mxu0 0
    %1907 = vmatpush1.bf16.msra.mxu0 %v1812
    %1908 = vmatprep.subr.bf16.mxu0 0
    %1909 = vmatpush1.bf16.msra.mxu0 %v1813
    %1910 = vmatprep.subr.bf16.mxu0 0
    %1911 = vmatpush1.bf16.msra.mxu0 %v1814
    %1912 = vmatprep.subr.bf16.mxu0 0
    %1913 = vmatpush1.bf16.msra.mxu0 %v1815
    %1914 = vmatprep.subr.bf16.mxu0 0
    %1915 = vmatpush1.bf16.msra.mxu0 %v1816
    %1916 = vmatprep.subr.bf16.mxu0 0
    %1917 = vmatpush1.bf16.msra.mxu0 %v1817
    %1918 = vmatprep.subr.bf16.mxu0 0
    %1919 = vmatpush1.bf16.msra.mxu0 %v1818
    %1920 = vmatprep.subr.bf16.mxu0 0
    %1921 = vmatpush1.bf16.msra.mxu0 %v1819
    %1922 = vmatprep.subr.bf16.mxu0 0
    %1923 = vmatpush1.bf16.msra.mxu0 %v1820
    %1924 = vmatprep.subr.bf16.mxu0 0
    %1925 = vmatpush1.bf16.msra.mxu0 %v1821
    %1926 = vmatprep.mubr.bf16.mxu0 %v1590
    %1927 = vmatmul.mubr.bf16.gmra.mrb[0].mxu0 %v1589
    %v1928 = vpop.f32.mrb[0].mxu0
    %v1929 = vadd.f32 %v1889, %v1928
    %v1930 = vpop.f32.mrb[0].mxu0
    %v1931 = vpop.f32.mrb[0].mxu0
    %v1932 = vpop.f32.mrb[0].mxu0
    %1933 = vdwg.mxu0
    %v1934 = vmul.f32 %v1929, 0.5
    %v1935 = vmul.f32 %v1934, 1.442695
    %v1936 = vpow.pop %v1935
    %v1937 = vld [vmem:[%s1] sm:$0xff]
    %1939 = vrot.lane.b32.xlu0 %v1936, 112
    %v1940 = vpop.permute.xlu0 %1939
    %v1942 = vmul.f32 %v1937, %v1940
    %v1943 = vadd.f32 %v1929, %v1942
    %v1944 = vpack.c.bf16 %v1943, %v1943
    %v1945 = vld [vmem:[%s6] sm:$0xff]
    %v1946 = vld [vmem:[%s6 + $0x8] sm:$0xff]
    %v1947 = vld [vmem:[%s6 + $0x10] sm:$0xff]
    %v1948 = vld [vmem:[%s6 + $0x18] sm:$0xff]
    %v1949 = vld [vmem:[%s7] sm:$0xf]
    %v1951 = vlaneseq
    %v1952 = vshrl.u32 %v1951, 7
    %v1953 = vsub.s32 0, %v1952
    %v1954 = vrot.slane %v1949, %v1953
    %v1955 = vlaneseq
    %v1956 = vshrl.u32 %v1955, 7
    %v1957 = vsub.s32 1, %v1956
    %v1958 = vrot.slane %v1949, %v1957
    %v1959 = vlaneseq
    %v1960 = vshrl.u32 %v1959, 7
    %v1961 = vsub.s32 2, %v1960
    %v1962 = vrot.slane %v1949, %v1961
    %v1963 = vlaneseq
    %v1964 = vshrl.u32 %v1963, 7
    %v1965 = vsub.s32 3, %v1964
    %v1966 = vrot.slane %v1949, %v1965
    %v1975 = vunpack.c.l.b16 %v1945
    %v1976 = vunpack.c.h.b16 %v1945
    %v1977 = vunpack.c.l.b16 %v1946
    %v1978 = vunpack.c.h.b16 %v1946
    %v1979 = vunpack.c.l.b16 %v1947
    %v1980 = vunpack.c.h.b16 %v1947
    %v1981 = vunpack.c.l.b16 %v1948
    %v1982 = vunpack.c.h.b16 %v1948
    %v1983 = vpack.c.b16 %v1979, %v1975
    %v1984 = vpack.c.b16 %v1980, %v1976
    %v1985 = vpack.c.b16 %v1981, %v1977
    %v1986 = vpack.c.b16 %v1982, %v1978
    %v1992 = vsel %vm1251, %v1944, 0
    %1994 = vmatprep.subr.bf16.mxu0 %v1984
    %1995 = vmatpush1.bf16.msra.mxu0 %v1983
    %1996 = vmatprep.subr.bf16.mxu0 0
    %1997 = vmatpush1.bf16.msra.mxu0 0
    %1998 = vmatprep.subr.bf16.mxu0 0
    %1999 = vmatpush1.bf16.msra.mxu0 0
    %2000 = vmatprep.subr.bf16.mxu0 0
    %2001 = vmatpush1.bf16.msra.mxu0 0
    %2002 = vmatprep.subr.bf16.mxu0 0
    %2003 = vmatpush1.bf16.msra.mxu0 0
    %2004 = vmatprep.subr.bf16.mxu0 0
    %2005 = vmatpush1.bf16.msra.mxu0 0
    %2006 = vmatprep.subr.bf16.mxu0 0
    %2007 = vmatpush1.bf16.msra.mxu0 0
    %2008 = vmatprep.subr.bf16.mxu0 0
    %2009 = vmatpush1.bf16.msra.mxu0 0
    %2010 = vmatprep.subr.bf16.mxu0 0
    %2011 = vmatpush1.bf16.msra.mxu0 0
    %2012 = vmatprep.subr.bf16.mxu0 0
    %2013 = vmatpush1.bf16.msra.mxu0 0
    %2014 = vmatprep.subr.bf16.mxu0 0
    %2015 = vmatpush1.bf16.msra.mxu0 0
    %2016 = vmatprep.subr.bf16.mxu0 0
    %2017 = vmatpush1.bf16.msra.mxu0 0
    %2018 = vmatprep.subr.bf16.mxu0 0
    %2019 = vmatpush1.bf16.msra.mxu0 0
    %2020 = vmatprep.subr.bf16.mxu0 0
    %2021 = vmatpush1.bf16.msra.mxu0 0
    %2022 = vmatprep.subr.bf16.mxu0 0
    %2023 = vmatpush1.bf16.msra.mxu0 0
    %2024 = vmatprep.subr.bf16.mxu0 0
    %2025 = vmatpush1.bf16.msra.mxu0 0
    %2026 = vmatprep.mubr.bf16.mxu0 0
    %2027 = vmatmul.mubr.bf16.gmra.mrb[0].mxu0 %v1992
    %v2028 = vpop.f32.mrb[0].mxu0
    %v2029 = vadd.f32 %v1954, %v2028
    %v2030 = vpop.f32.mrb[0].mxu0
    %v2031 = vadd.f32 %v1958, %v2030
    %v2032 = vpop.f32.mrb[0].mxu0
    %v2033 = vpop.f32.mrb[0].mxu0
    %2034 = vdwg.mxu0
    %2035 = vmatprep.subr.bf16.mxu0 %v1986
    %2036 = vmatpush1.bf16.msra.mxu0 %v1985
    %2037 = vmatprep.subr.bf16.mxu0 0
    %2038 = vmatpush1.bf16.msra.mxu0 0
    %2039 = vmatprep.subr.bf16.mxu0 0
    %2040 = vmatpush1.bf16.msra.mxu0 0
    %2041 = vmatprep.subr.bf16.mxu0 0
    %2042 = vmatpush1.bf16.msra.mxu0 0
    %2043 = vmatprep.subr.bf16.mxu0 0
    %2044 = vmatpush1.bf16.msra.mxu0 0
    %2045 = vmatprep.subr.bf16.mxu0 0
    %2046 = vmatpush1.bf16.msra.mxu0 0
    %2047 = vmatprep.subr.bf16.mxu0 0
    %2048 = vmatpush1.bf16.msra.mxu0 0
    %2049 = vmatprep.subr.bf16.mxu0 0
    %2050 = vmatpush1.bf16.msra.mxu0 0
    %2051 = vmatprep.subr.bf16.mxu0 0
    %2052 = vmatpush1.bf16.msra.mxu0 0
    %2053 = vmatprep.subr.bf16.mxu0 0
    %2054 = vmatpush1.bf16.msra.mxu0 0
    %2055 = vmatprep.subr.bf16.mxu0 0
    %2056 = vmatpush1.bf16.msra.mxu0 0
    %2057 = vmatprep.subr.bf16.mxu0 0
    %2058 = vmatpush1.bf16.msra.mxu0 0
    %2059 = vmatprep.subr.bf16.mxu0 0
    %2060 = vmatpush1.bf16.msra.mxu0 0
    %2061 = vmatprep.subr.bf16.mxu0 0
    %2062 = vmatpush1.bf16.msra.mxu0 0
    %2063 = vmatprep.subr.bf16.mxu0 0
    %2064 = vmatpush1.bf16.msra.mxu0 0
    %2065 = vmatprep.subr.bf16.mxu0 0
    %2066 = vmatpush1.bf16.msra.mxu0 0
    %2067 = vmatprep.mubr.bf16.mxu0 0
    %2068 = vmatmul.mubr.bf16.gmra.mrb[0].mxu0 %v1992
    %v2069 = vpop.f32.mrb[0].mxu0
    %v2070 = vadd.f32 %v1962, %v2069
    %v2071 = vpop.f32.mrb[0].mxu0
    %v2072 = vadd.f32 %v1966, %v2071
    %v2073 = vpop.f32.mrb[0].mxu0
    %v2074 = vpop.f32.mrb[0].mxu0
    %2075 = vdwg.mxu0
    %v2076 = vmax.f32 %v2029, 0.0
    %v2077 = vmax.f32 %v2031, 0.0
    %v2078 = vmax.f32 %v2070, 0.0
    %v2079 = vmax.f32 %v2072, 0.0
    %v2080 = vpack.c.bf16 %v2076, %v2076
    %v2081 = vpack.c.bf16 %v2077, %v2077
    %v2082 = vpack.c.bf16 %v2078, %v2078
    %v2083 = vpack.c.bf16 %v2079, %v2079
    %v2084 = vld [vmem:[%s8] sm:$0xff]
    %v2085 = vld [vmem:[%s8 + $0x8] sm:$0xff]
    %v2086 = vld [vmem:[%s8 + $0x10] sm:$0xff]
    %v2087 = vld [vmem:[%s8 + $0x18] sm:$0xf]
    %v2088 = vld [vmem:[%s8 + $0x1c] sm:$0xff]
    %v2089 = vld [vmem:[%s8 + $0x24] sm:$0xff]
    %v2090 = vld [vmem:[%s8 + $0x2c] sm:$0xff]
    %v2091 = vld [vmem:[%s8 + $0x34] sm:$0xf]
    %v2092 = vld [vmem:[%s8 + $0x38] sm:$0xff]
    %v2093 = vld [vmem:[%s8 + $0x40] sm:$0xff]
    %v2094 = vld [vmem:[%s8 + $0x48] sm:$0xff]
    %v2095 = vld [vmem:[%s8 + $0x50] sm:$0xf]
    %v2096 = vld [vmem:[%s8 + $0x54] sm:$0xff]
    %v2097 = vld [vmem:[%s8 + $0x5c] sm:$0xff]
    %v2098 = vld [vmem:[%s8 + $0x64] sm:$0xff]
    %v2099 = vld [vmem:[%s8 + $0x6c] sm:$0xf]
    %v2100 = vld [vmem:[%s8 + $0x70] sm:$0xff]
    %v2101 = vld [vmem:[%s8 + $0x78] sm:$0xff]
    %v2102 = vld [vmem:[%s8 + $0x80] sm:$0xff]
    %v2103 = vld [vmem:[%s8 + $0x88] sm:$0xf]
    %v2104 = vld [vmem:[%s8 + $0x8c] sm:$0xff]
    %v2105 = vld [vmem:[%s8 + $0x94] sm:$0xff]
    %v2106 = vld [vmem:[%s8 + $0x9c] sm:$0xff]
    %v2107 = vld [vmem:[%s8 + $0xa4] sm:$0xf]
    %v2108 = vld [vmem:[%s8 + $0xa8] sm:$0xff]
    %v2109 = vld [vmem:[%s8 + $0xb0] sm:$0xff]
    %v2110 = vld [vmem:[%s8 + $0xb8] sm:$0xff]
    %v2111 = vld [vmem:[%s8 + $0xc0] sm:$0xf]
    %v2112 = vld [vmem:[%s8 + $0xc4] sm:$0xff]
    %v2113 = vld [vmem:[%s8 + $0xcc] sm:$0xff]
    %v2114 = vld [vmem:[%s8 + $0xd4] sm:$0xff]
    %v2115 = vld [vmem:[%s8 + $0xdc] sm:$0xf]
    %v2116 = vld [vmem:[%s8 + $0xe0] sm:$0xff]
    %v2117 = vld [vmem:[%s8 + $0xe8] sm:$0xff]
    %v2118 = vld [vmem:[%s8 + $0xf0] sm:$0xff]
    %v2119 = vld [vmem:[%s8 + $0xf8] sm:$0xf]
    %v2120 = vld [vmem:[%s8 + $0xfc] sm:$0xff]
    %v2121 = vld [vmem:[%s8 + $0x104] sm:$0xff]
    %v2122 = vld [vmem:[%s8 + $0x10c] sm:$0xff]
    %v2123 = vld [vmem:[%s8 + $0x114] sm:$0xf]
    %v2124 = vld [vmem:[%s8 + $0x118] sm:$0xff]
    %v2125 = vld [vmem:[%s8 + $0x120] sm:$0xff]
    %v2126 = vld [vmem:[%s8 + $0x128] sm:$0xff]
    %v2127 = vld [vmem:[%s8 + $0x130] sm:$0xf]
    %v2128 = vld [vmem:[%s8 + $0x134] sm:$0xff]
    %v2129 = vld [vmem:[%s8 + $0x13c] sm:$0xff]
    %v2130 = vld [vmem:[%s8 + $0x144] sm:$0xff]
    %v2131 = vld [vmem:[%s8 + $0x14c] sm:$0xf]
    %v2132 = vld [vmem:[%s8 + $0x150] sm:$0xff]
    %v2133 = vld [vmem:[%s8 + $0x158] sm:$0xff]
    %v2134 = vld [vmem:[%s8 + $0x160] sm:$0xff]
    %v2135 = vld [vmem:[%s8 + $0x168] sm:$0xf]
    %v2136 = vld [vmem:[%s8 + $0x16c] sm:$0xff]
    %v2137 = vld [vmem:[%s8 + $0x174] sm:$0xff]
    %v2138 = vld [vmem:[%s8 + $0x17c] sm:$0xff]
    %v2139 = vld [vmem:[%s8 + $0x184] sm:$0xf]
    %v2140 = vld [vmem:[%s8 + $0x188] sm:$0xff]
    %v2141 = vld [vmem:[%s8 + $0x190] sm:$0xff]
    %v2142 = vld [vmem:[%s8 + $0x198] sm:$0xff]
    %v2143 = vld [vmem:[%s8 + $0x1a0] sm:$0xf]
    %v2144 = vld [vmem:[%s8 + $0x1a4] sm:$0xff]
    %v2145 = vld [vmem:[%s8 + $0x1ac] sm:$0xff]
    %v2146 = vld [vmem:[%s8 + $0x1b4] sm:$0xff]
    %v2147 = vld [vmem:[%s8 + $0x1bc] sm:$0xf]
    %v2148 = vld [vmem:[%s8 + $0x1c0] sm:$0xff]
    %v2149 = vld [vmem:[%s8 + $0x1c8] sm:$0xff]
    %v2150 = vld [vmem:[%s8 + $0x1d0] sm:$0xff]
    %v2151 = vld [vmem:[%s8 + $0x1d8] sm:$0xf]
    %v2152 = vld [vmem:[%s8 + $0x1dc] sm:$0xff]
    %v2153 = vld [vmem:[%s8 + $0x1e4] sm:$0xff]
    %v2154 = vld [vmem:[%s8 + $0x1ec] sm:$0xff]
    %v2155 = vld [vmem:[%s8 + $0x1f4] sm:$0xf]
    %v2156 = vld [vmem:[%s8 + $0x1f8] sm:$0xff]
    %v2157 = vld [vmem:[%s8 + $0x200] sm:$0xff]
    %v2158 = vld [vmem:[%s8 + $0x208] sm:$0xff]
    %v2159 = vld [vmem:[%s8 + $0x210] sm:$0xf]
    %v2160 = vld [vmem:[%s8 + $0x214] sm:$0xff]
    %v2161 = vld [vmem:[%s8 + $0x21c] sm:$0xff]
    %v2162 = vld [vmem:[%s8 + $0x224] sm:$0xff]
    %v2163 = vld [vmem:[%s8 + $0x22c] sm:$0xf]
    %v2164 = vld [vmem:[%s8 + $0x230] sm:$0xff]
    %v2165 = vld [vmem:[%s8 + $0x238] sm:$0xff]
    %v2166 = vld [vmem:[%s8 + $0x240] sm:$0xff]
    %v2167 = vld [vmem:[%s8 + $0x248] sm:$0xf]
    %v2168 = vld [vmem:[%s8 + $0x24c] sm:$0xff]
    %v2169 = vld [vmem:[%s8 + $0x254] sm:$0xff]
    %v2170 = vld [vmem:[%s8 + $0x25c] sm:$0xff]
    %v2171 = vld [vmem:[%s8 + $0x264] sm:$0xf]
    %v2172 = vld [vmem:[%s8 + $0x268] sm:$0xff]
    %v2173 = vld [vmem:[%s8 + $0x270] sm:$0xff]
    %v2174 = vld [vmem:[%s8 + $0x278] sm:$0xff]
    %v2175 = vld [vmem:[%s8 + $0x280] sm:$0xf]
    %v2176 = vld [vmem:[%s8 + $0x284] sm:$0xff]
    %v2177 = vld [vmem:[%s8 + $0x28c] sm:$0xff]
    %v2178 = vld [vmem:[%s8 + $0x294] sm:$0xff]
    %v2179 = vld [vmem:[%s8 + $0x29c] sm:$0xf]
    %v2180 = vld [vmem:[%s8 + $0x2a0] sm:$0xff]
    %v2181 = vld [vmem:[%s8 + $0x2a8] sm:$0xff]
    %v2182 = vld [vmem:[%s8 + $0x2b0] sm:$0xff]
    %v2183 = vld [vmem:[%s8 + $0x2b8] sm:$0xf]
    %v2184 = vld [vmem:[%s8 + $0x2bc] sm:$0xff]
    %v2185 = vld [vmem:[%s8 + $0x2c4] sm:$0xff]
    %v2186 = vld [vmem:[%s8 + $0x2cc] sm:$0xff]
    %v2187 = vld [vmem:[%s8 + $0x2d4] sm:$0xf]
    %v2188 = vld [vmem:[%s8 + $0x2d8] sm:$0xff]
    %v2189 = vld [vmem:[%s8 + $0x2e0] sm:$0xff]
    %v2190 = vld [vmem:[%s8 + $0x2e8] sm:$0xff]
    %v2191 = vld [vmem:[%s8 + $0x2f0] sm:$0xf]
    %v2192 = vld [vmem:[%s8 + $0x2f4] sm:$0xff]
    %v2193 = vld [vmem:[%s8 + $0x2fc] sm:$0xff]
    %v2194 = vld [vmem:[%s8 + $0x304] sm:$0xff]
    %v2195 = vld [vmem:[%s8 + $0x30c] sm:$0xf]
    %v2196 = vld [vmem:[%s8 + $0x310] sm:$0xff]
    %v2197 = vld [vmem:[%s8 + $0x318] sm:$0xff]
    %v2198 = vld [vmem:[%s8 + $0x320] sm:$0xff]
    %v2199 = vld [vmem:[%s8 + $0x328] sm:$0xf]
    %v2200 = vld [vmem:[%s8 + $0x32c] sm:$0xff]
    %v2201 = vld [vmem:[%s8 + $0x334] sm:$0xff]
    %v2202 = vld [vmem:[%s8 + $0x33c] sm:$0xff]
    %v2203 = vld [vmem:[%s8 + $0x344] sm:$0xf]
    %v2204 = vld [vmem:[%s8 + $0x348] sm:$0xff]
    %v2205 = vld [vmem:[%s8 + $0x350] sm:$0xff]
    %v2206 = vld [vmem:[%s8 + $0x358] sm:$0xff]
    %v2207 = vld [vmem:[%s8 + $0x360] sm:$0xf]
    %v2208 = vld [vmem:[%s8 + $0x364] sm:$0xff]
    %v2209 = vld [vmem:[%s8 + $0x36c] sm:$0xff]
    %v2210 = vld [vmem:[%s8 + $0x374] sm:$0xff]
    %v2211 = vld [vmem:[%s8 + $0x37c] sm:$0xf]
    %v2212 = vld [vmem:[%s8 + $0x380] sm:$0xff]
    %v2213 = vld [vmem:[%s8 + $0x388] sm:$0xff]
    %v2214 = vld [vmem:[%s8 + $0x390] sm:$0xff]
    %v2215 = vld [vmem:[%s8 + $0x398] sm:$0xf]
    %v2216 = vld [vmem:[%s8 + $0x39c] sm:$0xff]
    %v2217 = vld [vmem:[%s8 + $0x3a4] sm:$0xff]
    %v2218 = vld [vmem:[%s8 + $0x3ac] sm:$0xff]
    %v2219 = vld [vmem:[%s8 + $0x3b4] sm:$0xf]
    %v2220 = vld [vmem:[%s8 + $0x3b8] sm:$0xff]
    %v2221 = vld [vmem:[%s8 + $0x3c0] sm:$0xff]
    %v2222 = vld [vmem:[%s8 + $0x3c8] sm:$0xff]
    %v2223 = vld [vmem:[%s8 + $0x3d0] sm:$0xf]
    %v2224 = vld [vmem:[%s8 + $0x3d4] sm:$0xff]
    %v2225 = vld [vmem:[%s8 + $0x3dc] sm:$0xff]
    %v2226 = vld [vmem:[%s8 + $0x3e4] sm:$0xff]
    %v2227 = vld [vmem:[%s8 + $0x3ec] sm:$0xf]
    %v2228 = vld [vmem:[%s8 + $0x3f0] sm:$0xff]
    %v2229 = vld [vmem:[%s8 + $0x3f8] sm:$0xff]
    %v2230 = vld [vmem:[%s8 + $0x400] sm:$0xff]
    %v2231 = vld [vmem:[%s8 + $0x408] sm:$0xf]
    %v2232 = vld [vmem:[%s8 + $0x40c] sm:$0xff]
    %v2233 = vld [vmem:[%s8 + $0x414] sm:$0xff]
    %v2234 = vld [vmem:[%s8 + $0x41c] sm:$0xff]
    %v2235 = vld [vmem:[%s8 + $0x424] sm:$0xf]
    %v2236 = vld [vmem:[%s8 + $0x428] sm:$0xff]
    %v2237 = vld [vmem:[%s8 + $0x430] sm:$0xff]
    %v2238 = vld [vmem:[%s8 + $0x438] sm:$0xff]
    %v2239 = vld [vmem:[%s8 + $0x440] sm:$0xf]
    %v2240 = vld [vmem:[%s8 + $0x444] sm:$0xff]
    %v2241 = vld [vmem:[%s8 + $0x44c] sm:$0xff]
    %v2242 = vld [vmem:[%s8 + $0x454] sm:$0xff]
    %v2243 = vld [vmem:[%s8 + $0x45c] sm:$0xf]
    %v2244 = vld [vmem:[%s8 + $0x460] sm:$0xff]
    %v2245 = vld [vmem:[%s8 + $0x468] sm:$0xff]
    %v2246 = vld [vmem:[%s8 + $0x470] sm:$0xff]
    %v2247 = vld [vmem:[%s8 + $0x478] sm:$0xf]
    %v2248 = vld [vmem:[%s8 + $0x47c] sm:$0xff]
    %v2249 = vld [vmem:[%s8 + $0x484] sm:$0xff]
    %v2250 = vld [vmem:[%s8 + $0x48c] sm:$0xff]
    %v2251 = vld [vmem:[%s8 + $0x494] sm:$0xf]
    %v2252 = vld [vmem:[%s8 + $0x498] sm:$0xff]
    %v2253 = vld [vmem:[%s8 + $0x4a0] sm:$0xff]
    %v2254 = vld [vmem:[%s8 + $0x4a8] sm:$0xff]
    %v2255 = vld [vmem:[%s8 + $0x4b0] sm:$0xf]
    %v2256 = vld [vmem:[%s8 + $0x4b4] sm:$0xff]
    %v2257 = vld [vmem:[%s8 + $0x4bc] sm:$0xff]
    %v2258 = vld [vmem:[%s8 + $0x4c4] sm:$0xff]
    %v2259 = vld [vmem:[%s8 + $0x4cc] sm:$0xf]
    %v2260 = vld [vmem:[%s8 + $0x4d0] sm:$0xff]
    %v2261 = vld [vmem:[%s8 + $0x4d8] sm:$0xff]
    %v2262 = vld [vmem:[%s8 + $0x4e0] sm:$0xff]
    %v2263 = vld [vmem:[%s8 + $0x4e8] sm:$0xf]
    %v2264 = vld [vmem:[%s8 + $0x4ec] sm:$0xff]
    %v2265 = vld [vmem:[%s8 + $0x4f4] sm:$0xff]
    %v2266 = vld [vmem:[%s8 + $0x4fc] sm:$0xff]
    %v2267 = vld [vmem:[%s8 + $0x504] sm:$0xf]
    %v2268 = vld [vmem:[%s8 + $0x508] sm:$0xff]
    %v2269 = vld [vmem:[%s8 + $0x510] sm:$0xff]
    %v2270 = vld [vmem:[%s8 + $0x518] sm:$0xff]
    %v2271 = vld [vmem:[%s8 + $0x520] sm:$0xf]
    %v2272 = vld [vmem:[%s8 + $0x524] sm:$0xff]
    %v2273 = vld [vmem:[%s8 + $0x52c] sm:$0xff]
    %v2274 = vld [vmem:[%s8 + $0x534] sm:$0xff]
    %v2275 = vld [vmem:[%s8 + $0x53c] sm:$0xf]
    %v2276 = vld [vmem:[%s8 + $0x540] sm:$0xff]
    %v2277 = vld [vmem:[%s8 + $0x548] sm:$0xff]
    %v2278 = vld [vmem:[%s8 + $0x550] sm:$0xff]
    %v2279 = vld [vmem:[%s8 + $0x558] sm:$0xf]
    %v2280 = vld [vmem:[%s8 + $0x55c] sm:$0xff]
    %v2281 = vld [vmem:[%s8 + $0x564] sm:$0xff]
    %v2282 = vld [vmem:[%s8 + $0x56c] sm:$0xff]
    %v2283 = vld [vmem:[%s8 + $0x574] sm:$0xf]
    %v2284 = vld [vmem:[%s8 + $0x578] sm:$0xff]
    %v2285 = vld [vmem:[%s8 + $0x580] sm:$0xff]
    %v2286 = vld [vmem:[%s8 + $0x588] sm:$0xff]
    %v2287 = vld [vmem:[%s8 + $0x590] sm:$0xf]
    %v2288 = vld [vmem:[%s8 + $0x594] sm:$0xff]
    %v2289 = vld [vmem:[%s8 + $0x59c] sm:$0xff]
    %v2290 = vld [vmem:[%s8 + $0x5a4] sm:$0xff]
    %v2291 = vld [vmem:[%s8 + $0x5ac] sm:$0xf]
    %v2292 = vld [vmem:[%s8 + $0x5b0] sm:$0xff]
    %v2293 = vld [vmem:[%s8 + $0x5b8] sm:$0xff]
    %v2294 = vld [vmem:[%s8 + $0x5c0] sm:$0xff]
    %v2295 = vld [vmem:[%s8 + $0x5c8] sm:$0xf]
    %v2296 = vld [vmem:[%s8 + $0x5cc] sm:$0xff]
    %v2297 = vld [vmem:[%s8 + $0x5d4] sm:$0xff]
    %v2298 = vld [vmem:[%s8 + $0x5dc] sm:$0xff]
    %v2299 = vld [vmem:[%s8 + $0x5e4] sm:$0xf]
    %v2300 = vld [vmem:[%s8 + $0x5e8] sm:$0xff]
    %v2301 = vld [vmem:[%s8 + $0x5f0] sm:$0xff]
    %v2302 = vld [vmem:[%s8 + $0x5f8] sm:$0xff]
    %v2303 = vld [vmem:[%s8 + $0x600] sm:$0xf]
    %v2304 = vld [vmem:[%s8 + $0x604] sm:$0xff]
    %v2305 = vld [vmem:[%s8 + $0x60c] sm:$0xff]
    %v2306 = vld [vmem:[%s8 + $0x614] sm:$0xff]
    %v2307 = vld [vmem:[%s8 + $0x61c] sm:$0xf]
    %v2308 = vld [vmem:[%s8 + $0x620] sm:$0xff]
    %v2309 = vld [vmem:[%s8 + $0x628] sm:$0xff]
    %v2310 = vld [vmem:[%s8 + $0x630] sm:$0xff]
    %v2311 = vld [vmem:[%s8 + $0x638] sm:$0xf]
    %v2312 = vld [vmem:[%s8 + $0x63c] sm:$0xff]
    %v2313 = vld [vmem:[%s8 + $0x644] sm:$0xff]
    %v2314 = vld [vmem:[%s8 + $0x64c] sm:$0xff]
    %v2315 = vld [vmem:[%s8 + $0x654] sm:$0xf]
    %v2316 = vld [vmem:[%s8 + $0x658] sm:$0xff]
    %v2317 = vld [vmem:[%s8 + $0x660] sm:$0xff]
    %v2318 = vld [vmem:[%s8 + $0x668] sm:$0xff]
    %v2319 = vld [vmem:[%s8 + $0x670] sm:$0xf]
    %v2320 = vld [vmem:[%s8 + $0x674] sm:$0xff]
    %v2321 = vld [vmem:[%s8 + $0x67c] sm:$0xff]
    %v2322 = vld [vmem:[%s8 + $0x684] sm:$0xff]
    %v2323 = vld [vmem:[%s8 + $0x68c] sm:$0xf]
    %v2324 = vld [vmem:[%s8 + $0x690] sm:$0xff]
    %v2325 = vld [vmem:[%s8 + $0x698] sm:$0xff]
    %v2326 = vld [vmem:[%s8 + $0x6a0] sm:$0xff]
    %v2327 = vld [vmem:[%s8 + $0x6a8] sm:$0xf]
    %v2328 = vld [vmem:[%s8 + $0x6ac] sm:$0xff]
    %v2329 = vld [vmem:[%s8 + $0x6b4] sm:$0xff]
    %v2330 = vld [vmem:[%s8 + $0x6bc] sm:$0xff]
    %v2331 = vld [vmem:[%s8 + $0x6c4] sm:$0xf]
    %v2332 = vld [vmem:[%s8 + $0x6c8] sm:$0xff]
    %v2333 = vld [vmem:[%s8 + $0x6d0] sm:$0xff]
    %v2334 = vld [vmem:[%s8 + $0x6d8] sm:$0xff]
    %v2335 = vld [vmem:[%s8 + $0x6e0] sm:$0xf]
    %v2336 = vld [vmem:[%s8 + $0x6e4] sm:$0xff]
    %v2337 = vld [vmem:[%s8 + $0x6ec] sm:$0xff]
    %v2338 = vld [vmem:[%s8 + $0x6f4] sm:$0xff]
    %v2339 = vld [vmem:[%s8 + $0x6fc] sm:$0xf]
    %v2340 = vld [vmem:[%s9] sm:$0x7f]
    %v2342 = vlaneseq
    %v2343 = vshrl.u32 %v2342, 7
    %v2344 = vsub.s32 0, %v2343
    %v2345 = vrot.slane %v2340, %v2344
    %v2346 = vlaneseq
    %v2347 = vshrl.u32 %v2346, 7
    %v2348 = vsub.s32 1, %v2347
    %v2349 = vrot.slane %v2340, %v2348
    %v2350 = vlaneseq
    %v2351 = vshrl.u32 %v2350, 7
    %v2352 = vsub.s32 2, %v2351
    %v2353 = vrot.slane %v2340, %v2352
    %v2354 = vlaneseq
    %v2355 = vshrl.u32 %v2354, 7
    %v2356 = vsub.s32 3, %v2355
    %v2357 = vrot.slane %v2340, %v2356
    %v2358 = vlaneseq
    %v2359 = vshrl.u32 %v2358, 7
    %v2360 = vsub.s32 4, %v2359
    %v2361 = vrot.slane %v2340, %v2360
    %v2362 = vlaneseq
    %v2363 = vshrl.u32 %v2362, 7
    %v2364 = vsub.s32 5, %v2363
    %v2365 = vrot.slane %v2340, %v2364
    %v2366 = vlaneseq
    %v2367 = vshrl.u32 %v2366, 7
    %v2368 = vsub.s32 6, %v2367
    %v2369 = vrot.slane %v2340, %v2368
    %v2633 = vunpack.c.l.b16 %v2084
    %v2634 = vunpack.c.h.b16 %v2084
    %v2635 = vunpack.c.l.b16 %v2085
    %v2636 = vunpack.c.h.b16 %v2085
    %v2637 = vunpack.c.l.b16 %v2086
    %v2638 = vunpack.c.h.b16 %v2086
    %v2639 = vunpack.c.l.b16 %v2087
    %v2640 = vunpack.c.l.b16 %v2088
    %v2641 = vunpack.c.h.b16 %v2088
    %v2642 = vunpack.c.l.b16 %v2089
    %v2643 = vunpack.c.h.b16 %v2089
    %v2644 = vunpack.c.l.b16 %v2090
    %v2645 = vunpack.c.h.b16 %v2090
    %v2646 = vunpack.c.l.b16 %v2091
    %v2647 = vunpack.c.l.b16 %v2092
    %v2648 = vunpack.c.h.b16 %v2092
    %v2649 = vunpack.c.l.b16 %v2093
    %v2650 = vunpack.c.h.b16 %v2093
    %v2651 = vunpack.c.l.b16 %v2094
    %v2652 = vunpack.c.h.b16 %v2094
    %v2653 = vunpack.c.l.b16 %v2095
    %v2654 = vunpack.c.l.b16 %v2096
    %v2655 = vunpack.c.h.b16 %v2096
    %v2656 = vunpack.c.l.b16 %v2097
    %v2657 = vunpack.c.h.b16 %v2097
    %v2658 = vunpack.c.l.b16 %v2098
    %v2659 = vunpack.c.h.b16 %v2098
    %v2660 = vunpack.c.l.b16 %v2099
    %v2661 = vunpack.c.l.b16 %v2100
    %v2662 = vunpack.c.h.b16 %v2100
    %v2663 = vunpack.c.l.b16 %v2101
    %v2664 = vunpack.c.h.b16 %v2101
    %v2665 = vunpack.c.l.b16 %v2102
    %v2666 = vunpack.c.h.b16 %v2102
    %v2667 = vunpack.c.l.b16 %v2103
    %v2668 = vunpack.c.l.b16 %v2104
    %v2669 = vunpack.c.h.b16 %v2104
    %v2670 = vunpack.c.l.b16 %v2105
    %v2671 = vunpack.c.h.b16 %v2105
    %v2672 = vunpack.c.l.b16 %v2106
    %v2673 = vunpack.c.h.b16 %v2106
    %v2674 = vunpack.c.l.b16 %v2107
    %v2675 = vunpack.c.l.b16 %v2108
    %v2676 = vunpack.c.h.b16 %v2108
    %v2677 = vunpack.c.l.b16 %v2109
    %v2678 = vunpack.c.h.b16 %v2109
    %v2679 = vunpack.c.l.b16 %v2110
    %v2680 = vunpack.c.h.b16 %v2110
    %v2681 = vunpack.c.l.b16 %v2111
    %v2682 = vunpack.c.l.b16 %v2112
    %v2683 = vunpack.c.h.b16 %v2112
    %v2684 = vunpack.c.l.b16 %v2113
    %v2685 = vunpack.c.h.b16 %v2113
    %v2686 = vunpack.c.l.b16 %v2114
    %v2687 = vunpack.c.h.b16 %v2114
    %v2688 = vunpack.c.l.b16 %v2115
    %v2689 = vunpack.c.l.b16 %v2116
    %v2690 = vunpack.c.h.b16 %v2116
    %v2691 = vunpack.c.l.b16 %v2117
    %v2692 = vunpack.c.h.b16 %v2117
    %v2693 = vunpack.c.l.b16 %v2118
    %v2694 = vunpack.c.h.b16 %v2118
    %v2695 = vunpack.c.l.b16 %v2119
    %v2696 = vunpack.c.l.b16 %v2120
    %v2697 = vunpack.c.h.b16 %v2120
    %v2698 = vunpack.c.l.b16 %v2121
    %v2699 = vunpack.c.h.b16 %v2121
    %v2700 = vunpack.c.l.b16 %v2122
    %v2701 = vunpack.c.h.b16 %v2122
    %v2702 = vunpack.c.l.b16 %v2123
    %v2703 = vunpack.c.l.b16 %v2124
    %v2704 = vunpack.c.h.b16 %v2124
    %v2705 = vunpack.c.l.b16 %v2125
    %v2706 = vunpack.c.h.b16 %v2125
    %v2707 = vunpack.c.l.b16 %v2126
    %v2708 = vunpack.c.h.b16 %v2126
    %v2709 = vunpack.c.l.b16 %v2127
    %v2710 = vunpack.c.l.b16 %v2128
    %v2711 = vunpack.c.h.b16 %v2128
    %v2712 = vunpack.c.l.b16 %v2129
    %v2713 = vunpack.c.h.b16 %v2129
    %v2714 = vunpack.c.l.b16 %v2130
    %v2715 = vunpack.c.h.b16 %v2130
    %v2716 = vunpack.c.l.b16 %v2131
    %v2717 = vunpack.c.l.b16 %v2132
    %v2718 = vunpack.c.h.b16 %v2132
    %v2719 = vunpack.c.l.b16 %v2133
    %v2720 = vunpack.c.h.b16 %v2133
    %v2721 = vunpack.c.l.b16 %v2134
    %v2722 = vunpack.c.h.b16 %v2134
    %v2723 = vunpack.c.l.b16 %v2135
    %v2724 = vunpack.c.l.b16 %v2136
    %v2725 = vunpack.c.h.b16 %v2136
    %v2726 = vunpack.c.l.b16 %v2137
    %v2727 = vunpack.c.h.b16 %v2137
    %v2728 = vunpack.c.l.b16 %v2138
    %v2729 = vunpack.c.h.b16 %v2138
    %v2730 = vunpack.c.l.b16 %v2139
    %v2731 = vunpack.c.l.b16 %v2140
    %v2732 = vunpack.c.h.b16 %v2140
    %v2733 = vunpack.c.l.b16 %v2141
    %v2734 = vunpack.c.h.b16 %v2141
    %v2735 = vunpack.c.l.b16 %v2142
    %v2736 = vunpack.c.h.b16 %v2142
    %v2737 = vunpack.c.l.b16 %v2143
    %v2738 = vunpack.c.l.b16 %v2144
    %v2739 = vunpack.c.h.b16 %v2144
    %v2740 = vunpack.c.l.b16 %v2145
    %v2741 = vunpack.c.h.b16 %v2145
    %v2742 = vunpack.c.l.b16 %v2146
    %v2743 = vunpack.c.h.b16 %v2146
    %v2744 = vunpack.c.l.b16 %v2147
    %v2745 = vunpack.c.l.b16 %v2148
    %v2746 = vunpack.c.h.b16 %v2148
    %v2747 = vunpack.c.l.b16 %v2149
    %v2748 = vunpack.c.h.b16 %v2149
    %v2749 = vunpack.c.l.b16 %v2150
    %v2750 = vunpack.c.h.b16 %v2150
    %v2751 = vunpack.c.l.b16 %v2151
    %v2752 = vunpack.c.l.b16 %v2152
    %v2753 = vunpack.c.h.b16 %v2152
    %v2754 = vunpack.c.l.b16 %v2153
    %v2755 = vunpack.c.h.b16 %v2153
    %v2756 = vunpack.c.l.b16 %v2154
    %v2757 = vunpack.c.h.b16 %v2154
    %v2758 = vunpack.c.l.b16 %v2155
    %v2759 = vunpack.c.l.b16 %v2156
    %v2760 = vunpack.c.h.b16 %v2156
    %v2761 = vunpack.c.l.b16 %v2157
    %v2762 = vunpack.c.h.b16 %v2157
    %v2763 = vunpack.c.l.b16 %v2158
    %v2764 = vunpack.c.h.b16 %v2158
    %v2765 = vunpack.c.l.b16 %v2159
    %v2766 = vunpack.c.l.b16 %v2160
    %v2767 = vunpack.c.h.b16 %v2160
    %v2768 = vunpack.c.l.b16 %v2161
    %v2769 = vunpack.c.h.b16 %v2161
    %v2770 = vunpack.c.l.b16 %v2162
    %v2771 = vunpack.c.h.b16 %v2162
    %v2772 = vunpack.c.l.b16 %v2163
    %v2773 = vunpack.c.l.b16 %v2164
    %v2774 = vunpack.c.h.b16 %v2164
    %v2775 = vunpack.c.l.b16 %v2165
    %v2776 = vunpack.c.h.b16 %v2165
    %v2777 = vunpack.c.l.b16 %v2166
    %v2778 = vunpack.c.h.b16 %v2166
    %v2779 = vunpack.c.l.b16 %v2167
    %v2780 = vunpack.c.l.b16 %v2168
    %v2781 = vunpack.c.h.b16 %v2168
    %v2782 = vunpack.c.l.b16 %v2169
    %v2783 = vunpack.c.h.b16 %v2169
    %v2784 = vunpack.c.l.b16 %v2170
    %v2785 = vunpack.c.h.b16 %v2170
    %v2786 = vunpack.c.l.b16 %v2171
    %v2787 = vunpack.c.l.b16 %v2172
    %v2788 = vunpack.c.h.b16 %v2172
    %v2789 = vunpack.c.l.b16 %v2173
    %v2790 = vunpack.c.h.b16 %v2173
    %v2791 = vunpack.c.l.b16 %v2174
    %v2792 = vunpack.c.h.b16 %v2174
    %v2793 = vunpack.c.l.b16 %v2175
    %v2794 = vunpack.c.l.b16 %v2176
    %v2795 = vunpack.c.h.b16 %v2176
    %v2796 = vunpack.c.l.b16 %v2177
    %v2797 = vunpack.c.h.b16 %v2177
    %v2798 = vunpack.c.l.b16 %v2178
    %v2799 = vunpack.c.h.b16 %v2178
    %v2800 = vunpack.c.l.b16 %v2179
    %v2801 = vunpack.c.l.b16 %v2180
    %v2802 = vunpack.c.h.b16 %v2180
    %v2803 = vunpack.c.l.b16 %v2181
    %v2804 = vunpack.c.h.b16 %v2181
    %v2805 = vunpack.c.l.b16 %v2182
    %v2806 = vunpack.c.h.b16 %v2182
    %v2807 = vunpack.c.l.b16 %v2183
    %v2808 = vunpack.c.l.b16 %v2184
    %v2809 = vunpack.c.h.b16 %v2184
    %v2810 = vunpack.c.l.b16 %v2185
    %v2811 = vunpack.c.h.b16 %v2185
    %v2812 = vunpack.c.l.b16 %v2186
    %v2813 = vunpack.c.h.b16 %v2186
    %v2814 = vunpack.c.l.b16 %v2187
    %v2815 = vunpack.c.l.b16 %v2188
    %v2816 = vunpack.c.h.b16 %v2188
    %v2817 = vunpack.c.l.b16 %v2189
    %v2818 = vunpack.c.h.b16 %v2189
    %v2819 = vunpack.c.l.b16 %v2190
    %v2820 = vunpack.c.h.b16 %v2190
    %v2821 = vunpack.c.l.b16 %v2191
    %v2822 = vunpack.c.l.b16 %v2192
    %v2823 = vunpack.c.h.b16 %v2192
    %v2824 = vunpack.c.l.b16 %v2193
    %v2825 = vunpack.c.h.b16 %v2193
    %v2826 = vunpack.c.l.b16 %v2194
    %v2827 = vunpack.c.h.b16 %v2194
    %v2828 = vunpack.c.l.b16 %v2195
    %v2829 = vunpack.c.l.b16 %v2196
    %v2830 = vunpack.c.h.b16 %v2196
    %v2831 = vunpack.c.l.b16 %v2197
    %v2832 = vunpack.c.h.b16 %v2197
    %v2833 = vunpack.c.l.b16 %v2198
    %v2834 = vunpack.c.h.b16 %v2198
    %v2835 = vunpack.c.l.b16 %v2199
    %v2836 = vunpack.c.l.b16 %v2200
    %v2837 = vunpack.c.h.b16 %v2200
    %v2838 = vunpack.c.l.b16 %v2201
    %v2839 = vunpack.c.h.b16 %v2201
    %v2840 = vunpack.c.l.b16 %v2202
    %v2841 = vunpack.c.h.b16 %v2202
    %v2842 = vunpack.c.l.b16 %v2203
    %v2843 = vunpack.c.l.b16 %v2204
    %v2844 = vunpack.c.h.b16 %v2204
    %v2845 = vunpack.c.l.b16 %v2205
    %v2846 = vunpack.c.h.b16 %v2205
    %v2847 = vunpack.c.l.b16 %v2206
    %v2848 = vunpack.c.h.b16 %v2206
    %v2849 = vunpack.c.l.b16 %v2207
    %v2850 = vunpack.c.l.b16 %v2208
    %v2851 = vunpack.c.h.b16 %v2208
    %v2852 = vunpack.c.l.b16 %v2209
    %v2853 = vunpack.c.h.b16 %v2209
    %v2854 = vunpack.c.l.b16 %v2210
    %v2855 = vunpack.c.h.b16 %v2210
    %v2856 = vunpack.c.l.b16 %v2211
    %v2857 = vunpack.c.l.b16 %v2212
    %v2858 = vunpack.c.h.b16 %v2212
    %v2859 = vunpack.c.l.b16 %v2213
    %v2860 = vunpack.c.h.b16 %v2213
    %v2861 = vunpack.c.l.b16 %v2214
    %v2862 = vunpack.c.h.b16 %v2214
    %v2863 = vunpack.c.l.b16 %v2215
    %v2864 = vunpack.c.l.b16 %v2216
    %v2865 = vunpack.c.h.b16 %v2216
    %v2866 = vunpack.c.l.b16 %v2217
    %v2867 = vunpack.c.h.b16 %v2217
    %v2868 = vunpack.c.l.b16 %v2218
    %v2869 = vunpack.c.h.b16 %v2218
    %v2870 = vunpack.c.l.b16 %v2219
    %v2871 = vunpack.c.l.b16 %v2220
    %v2872 = vunpack.c.h.b16 %v2220
    %v2873 = vunpack.c.l.b16 %v2221
    %v2874 = vunpack.c.h.b16 %v2221
    %v2875 = vunpack.c.l.b16 %v2222
    %v2876 = vunpack.c.h.b16 %v2222
    %v2877 = vunpack.c.l.b16 %v2223
    %v2878 = vunpack.c.l.b16 %v2224
    %v2879 = vunpack.c.h.b16 %v2224
    %v2880 = vunpack.c.l.b16 %v2225
    %v2881 = vunpack.c.h.b16 %v2225
    %v2882 = vunpack.c.l.b16 %v2226
    %v2883 = vunpack.c.h.b16 %v2226
    %v2884 = vunpack.c.l.b16 %v2227
    %v2885 = vunpack.c.l.b16 %v2228
    %v2886 = vunpack.c.h.b16 %v2228
    %v2887 = vunpack.c.l.b16 %v2229
    %v2888 = vunpack.c.h.b16 %v2229
    %v2889 = vunpack.c.l.b16 %v2230
    %v2890 = vunpack.c.h.b16 %v2230
    %v2891 = vunpack.c.l.b16 %v2231
    %v2892 = vunpack.c.l.b16 %v2232
    %v2893 = vunpack.c.h.b16 %v2232
    %v2894 = vunpack.c.l.b16 %v2233
    %v2895 = vunpack.c.h.b16 %v2233
    %v2896 = vunpack.c.l.b16 %v2234
    %v2897 = vunpack.c.h.b16 %v2234
    %v2898 = vunpack.c.l.b16 %v2235
    %v2899 = vunpack.c.l.b16 %v2236
    %v2900 = vunpack.c.h.b16 %v2236
    %v2901 = vunpack.c.l.b16 %v2237
    %v2902 = vunpack.c.h.b16 %v2237
    %v2903 = vunpack.c.l.b16 %v2238
    %v2904 = vunpack.c.h.b16 %v2238
    %v2905 = vunpack.c.l.b16 %v2239
    %v2906 = vunpack.c.l.b16 %v2240
    %v2907 = vunpack.c.h.b16 %v2240
    %v2908 = vunpack.c.l.b16 %v2241
    %v2909 = vunpack.c.h.b16 %v2241
    %v2910 = vunpack.c.l.b16 %v2242
    %v2911 = vunpack.c.h.b16 %v2242
    %v2912 = vunpack.c.l.b16 %v2243
    %v2913 = vunpack.c.l.b16 %v2244
    %v2914 = vunpack.c.h.b16 %v2244
    %v2915 = vunpack.c.l.b16 %v2245
    %v2916 = vunpack.c.h.b16 %v2245
    %v2917 = vunpack.c.l.b16 %v2246
    %v2918 = vunpack.c.h.b16 %v2246
    %v2919 = vunpack.c.l.b16 %v2247
    %v2920 = vunpack.c.l.b16 %v2248
    %v2921 = vunpack.c.h.b16 %v2248
    %v2922 = vunpack.c.l.b16 %v2249
    %v2923 = vunpack.c.h.b16 %v2249
    %v2924 = vunpack.c.l.b16 %v2250
    %v2925 = vunpack.c.h.b16 %v2250
    %v2926 = vunpack.c.l.b16 %v2251
    %v2927 = vunpack.c.l.b16 %v2252
    %v2928 = vunpack.c.h.b16 %v2252
    %v2929 = vunpack.c.l.b16 %v2253
    %v2930 = vunpack.c.h.b16 %v2253
    %v2931 = vunpack.c.l.b16 %v2254
    %v2932 = vunpack.c.h.b16 %v2254
    %v2933 = vunpack.c.l.b16 %v2255
    %v2934 = vunpack.c.l.b16 %v2256
    %v2935 = vunpack.c.h.b16 %v2256
    %v2936 = vunpack.c.l.b16 %v2257
    %v2937 = vunpack.c.h.b16 %v2257
    %v2938 = vunpack.c.l.b16 %v2258
    %v2939 = vunpack.c.h.b16 %v2258
    %v2940 = vunpack.c.l.b16 %v2259
    %v2941 = vunpack.c.l.b16 %v2260
    %v2942 = vunpack.c.h.b16 %v2260
    %v2943 = vunpack.c.l.b16 %v2261
    %v2944 = vunpack.c.h.b16 %v2261
    %v2945 = vunpack.c.l.b16 %v2262
    %v2946 = vunpack.c.h.b16 %v2262
    %v2947 = vunpack.c.l.b16 %v2263
    %v2948 = vunpack.c.l.b16 %v2264
    %v2949 = vunpack.c.h.b16 %v2264
    %v2950 = vunpack.c.l.b16 %v2265
    %v2951 = vunpack.c.h.b16 %v2265
    %v2952 = vunpack.c.l.b16 %v2266
    %v2953 = vunpack.c.h.b16 %v2266
    %v2954 = vunpack.c.l.b16 %v2267
    %v2955 = vunpack.c.l.b16 %v2268
    %v2956 = vunpack.c.h.b16 %v2268
    %v2957 = vunpack.c.l.b16 %v2269
    %v2958 = vunpack.c.h.b16 %v2269
    %v2959 = vunpack.c.l.b16 %v2270
    %v2960 = vunpack.c.h.b16 %v2270
    %v2961 = vunpack.c.l.b16 %v2271
    %v2962 = vunpack.c.l.b16 %v2272
    %v2963 = vunpack.c.h.b16 %v2272
    %v2964 = vunpack.c.l.b16 %v2273
    %v2965 = vunpack.c.h.b16 %v2273
    %v2966 = vunpack.c.l.b16 %v2274
    %v2967 = vunpack.c.h.b16 %v2274
    %v2968 = vunpack.c.l.b16 %v2275
    %v2969 = vunpack.c.l.b16 %v2276
    %v2970 = vunpack.c.h.b16 %v2276
    %v2971 = vunpack.c.l.b16 %v2277
    %v2972 = vunpack.c.h.b16 %v2277
    %v2973 = vunpack.c.l.b16 %v2278
    %v2974 = vunpack.c.h.b16 %v2278
    %v2975 = vunpack.c.l.b16 %v2279
    %v2976 = vunpack.c.l.b16 %v2280
    %v2977 = vunpack.c.h.b16 %v2280
    %v2978 = vunpack.c.l.b16 %v2281
    %v2979 = vunpack.c.h.b16 %v2281
    %v2980 = vunpack.c.l.b16 %v2282
    %v2981 = vunpack.c.h.b16 %v2282
    %v2982 = vunpack.c.l.b16 %v2283
    %v2983 = vunpack.c.l.b16 %v2284
    %v2984 = vunpack.c.h.b16 %v2284
    %v2985 = vunpack.c.l.b16 %v2285
    %v2986 = vunpack.c.h.b16 %v2285
    %v2987 = vunpack.c.l.b16 %v2286
    %v2988 = vunpack.c.h.b16 %v2286
    %v2989 = vunpack.c.l.b16 %v2287
    %v2990 = vunpack.c.l.b16 %v2288
    %v2991 = vunpack.c.h.b16 %v2288
    %v2992 = vunpack.c.l.b16 %v2289
    %v2993 = vunpack.c.h.b16 %v2289
    %v2994 = vunpack.c.l.b16 %v2290
    %v2995 = vunpack.c.h.b16 %v2290
    %v2996 = vunpack.c.l.b16 %v2291
    %v2997 = vunpack.c.l.b16 %v2292
    %v2998 = vunpack.c.h.b16 %v2292
    %v2999 = vunpack.c.l.b16 %v2293
    %v3000 = vunpack.c.h.b16 %v2293
    %v3001 = vunpack.c.l.b16 %v2294
    %v3002 = vunpack.c.h.b16 %v2294
    %v3003 = vunpack.c.l.b16 %v2295
    %v3004 = vunpack.c.l.b16 %v2296
    %v3005 = vunpack.c.h.b16 %v2296
    %v3006 = vunpack.c.l.b16 %v2297
    %v3007 = vunpack.c.h.b16 %v2297
    %v3008 = vunpack.c.l.b16 %v2298
    %v3009 = vunpack.c.h.b16 %v2298
    %v3010 = vunpack.c.l.b16 %v2299
    %v3011 = vunpack.c.l.b16 %v2300
    %v3012 = vunpack.c.h.b16 %v2300
    %v3013 = vunpack.c.l.b16 %v2301
    %v3014 = vunpack.c.h.b16 %v2301
    %v3015 = vunpack.c.l.b16 %v2302
    %v3016 = vunpack.c.h.b16 %v2302
    %v3017 = vunpack.c.l.b16 %v2303
    %v3018 = vunpack.c.l.b16 %v2304
    %v3019 = vunpack.c.h.b16 %v2304
    %v3020 = vunpack.c.l.b16 %v2305
    %v3021 = vunpack.c.h.b16 %v2305
    %v3022 = vunpack.c.l.b16 %v2306
    %v3023 = vunpack.c.h.b16 %v2306
    %v3024 = vunpack.c.l.b16 %v2307
    %v3025 = vunpack.c.l.b16 %v2308
    %v3026 = vunpack.c.h.b16 %v2308
    %v3027 = vunpack.c.l.b16 %v2309
    %v3028 = vunpack.c.h.b16 %v2309
    %v3029 = vunpack.c.l.b16 %v2310
    %v3030 = vunpack.c.h.b16 %v2310
    %v3031 = vunpack.c.l.b16 %v2311
    %v3032 = vunpack.c.l.b16 %v2312
    %v3033 = vunpack.c.h.b16 %v2312
    %v3034 = vunpack.c.l.b16 %v2313
    %v3035 = vunpack.c.h.b16 %v2313
    %v3036 = vunpack.c.l.b16 %v2314
    %v3037 = vunpack.c.h.b16 %v2314
    %v3038 = vunpack.c.l.b16 %v2315
    %v3039 = vunpack.c.l.b16 %v2316
    %v3040 = vunpack.c.h.b16 %v2316
    %v3041 = vunpack.c.l.b16 %v2317
    %v3042 = vunpack.c.h.b16 %v2317
    %v3043 = vunpack.c.l.b16 %v2318
    %v3044 = vunpack.c.h.b16 %v2318
    %v3045 = vunpack.c.l.b16 %v2319
    %v3046 = vunpack.c.l.b16 %v2320
    %v3047 = vunpack.c.h.b16 %v2320
    %v3048 = vunpack.c.l.b16 %v2321
    %v3049 = vunpack.c.h.b16 %v2321
    %v3050 = vunpack.c.l.b16 %v2322
    %v3051 = vunpack.c.h.b16 %v2322
    %v3052 = vunpack.c.l.b16 %v2323
    %v3053 = vunpack.c.l.b16 %v2324
    %v3054 = vunpack.c.h.b16 %v2324
    %v3055 = vunpack.c.l.b16 %v2325
    %v3056 = vunpack.c.h.b16 %v2325
    %v3057 = vunpack.c.l.b16 %v2326
    %v3058 = vunpack.c.h.b16 %v2326
    %v3059 = vunpack.c.l.b16 %v2327
    %v3060 = vunpack.c.l.b16 %v2328
    %v3061 = vunpack.c.h.b16 %v2328
    %v3062 = vunpack.c.l.b16 %v2329
    %v3063 = vunpack.c.h.b16 %v2329
    %v3064 = vunpack.c.l.b16 %v2330
    %v3065 = vunpack.c.h.b16 %v2330
    %v3066 = vunpack.c.l.b16 %v2331
    %v3067 = vunpack.c.l.b16 %v2332
    %v3068 = vunpack.c.h.b16 %v2332
    %v3069 = vunpack.c.l.b16 %v2333
    %v3070 = vunpack.c.h.b16 %v2333
    %v3071 = vunpack.c.l.b16 %v2334
    %v3072 = vunpack.c.h.b16 %v2334
    %v3073 = vunpack.c.l.b16 %v2335
    %v3074 = vunpack.c.l.b16 %v2336
    %v3075 = vunpack.c.h.b16 %v2336
    %v3076 = vunpack.c.l.b16 %v2337
    %v3077 = vunpack.c.h.b16 %v2337
    %v3078 = vunpack.c.l.b16 %v2338
    %v3079 = vunpack.c.h.b16 %v2338
    %v3080 = vunpack.c.l.b16 %v2339
    %v3081 = vpack.c.b16 %v2640, %v2633
    %v3082 = vpack.c.b16 %v2641, %v2634
    %v3083 = vpack.c.b16 %v2642, %v2635
    %v3084 = vpack.c.b16 %v2643, %v2636
    %v3085 = vpack.c.b16 %v2644, %v2637
    %v3086 = vpack.c.b16 %v2645, %v2638
    %v3087 = vpack.c.b16 %v2646, %v2639
    %v3088 = vpack.c.b16 %v2654, %v2647
    %v3089 = vpack.c.b16 %v2655, %v2648
    %v3090 = vpack.c.b16 %v2656, %v2649
    %v3091 = vpack.c.b16 %v2657, %v2650
    %v3092 = vpack.c.b16 %v2658, %v2651
    %v3093 = vpack.c.b16 %v2659, %v2652
    %v3094 = vpack.c.b16 %v2660, %v2653
    %v3095 = vpack.c.b16 %v2668, %v2661
    %v3096 = vpack.c.b16 %v2669, %v2662
    %v3097 = vpack.c.b16 %v2670, %v2663
    %v3098 = vpack.c.b16 %v2671, %v2664
    %v3099 = vpack.c.b16 %v2672, %v2665
    %v3100 = vpack.c.b16 %v2673, %v2666
    %v3101 = vpack.c.b16 %v2674, %v2667
    %v3102 = vpack.c.b16 %v2682, %v2675
    %v3103 = vpack.c.b16 %v2683, %v2676
    %v3104 = vpack.c.b16 %v2684, %v2677
    %v3105 = vpack.c.b16 %v2685, %v2678
    %v3106 = vpack.c.b16 %v2686, %v2679
    %v3107 = vpack.c.b16 %v2687, %v2680
    %v3108 = vpack.c.b16 %v2688, %v2681
    %v3109 = vpack.c.b16 %v2696, %v2689
    %v3110 = vpack.c.b16 %v2697, %v2690
    %v3111 = vpack.c.b16 %v2698, %v2691
    %v3112 = vpack.c.b16 %v2699, %v2692
    %v3113 = vpack.c.b16 %v2700, %v2693
    %v3114 = vpack.c.b16 %v2701, %v2694
    %v3115 = vpack.c.b16 %v2702, %v2695
    %v3116 = vpack.c.b16 %v2710, %v2703
    %v3117 = vpack.c.b16 %v2711, %v2704
    %v3118 = vpack.c.b16 %v2712, %v2705
    %v3119 = vpack.c.b16 %v2713, %v2706
    %v3120 = vpack.c.b16 %v2714, %v2707
    %v3121 = vpack.c.b16 %v2715, %v2708
    %v3122 = vpack.c.b16 %v2716, %v2709
    %v3123 = vpack.c.b16 %v2724, %v2717
    %v3124 = vpack.c.b16 %v2725, %v2718
    %v3125 = vpack.c.b16 %v2726, %v2719
    %v3126 = vpack.c.b16 %v2727, %v2720
    %v3127 = vpack.c.b16 %v2728, %v2721
    %v3128 = vpack.c.b16 %v2729, %v2722
    %v3129 = vpack.c.b16 %v2730, %v2723
    %v3130 = vpack.c.b16 %v2738, %v2731
    %v3131 = vpack.c.b16 %v2739, %v2732
    %v3132 = vpack.c.b16 %v2740, %v2733
    %v3133 = vpack.c.b16 %v2741, %v2734
    %v3134 = vpack.c.b16 %v2742, %v2735
    %v3135 = vpack.c.b16 %v2743, %v2736
    %v3136 = vpack.c.b16 %v2744, %v2737
    %v3137 = vpack.c.b16 %v2752, %v2745
    %v3138 = vpack.c.b16 %v2753, %v2746
    %v3139 = vpack.c.b16 %v2754, %v2747
    %v3140 = vpack.c.b16 %v2755, %v2748
    %v3141 = vpack.c.b16 %v2756, %v2749
    %v3142 = vpack.c.b16 %v2757, %v2750
    %v3143 = vpack.c.b16 %v2758, %v2751
    %v3144 = vpack.c.b16 %v2766, %v2759
    %v3145 = vpack.c.b16 %v2767, %v2760
    %v3146 = vpack.c.b16 %v2768, %v2761
    %v3147 = vpack.c.b16 %v2769, %v2762
    %v3148 = vpack.c.b16 %v2770, %v2763
    %v3149 = vpack.c.b16 %v2771, %v2764
    %v3150 = vpack.c.b16 %v2772, %v2765
    %v3151 = vpack.c.b16 %v2780, %v2773
    %v3152 = vpack.c.b16 %v2781, %v2774
    %v3153 = vpack.c.b16 %v2782, %v2775
    %v3154 = vpack.c.b16 %v2783, %v2776
    %v3155 = vpack.c.b16 %v2784, %v2777
    %v3156 = vpack.c.b16 %v2785, %v2778
    %v3157 = vpack.c.b16 %v2786, %v2779
    %v3158 = vpack.c.b16 %v2794, %v2787
    %v3159 = vpack.c.b16 %v2795, %v2788
    %v3160 = vpack.c.b16 %v2796, %v2789
    %v3161 = vpack.c.b16 %v2797, %v2790
    %v3162 = vpack.c.b16 %v2798, %v2791
    %v3163 = vpack.c.b16 %v2799, %v2792
    %v3164 = vpack.c.b16 %v2800, %v2793
    %v3165 = vpack.c.b16 %v2808, %v2801
    %v3166 = vpack.c.b16 %v2809, %v2802
    %v3167 = vpack.c.b16 %v2810, %v2803
    %v3168 = vpack.c.b16 %v2811, %v2804
    %v3169 = vpack.c.b16 %v2812, %v2805
    %v3170 = vpack.c.b16 %v2813, %v2806
    %v3171 = vpack.c.b16 %v2814, %v2807
    %v3172 = vpack.c.b16 %v2822, %v2815
    %v3173 = vpack.c.b16 %v2823, %v2816
    %v3174 = vpack.c.b16 %v2824, %v2817
    %v3175 = vpack.c.b16 %v2825, %v2818
    %v3176 = vpack.c.b16 %v2826, %v2819
    %v3177 = vpack.c.b16 %v2827, %v2820
    %v3178 = vpack.c.b16 %v2828, %v2821
    %v3179 = vpack.c.b16 %v2836, %v2829
    %v3180 = vpack.c.b16 %v2837, %v2830
    %v3181 = vpack.c.b16 %v2838, %v2831
    %v3182 = vpack.c.b16 %v2839, %v2832
    %v3183 = vpack.c.b16 %v2840, %v2833
    %v3184 = vpack.c.b16 %v2841, %v2834
    %v3185 = vpack.c.b16 %v2842, %v2835
    %v3186 = vpack.c.b16 %v2850, %v2843
    %v3187 = vpack.c.b16 %v2851, %v2844
    %v3188 = vpack.c.b16 %v2852, %v2845
    %v3189 = vpack.c.b16 %v2853, %v2846
    %v3190 = vpack.c.b16 %v2854, %v2847
    %v3191 = vpack.c.b16 %v2855, %v2848
    %v3192 = vpack.c.b16 %v2856, %v2849
    %v3193 = vpack.c.b16 %v2864, %v2857
    %v3194 = vpack.c.b16 %v2865, %v2858
    %v3195 = vpack.c.b16 %v2866, %v2859
    %v3196 = vpack.c.b16 %v2867, %v2860
    %v3197 = vpack.c.b16 %v2868, %v2861
    %v3198 = vpack.c.b16 %v2869, %v2862
    %v3199 = vpack.c.b16 %v2870, %v2863
    %v3200 = vpack.c.b16 %v2878, %v2871
    %v3201 = vpack.c.b16 %v2879, %v2872
    %v3202 = vpack.c.b16 %v2880, %v2873
    %v3203 = vpack.c.b16 %v2881, %v2874
    %v3204 = vpack.c.b16 %v2882, %v2875
    %v3205 = vpack.c.b16 %v2883, %v2876
    %v3206 = vpack.c.b16 %v2884, %v2877
    %v3207 = vpack.c.b16 %v2892, %v2885
    %v3208 = vpack.c.b16 %v2893, %v2886
    %v3209 = vpack.c.b16 %v2894, %v2887
    %v3210 = vpack.c.b16 %v2895, %v2888
    %v3211 = vpack.c.b16 %v2896, %v2889
    %v3212 = vpack.c.b16 %v2897, %v2890
    %v3213 = vpack.c.b16 %v2898, %v2891
    %v3214 = vpack.c.b16 %v2906, %v2899
    %v3215 = vpack.c.b16 %v2907, %v2900
    %v3216 = vpack.c.b16 %v2908, %v2901
    %v3217 = vpack.c.b16 %v2909, %v2902
    %v3218 = vpack.c.b16 %v2910, %v2903
    %v3219 = vpack.c.b16 %v2911, %v2904
    %v3220 = vpack.c.b16 %v2912, %v2905
    %v3221 = vpack.c.b16 %v2920, %v2913
    %v3222 = vpack.c.b16 %v2921, %v2914
    %v3223 = vpack.c.b16 %v2922, %v2915
    %v3224 = vpack.c.b16 %v2923, %v2916
    %v3225 = vpack.c.b16 %v2924, %v2917
    %v3226 = vpack.c.b16 %v2925, %v2918
    %v3227 = vpack.c.b16 %v2926, %v2919
    %v3228 = vpack.c.b16 %v2934, %v2927
    %v3229 = vpack.c.b16 %v2935, %v2928
    %v3230 = vpack.c.b16 %v2936, %v2929
    %v3231 = vpack.c.b16 %v2937, %v2930
    %v3232 = vpack.c.b16 %v2938, %v2931
    %v3233 = vpack.c.b16 %v2939, %v2932
    %v3234 = vpack.c.b16 %v2940, %v2933
    %v3235 = vpack.c.b16 %v2948, %v2941
    %v3236 = vpack.c.b16 %v2949, %v2942
    %v3237 = vpack.c.b16 %v2950, %v2943
    %v3238 = vpack.c.b16 %v2951, %v2944
    %v3239 = vpack.c.b16 %v2952, %v2945
    %v3240 = vpack.c.b16 %v2953, %v2946
    %v3241 = vpack.c.b16 %v2954, %v2947
    %v3242 = vpack.c.b16 %v2962, %v2955
    %v3243 = vpack.c.b16 %v2963, %v2956
    %v3244 = vpack.c.b16 %v2964, %v2957
    %v3245 = vpack.c.b16 %v2965, %v2958
    %v3246 = vpack.c.b16 %v2966, %v2959
    %v3247 = vpack.c.b16 %v2967, %v2960
    %v3248 = vpack.c.b16 %v2968, %v2961
    %v3249 = vpack.c.b16 %v2976, %v2969
    %v3250 = vpack.c.b16 %v2977, %v2970
    %v3251 = vpack.c.b16 %v2978, %v2971
    %v3252 = vpack.c.b16 %v2979, %v2972
    %v3253 = vpack.c.b16 %v2980, %v2973
    %v3254 = vpack.c.b16 %v2981, %v2974
    %v3255 = vpack.c.b16 %v2982, %v2975
    %v3256 = vpack.c.b16 %v2990, %v2983
    %v3257 = vpack.c.b16 %v2991, %v2984
    %v3258 = vpack.c.b16 %v2992, %v2985
    %v3259 = vpack.c.b16 %v2993, %v2986
    %v3260 = vpack.c.b16 %v2994, %v2987
    %v3261 = vpack.c.b16 %v2995, %v2988
    %v3262 = vpack.c.b16 %v2996, %v2989
    %v3263 = vpack.c.b16 %v3004, %v2997
    %v3264 = vpack.c.b16 %v3005, %v2998
    %v3265 = vpack.c.b16 %v3006, %v2999
    %v3266 = vpack.c.b16 %v3007, %v3000
    %v3267 = vpack.c.b16 %v3008, %v3001
    %v3268 = vpack.c.b16 %v3009, %v3002
    %v3269 = vpack.c.b16 %v3010, %v3003
    %v3270 = vpack.c.b16 %v3018, %v3011
    %v3271 = vpack.c.b16 %v3019, %v3012
    %v3272 = vpack.c.b16 %v3020, %v3013
    %v3273 = vpack.c.b16 %v3021, %v3014
    %v3274 = vpack.c.b16 %v3022, %v3015
    %v3275 = vpack.c.b16 %v3023, %v3016
    %v3276 = vpack.c.b16 %v3024, %v3017
    %v3277 = vpack.c.b16 %v3032, %v3025
    %v3278 = vpack.c.b16 %v3033, %v3026
    %v3279 = vpack.c.b16 %v3034, %v3027
    %v3280 = vpack.c.b16 %v3035, %v3028
    %v3281 = vpack.c.b16 %v3036, %v3029
    %v3282 = vpack.c.b16 %v3037, %v3030
    %v3283 = vpack.c.b16 %v3038, %v3031
    %v3284 = vpack.c.b16 %v3046, %v3039
    %v3285 = vpack.c.b16 %v3047, %v3040
    %v3286 = vpack.c.b16 %v3048, %v3041
    %v3287 = vpack.c.b16 %v3049, %v3042
    %v3288 = vpack.c.b16 %v3050, %v3043
    %v3289 = vpack.c.b16 %v3051, %v3044
    %v3290 = vpack.c.b16 %v3052, %v3045
    %v3291 = vpack.c.b16 %v3060, %v3053
    %v3292 = vpack.c.b16 %v3061, %v3054
    %v3293 = vpack.c.b16 %v3062, %v3055
    %v3294 = vpack.c.b16 %v3063, %v3056
    %v3295 = vpack.c.b16 %v3064, %v3057
    %v3296 = vpack.c.b16 %v3065, %v3058
    %v3297 = vpack.c.b16 %v3066, %v3059
    %v3298 = vpack.c.b16 %v3074, %v3067
    %v3299 = vpack.c.b16 %v3075, %v3068
    %v3300 = vpack.c.b16 %v3076, %v3069
    %v3301 = vpack.c.b16 %v3077, %v3070
    %v3302 = vpack.c.b16 %v3078, %v3071
    %v3303 = vpack.c.b16 %v3079, %v3072
    %v3304 = vpack.c.b16 %v3080, %v3073
    %3529 = vmatprep.subr.bf16.mxu0 %v3082
    %3530 = vmatpush1.bf16.msra.mxu0 %v3081
    %3531 = vmatprep.subr.bf16.mxu0 %v3089
    %3532 = vmatpush1.bf16.msra.mxu0 %v3088
    %3533 = vmatprep.subr.bf16.mxu0 %v3096
    %3534 = vmatpush1.bf16.msra.mxu0 %v3095
    %3535 = vmatprep.subr.bf16.mxu0 %v3103
    %3536 = vmatpush1.bf16.msra.mxu0 %v3102
    %3537 = vmatprep.subr.bf16.mxu0 %v3110
    %3538 = vmatpush1.bf16.msra.mxu0 %v3109
    %3539 = vmatprep.subr.bf16.mxu0 %v3117
    %3540 = vmatpush1.bf16.msra.mxu0 %v3116
    %3541 = vmatprep.subr.bf16.mxu0 %v3124
    %3542 = vmatpush1.bf16.msra.mxu0 %v3123
    %3543 = vmatprep.subr.bf16.mxu0 %v3131
    %3544 = vmatpush1.bf16.msra.mxu0 %v3130
    %3545 = vmatprep.subr.bf16.mxu0 %v3138
    %3546 = vmatpush1.bf16.msra.mxu0 %v3137
    %3547 = vmatprep.subr.bf16.mxu0 %v3145
    %3548 = vmatpush1.bf16.msra.mxu0 %v3144
    %3549 = vmatprep.subr.bf16.mxu0 %v3152
    %3550 = vmatpush1.bf16.msra.mxu0 %v3151
    %3551 = vmatprep.subr.bf16.mxu0 %v3159
    %3552 = vmatpush1.bf16.msra.mxu0 %v3158
    %3553 = vmatprep.subr.bf16.mxu0 %v3166
    %3554 = vmatpush1.bf16.msra.mxu0 %v3165
    %3555 = vmatprep.subr.bf16.mxu0 %v3173
    %3556 = vmatpush1.bf16.msra.mxu0 %v3172
    %3557 = vmatprep.subr.bf16.mxu0 %v3180
    %3558 = vmatpush1.bf16.msra.mxu0 %v3179
    %3559 = vmatprep.subr.bf16.mxu0 %v3187
    %3560 = vmatpush1.bf16.msra.mxu0 %v3186
    %3561 = vmatprep.mubr.bf16.mxu0 %v2081
    %3562 = vmatmul.mubr.bf16.gmra.mrb[0].mxu0 %v2080
    %v3563 = vpop.f32.mrb[0].mxu0
    %v3564 = vadd.f32 %v2345, %v3563
    %v3565 = vpop.f32.mrb[0].mxu0
    %v3566 = vadd.f32 %v2349, %v3565
    %v3567 = vpop.f32.mrb[0].mxu0
    %v3568 = vpop.f32.mrb[0].mxu0
    %3569 = vdwg.mxu0
    %3570 = vmatprep.subr.bf16.mxu0 %v3194
    %3571 = vmatpush1.bf16.msra.mxu0 %v3193
    %3572 = vmatprep.subr.bf16.mxu0 %v3201
    %3573 = vmatpush1.bf16.msra.mxu0 %v3200
    %3574 = vmatprep.subr.bf16.mxu0 %v3208
    %3575 = vmatpush1.bf16.msra.mxu0 %v3207
    %3576 = vmatprep.subr.bf16.mxu0 %v3215
    %3577 = vmatpush1.bf16.msra.mxu0 %v3214
    %3578 = vmatprep.subr.bf16.mxu0 %v3222
    %3579 = vmatpush1.bf16.msra.mxu0 %v3221
    %3580 = vmatprep.subr.bf16.mxu0 %v3229
    %3581 = vmatpush1.bf16.msra.mxu0 %v3228
    %3582 = vmatprep.subr.bf16.mxu0 %v3236
    %3583 = vmatpush1.bf16.msra.mxu0 %v3235
    %3584 = vmatprep.subr.bf16.mxu0 %v3243
    %3585 = vmatpush1.bf16.msra.mxu0 %v3242
    %3586 = vmatprep.subr.bf16.mxu0 %v3250
    %3587 = vmatpush1.bf16.msra.mxu0 %v3249
    %3588 = vmatprep.subr.bf16.mxu0 %v3257
    %3589 = vmatpush1.bf16.msra.mxu0 %v3256
    %3590 = vmatprep.subr.bf16.mxu0 %v3264
    %3591 = vmatpush1.bf16.msra.mxu0 %v3263
    %3592 = vmatprep.subr.bf16.mxu0 %v3271
    %3593 = vmatpush1.bf16.msra.mxu0 %v3270
    %3594 = vmatprep.subr.bf16.mxu0 %v3278
    %3595 = vmatpush1.bf16.msra.mxu0 %v3277
    %3596 = vmatprep.subr.bf16.mxu0 %v3285
    %3597 = vmatpush1.bf16.msra.mxu0 %v3284
    %3598 = vmatprep.subr.bf16.mxu0 %v3292
    %3599 = vmatpush1.bf16.msra.mxu0 %v3291
    %3600 = vmatprep.subr.bf16.mxu0 %v3299
    %3601 = vmatpush1.bf16.msra.mxu0 %v3298
    %3602 = vmatprep.mubr.bf16.mxu0 %v2083
    %3603 = vmatmul.mubr.bf16.gmra.mrb[0].mxu0 %v2082
    %v3604 = vpop.f32.mrb[0].mxu0
    %v3605 = vadd.f32 %v3564, %v3604
    %v3606 = vpop.f32.mrb[0].mxu0
    %v3607 = vadd.f32 %v3566, %v3606
    %v3608 = vpop.f32.mrb[0].mxu0
    %v3609 = vpop.f32.mrb[0].mxu0
    %3610 = vdwg.mxu0
    %3611 = vmatprep.subr.bf16.mxu0 %v3084
    %3612 = vmatpush1.bf16.msra.mxu0 %v3083
    %3613 = vmatprep.subr.bf16.mxu0 %v3091
    %3614 = vmatpush1.bf16.msra.mxu0 %v3090
    %3615 = vmatprep.subr.bf16.mxu0 %v3098
    %3616 = vmatpush1.bf16.msra.mxu0 %v3097
    %3617 = vmatprep.subr.bf16.mxu0 %v3105
    %3618 = vmatpush1.bf16.msra.mxu0 %v3104
    %3619 = vmatprep.subr.bf16.mxu0 %v3112
    %3620 = vmatpush1.bf16.msra.mxu0 %v3111
    %3621 = vmatprep.subr.bf16.mxu0 %v3119
    %3622 = vmatpush1.bf16.msra.mxu0 %v3118
    %3623 = vmatprep.subr.bf16.mxu0 %v3126
    %3624 = vmatpush1.bf16.msra.mxu0 %v3125
    %3625 = vmatprep.subr.bf16.mxu0 %v3133
    %3626 = vmatpush1.bf16.msra.mxu0 %v3132
    %3627 = vmatprep.subr.bf16.mxu0 %v3140
    %3628 = vmatpush1.bf16.msra.mxu0 %v3139
    %3629 = vmatprep.subr.bf16.mxu0 %v3147
    %3630 = vmatpush1.bf16.msra.mxu0 %v3146
    %3631 = vmatprep.subr.bf16.mxu0 %v3154
    %3632 = vmatpush1.bf16.msra.mxu0 %v3153
    %3633 = vmatprep.subr.bf16.mxu0 %v3161
    %3634 = vmatpush1.bf16.msra.mxu0 %v3160
    %3635 = vmatprep.subr.bf16.mxu0 %v3168
    %3636 = vmatpush1.bf16.msra.mxu0 %v3167
    %3637 = vmatprep.subr.bf16.mxu0 %v3175
    %3638 = vmatpush1.bf16.msra.mxu0 %v3174
    %3639 = vmatprep.subr.bf16.mxu0 %v3182
    %3640 = vmatpush1.bf16.msra.mxu0 %v3181
    %3641 = vmatprep.subr.bf16.mxu0 %v3189
    %3642 = vmatpush1.bf16.msra.mxu0 %v3188
    %3643 = vmatprep.mubr.bf16.mxu0 %v2081
    %3644 = vmatmul.mubr.bf16.gmra.mrb[0].mxu0 %v2080
    %v3645 = vpop.f32.mrb[0].mxu0
    %v3646 = vadd.f32 %v2353, %v3645
    %v3647 = vpop.f32.mrb[0].mxu0
    %v3648 = vadd.f32 %v2357, %v3647
    %v3649 = vpop.f32.mrb[0].mxu0
    %v3650 = vpop.f32.mrb[0].mxu0
    %3651 = vdwg.mxu0
    %3652 = vmatprep.subr.bf16.mxu0 %v3196
    %3653 = vmatpush1.bf16.msra.mxu0 %v3195
    %3654 = vmatprep.subr.bf16.mxu0 %v3203
    %3655 = vmatpush1.bf16.msra.mxu0 %v3202
    %3656 = vmatprep.subr.bf16.mxu0 %v3210
    %3657 = vmatpush1.bf16.msra.mxu0 %v3209
    %3658 = vmatprep.subr.bf16.mxu0 %v3217
    %3659 = vmatpush1.bf16.msra.mxu0 %v3216
    %3660 = vmatprep.subr.bf16.mxu0 %v3224
    %3661 = vmatpush1.bf16.msra.mxu0 %v3223
    %3662 = vmatprep.subr.bf16.mxu0 %v3231
    %3663 = vmatpush1.bf16.msra.mxu0 %v3230
    %3664 = vmatprep.subr.bf16.mxu0 %v3238
    %3665 = vmatpush1.bf16.msra.mxu0 %v3237
    %3666 = vmatprep.subr.bf16.mxu0 %v3245
    %3667 = vmatpush1.bf16.msra.mxu0 %v3244
    %3668 = vmatprep.subr.bf16.mxu0 %v3252
    %3669 = vmatpush1.bf16.msra.mxu0 %v3251
    %3670 = vmatprep.subr.bf16.mxu0 %v3259
    %3671 = vmatpush1.bf16.msra.mxu0 %v3258
    %3672 = vmatprep.subr.bf16.mxu0 %v3266
    %3673 = vmatpush1.bf16.msra.mxu0 %v3265
    %3674 = vmatprep.subr.bf16.mxu0 %v3273
    %3675 = vmatpush1.bf16.msra.mxu0 %v3272
    %3676 = vmatprep.subr.bf16.mxu0 %v3280
    %3677 = vmatpush1.bf16.msra.mxu0 %v3279
    %3678 = vmatprep.subr.bf16.mxu0 %v3287
    %3679 = vmatpush1.bf16.msra.mxu0 %v3286
    %3680 = vmatprep.subr.bf16.mxu0 %v3294
    %3681 = vmatpush1.bf16.msra.mxu0 %v3293
    %3682 = vmatprep.subr.bf16.mxu0 %v3301
    %3683 = vmatpush1.bf16.msra.mxu0 %v3300
    %3684 = vmatprep.mubr.bf16.mxu0 %v2083
    %3685 = vmatmul.mubr.bf16.gmra.mrb[0].mxu0 %v2082
    %v3686 = vpop.f32.mrb[0].mxu0
    %v3687 = vadd.f32 %v3646, %v3686
    %v3688 = vpop.f32.mrb[0].mxu0
    %v3689 = vadd.f32 %v3648, %v3688
    %v3690 = vpop.f32.mrb[0].mxu0
    %v3691 = vpop.f32.mrb[0].mxu0
    %3692 = vdwg.mxu0
    %3693 = vmatprep.subr.bf16.mxu0 %v3086
    %3694 = vmatpush1.bf16.msra.mxu0 %v3085
    %3695 = vmatprep.subr.bf16.mxu0 %v3093
    %3696 = vmatpush1.bf16.msra.mxu0 %v3092
    %3697 = vmatprep.subr.bf16.mxu0 %v3100
    %3698 = vmatpush1.bf16.msra.mxu0 %v3099
    %3699 = vmatprep.subr.bf16.mxu0 %v3107
    %3700 = vmatpush1.bf16.msra.mxu0 %v3106
    %3701 = vmatprep.subr.bf16.mxu0 %v3114
    %3702 = vmatpush1.bf16.msra.mxu0 %v3113
    %3703 = vmatprep.subr.bf16.mxu0 %v3121
    %3704 = vmatpush1.bf16.msra.mxu0 %v3120
    %3705 = vmatprep.subr.bf16.mxu0 %v3128
    %3706 = vmatpush1.bf16.msra.mxu0 %v3127
    %3707 = vmatprep.subr.bf16.mxu0 %v3135
    %3708 = vmatpush1.bf16.msra.mxu0 %v3134
    %3709 = vmatprep.subr.bf16.mxu0 %v3142
    %3710 = vmatpush1.bf16.msra.mxu0 %v3141
    %3711 = vmatprep.subr.bf16.mxu0 %v3149
    %3712 = vmatpush1.bf16.msra.mxu0 %v3148
    %3713 = vmatprep.subr.bf16.mxu0 %v3156
    %3714 = vmatpush1.bf16.msra.mxu0 %v3155
    %3715 = vmatprep.subr.bf16.mxu0 %v3163
    %3716 = vmatpush1.bf16.msra.mxu0 %v3162
    %3717 = vmatprep.subr.bf16.mxu0 %v3170
    %3718 = vmatpush1.bf16.msra.mxu0 %v3169
    %3719 = vmatprep.subr.bf16.mxu0 %v3177
    %3720 = vmatpush1.bf16.msra.mxu0 %v3176
    %3721 = vmatprep.subr.bf16.mxu0 %v3184
    %3722 = vmatpush1.bf16.msra.mxu0 %v3183
    %3723 = vmatprep.subr.bf16.mxu0 %v3191
    %3724 = vmatpush1.bf16.msra.mxu0 %v3190
    %3725 = vmatprep.mubr.bf16.mxu0 %v2081
    %3726 = vmatmul.mubr.bf16.gmra.mrb[0].mxu0 %v2080
    %v3727 = vpop.f32.mrb[0].mxu0
    %v3728 = vadd.f32 %v2361, %v3727
    %v3729 = vpop.f32.mrb[0].mxu0
    %v3730 = vadd.f32 %v2365, %v3729
    %v3731 = vpop.f32.mrb[0].mxu0
    %v3732 = vpop.f32.mrb[0].mxu0
    %3733 = vdwg.mxu0
    %3734 = vmatprep.subr.bf16.mxu0 %v3198
    %3735 = vmatpush1.bf16.msra.mxu0 %v3197
    %3736 = vmatprep.subr.bf16.mxu0 %v3205
    %3737 = vmatpush1.bf16.msra.mxu0 %v3204
    %3738 = vmatprep.subr.bf16.mxu0 %v3212
    %3739 = vmatpush1.bf16.msra.mxu0 %v3211
    %3740 = vmatprep.subr.bf16.mxu0 %v3219
    %3741 = vmatpush1.bf16.msra.mxu0 %v3218
    %3742 = vmatprep.subr.bf16.mxu0 %v3226
    %3743 = vmatpush1.bf16.msra.mxu0 %v3225
    %3744 = vmatprep.subr.bf16.mxu0 %v3233
    %3745 = vmatpush1.bf16.msra.mxu0 %v3232
    %3746 = vmatprep.subr.bf16.mxu0 %v3240
    %3747 = vmatpush1.bf16.msra.mxu0 %v3239
    %3748 = vmatprep.subr.bf16.mxu0 %v3247
    %3749 = vmatpush1.bf16.msra.mxu0 %v3246
    %3750 = vmatprep.subr.bf16.mxu0 %v3254
    %3751 = vmatpush1.bf16.msra.mxu0 %v3253
    %3752 = vmatprep.subr.bf16.mxu0 %v3261
    %3753 = vmatpush1.bf16.msra.mxu0 %v3260
    %3754 = vmatprep.subr.bf16.mxu0 %v3268
    %3755 = vmatpush1.bf16.msra.mxu0 %v3267
    %3756 = vmatprep.subr.bf16.mxu0 %v3275
    %3757 = vmatpush1.bf16.msra.mxu0 %v3274
    %3758 = vmatprep.subr.bf16.mxu0 %v3282
    %3759 = vmatpush1.bf16.msra.mxu0 %v3281
    %3760 = vmatprep.subr.bf16.mxu0 %v3289
    %3761 = vmatpush1.bf16.msra.mxu0 %v3288
    %3762 = vmatprep.subr.bf16.mxu0 %v3296
    %3763 = vmatpush1.bf16.msra.mxu0 %v3295
    %3764 = vmatprep.subr.bf16.mxu0 %v3303
    %3765 = vmatpush1.bf16.msra.mxu0 %v3302
    %3766 = vmatprep.mubr.bf16.mxu0 %v2083
    %3767 = vmatmul.mubr.bf16.gmra.mrb[0].mxu0 %v2082
    %v3768 = vpop.f32.mrb[0].mxu0
    %v3769 = vadd.f32 %v3728, %v3768
    %v3770 = vpop.f32.mrb[0].mxu0
    %v3771 = vadd.f32 %v3730, %v3770
    %v3772 = vpop.f32.mrb[0].mxu0
    %v3773 = vpop.f32.mrb[0].mxu0
    %3774 = vdwg.mxu0
    %3775 = vmatprep.subr.bf16.mxu0 0
    %3776 = vmatpush1.bf16.msra.mxu0 %v3087
    %3777 = vmatprep.subr.bf16.mxu0 0
    %3778 = vmatpush1.bf16.msra.mxu0 %v3094
    %3779 = vmatprep.subr.bf16.mxu0 0
    %3780 = vmatpush1.bf16.msra.mxu0 %v3101
    %3781 = vmatprep.subr.bf16.mxu0 0
    %3782 = vmatpush1.bf16.msra.mxu0 %v3108
    %3783 = vmatprep.subr.bf16.mxu0 0
    %3784 = vmatpush1.bf16.msra.mxu0 %v3115
    %3785 = vmatprep.subr.bf16.mxu0 0
    %3786 = vmatpush1.bf16.msra.mxu0 %v3122
    %3787 = vmatprep.subr.bf16.mxu0 0
    %3788 = vmatpush1.bf16.msra.mxu0 %v3129
    %3789 = vmatprep.subr.bf16.mxu0 0
    %3790 = vmatpush1.bf16.msra.mxu0 %v3136
    %3791 = vmatprep.subr.bf16.mxu0 0
    %3792 = vmatpush1.bf16.msra.mxu0 %v3143
    %3793 = vmatprep.subr.bf16.mxu0 0
    %3794 = vmatpush1.bf16.msra.mxu0 %v3150
    %3795 = vmatprep.subr.bf16.mxu0 0
    %3796 = vmatpush1.bf16.msra.mxu0 %v3157
    %3797 = vmatprep.subr.bf16.mxu0 0
    %3798 = vmatpush1.bf16.msra.mxu0 %v3164
    %3799 = vmatprep.subr.bf16.mxu0 0
    %3800 = vmatpush1.bf16.msra.mxu0 %v3171
    %3801 = vmatprep.subr.bf16.mxu0 0
    %3802 = vmatpush1.bf16.msra.mxu0 %v3178
    %3803 = vmatprep.subr.bf16.mxu0 0
    %3804 = vmatpush1.bf16.msra.mxu0 %v3185
    %3805 = vmatprep.subr.bf16.mxu0 0
    %3806 = vmatpush1.bf16.msra.mxu0 %v3192
    %3807 = vmatprep.mubr.bf16.mxu0 %v2081
    %3808 = vmatmul.mubr.bf16.gmra.mrb[0].mxu0 %v2080
    %v3809 = vpop.f32.mrb[0].mxu0
    %v3810 = vadd.f32 %v2369, %v3809
    %v3811 = vpop.f32.mrb[0].mxu0
    %v3812 = vpop.f32.mrb[0].mxu0
    %v3813 = vpop.f32.mrb[0].mxu0
    %3814 = vdwg.mxu0
    %3815 = vmatprep.subr.bf16.mxu0 0
    %3816 = vmatpush1.bf16.msra.mxu0 %v3199
    %3817 = vmatprep.subr.bf16.mxu0 0
    %3818 = vmatpush1.bf16.msra.mxu0 %v3206
    %3819 = vmatprep.subr.bf16.mxu0 0
    %3820 = vmatpush1.bf16.msra.mxu0 %v3213
    %3821 = vmatprep.subr.bf16.mxu0 0
    %3822 = vmatpush1.bf16.msra.mxu0 %v3220
    %3823 = vmatprep.subr.bf16.mxu0 0
    %3824 = vmatpush1.bf16.msra.mxu0 %v3227
    %3825 = vmatprep.subr.bf16.mxu0 0
    %3826 = vmatpush1.bf16.msra.mxu0 %v3234
    %3827 = vmatprep.subr.bf16.mxu0 0
    %3828 = vmatpush1.bf16.msra.mxu0 %v3241
    %3829 = vmatprep.subr.bf16.mxu0 0
    %3830 = vmatpush1.bf16.msra.mxu0 %v3248
    %3831 = vmatprep.subr.bf16.mxu0 0
    %3832 = vmatpush1.bf16.msra.mxu0 %v3255
    %3833 = vmatprep.subr.bf16.mxu0 0
    %3834 = vmatpush1.bf16.msra.mxu0 %v3262
    %3835 = vmatprep.subr.bf16.mxu0 0
    %3836 = vmatpush1.bf16.msra.mxu0 %v3269
    %3837 = vmatprep.subr.bf16.mxu0 0
    %3838 = vmatpush1.bf16.msra.mxu0 %v3276
    %3839 = vmatprep.subr.bf16.mxu0 0
    %3840 = vmatpush1.bf16.msra.mxu0 %v3283
    %3841 = vmatprep.subr.bf16.mxu0 0
    %3842 = vmatpush1.bf16.msra.mxu0 %v3290
    %3843 = vmatprep.subr.bf16.mxu0 0
    %3844 = vmatpush1.bf16.msra.mxu0 %v3297
    %3845 = vmatprep.subr.bf16.mxu0 0
    %3846 = vmatpush1.bf16.msra.mxu0 %v3304
    %3847 = vmatprep.mubr.bf16.mxu0 %v2083
    %3848 = vmatmul.mubr.bf16.gmra.mrb[0].mxu0 %v2082
    %v3849 = vpop.f32.mrb[0].mxu0
    %v3850 = vadd.f32 %v3810, %v3849
    %v3851 = vpop.f32.mrb[0].mxu0
    %v3852 = vpop.f32.mrb[0].mxu0
    %v3853 = vpop.f32.mrb[0].mxu0
    %3854 = vdwg.mxu0
    %v3855 = vsub.f32 0.0, %v3605
    %v3856 = vsub.f32 0.0, %v3607
    %v3857 = vsub.f32 0.0, %v3687
    %v3858 = vsub.f32 0.0, %v3689
    %v3859 = vsub.f32 0.0, %v3769
    %v3860 = vsub.f32 0.0, %v3771
    %v3861 = vsub.f32 0.0, %v3850
    %v3862 = vmul.f32 %v3855, 1.442695
    %v3863 = vpow.pop %v3862
    %v3864 = vmul.f32 %v3856, 1.442695
    %v3865 = vpow.pop %v3864
    %v3866 = vmul.f32 %v3857, 1.442695
    %v3867 = vpow.pop %v3866
    %v3868 = vmul.f32 %v3858, 1.442695
    %v3869 = vpow.pop %v3868
    %v3870 = vmul.f32 %v3859, 1.442695
    %v3871 = vpow.pop %v3870
    %v3872 = vmul.f32 %v3860, 1.442695
    %v3873 = vpow.pop %v3872
    %v3874 = vmul.f32 %v3861, 1.442695
    %v3875 = vpow.pop %v3874
    %v3876 = vadd.f32 %v3863, 1.0
    %v3877 = vadd.f32 %v3865, 1.0
    %v3878 = vadd.f32 %v3867, 1.0
    %v3879 = vadd.f32 %v3869, 1.0
    %v3880 = vadd.f32 %v3871, 1.0
    %v3881 = vadd.f32 %v3873, 1.0
    %v3882 = vadd.f32 %v3875, 1.0
    %v3883 = vrcp.pop %v3876
    %v3884 = vrcp.pop %v3877
    %v3885 = vrcp.pop %v3878
    %v3886 = vrcp.pop %v3879
    %v3887 = vrcp.pop %v3880
    %v3888 = vrcp.pop %v3881
    %v3889 = vrcp.pop %v3882
    %v3890 = vpack.c.bf16 %v3883, %v3883
    %v3891 = vpack.c.bf16 %v3884, %v3884
    %v3892 = vpack.c.bf16 %v3885, %v3885
    %v3893 = vpack.c.bf16 %v3886, %v3886
    %v3894 = vpack.c.bf16 %v3887, %v3887
    %v3895 = vpack.c.bf16 %v3888, %v3888
    %v3896 = vpack.c.bf16 %v3889, %v3889
    %v3904 = vunpack.c.l.b16 %v3890
    %v3905 = vunpack.c.l.b16 %v3891
    %v3906 = vunpack.c.l.b16 %v3892
    %v3907 = vunpack.c.l.b16 %v3893
    %v3908 = vunpack.c.l.b16 %v3894
    %v3909 = vunpack.c.l.b16 %v3895
    %v3910 = vunpack.c.l.b16 %v3896
    %v3911 = vpack.c.b16 %v3905, %v3904
    %v3912 = vpack.c.b16 %v3907, %v3906
    %v3913 = vpack.c.b16 %v3909, %v3908
    %v3914 = vpack.c.b16 %v3910, %v3910
    %3919 = vst [vmem:[#allocation2] sm:$0xff] %v3911
    %3920 = vst [vmem:[#allocation2 + $0x8] sm:$0xff] %v3912
    %3921 = vst [vmem:[#allocation2 + $0x10] sm:$0xff] %v3913
    %vm3922 = vcmask 125952
    %3923 = vst.msk [vmem:[#allocation2 + $0x18] sm:$0xf] %vm3922, %v3914
    %vm3924 = vcmask 261120
    %3925 = vst.msk [vmem:[%s11] sm:$0xff] %vm3924, %v1929
    // Predicated region
    $region42: #{linear_vae_forward.1} parent=1 // pred_check
      _
    $region43: #{linear_vae_forward.1} parent=1 // pred_check_branch
      %3927 = sbr.rel (0) target = $region45
    $region44: #{linear_vae_forward.1} parent=1 // pred_region
      %s3929 = ssub.s32 448, 448
      %3930 = vsyncadd [#allocation3], %s3929
      %s3932 = sshll.u32 [#allocation2], 4
      %s3933 = int_to_ptr.vmem [resolvable:$true] %s3932
      %3935 = dma.vmem_to_hbm [thread:$0]  %s3933, 448, %s10, [#allocation3]
    $region45: #{linear_vae_forward.1} parent=1 // pred_fallthru
      _
    // Predicated region
    $region46: #{linear_vae_forward.1} parent=1 // pred_check
      _
    $region47: #{linear_vae_forward.1} parent=1 // pred_check_branch
      %3937 = sbr.rel (0) target = $region49
    $region48: #{linear_vae_forward.1} parent=1 // pred_region
      _
    $region49: #{linear_vae_forward.1} parent=1 // pred_fallthru
      _
    // Predicated region
    $region50: #{linear_vae_forward.1} parent=1 // pred_check
      _
    $region51: #{linear_vae_forward.1} parent=1 // pred_check_branch
      %3939 = sbr.rel (0) target = $region53
    $region52: #{linear_vae_forward.1} parent=1 // pred_region
      %3940 = dma.done [#allocation3], 448
    $region53: #{linear_vae_forward.1} parent=1 // pred_fallthru
      _
    // Predicated region
    $region54: #{linear_vae_forward.1} parent=1 // pred_check
      _
    $region55: #{linear_vae_forward.1} parent=1 // pred_check_branch
      %3942 = sbr.rel (0) target = $region57
    $region56: #{linear_vae_forward.1} parent=1 // pred_region
      _
    $region57: #{linear_vae_forward.1} parent=1 // pred_fallthru
      _
    %3943 = vsyncpa [#allocation3], 1

</llo_original>
